<compile_context>
chip_gen: v7x
topology: tpu7x:2x2x1
jax: 0.10.0
libtpu: 0.0.40
codegen_flags: <defaults>
</compile_context>

<pallas_src>
import math
import jax
import jax.numpy as jnp
from jax import lax
from jax.experimental import pallas as pl
from jax.experimental.pallas import tpu as pltpu

# ---- small config consistent with the module (scaled down) ----
VOCAB = 128              # nn.Embedding(20000, emb_dims) scaled down
EMB = 64                 # emb_dims (attention embed dim)
HIDDEN = 32              # MLP hidden
HEADS = 8
HEAD_DIM = EMB // HEADS  # 8
CLASSES = 6
B = 2
T = 8
LN_EPS = 1e-5


# ----------------- fully fused forward kernel (one batch element per grid step) -----------------
def fused_forward_kernel(tok_ref, emb_ref,
                         wq_ref, wk_ref, wv_ref, bq_ref, bk_ref, bv_ref,
                         wo_ref, bo_ref, g_ref, beta_ref,
                         w1_ref, b1_ref, w2_ref, b2_ref,
                         out_ref):
    # ---- embedding gather as a one-hot matmul (exact, lane-dense) ----
    ids = tok_ref[0]                                             # [T, 1] int32
    iota_v = lax.broadcasted_iota(jnp.int32, (T, VOCAB), 1)      # [T, VOCAB]
    onehot = (iota_v == ids).astype(jnp.float32)                 # [T, VOCAB]
    x = jnp.dot(onehot, emb_ref[...],
                preferred_element_type=jnp.float32)              # [T, EMB] f32

    # ---- multi-head self-attention, all heads batched (no per-head loop) ----
    xb = jnp.broadcast_to(x.astype(jnp.bfloat16)[None],
                          (HEADS, T, EMB))                       # [H, T, E] bf16
    dn_proj = (((2,), (1,)), ((0,), (0,)))                       # 'hte,hed->htd'
    q = lax.dot_general(xb, wq_ref[...], dn_proj,
                        preferred_element_type=jnp.float32) + bq_ref[...]
    k = lax.dot_general(xb, wk_ref[...], dn_proj,
                        preferred_element_type=jnp.float32) + bk_ref[...]
    v = lax.dot_general(xb, wv_ref[...], dn_proj,
                        preferred_element_type=jnp.float32) + bv_ref[...]

    # scores [H, T, T]; 1/sqrt(HD) already folded into wq/bq on the host
    s = lax.dot_general(q, k, (((2,), (2,)), ((0,), (0,))),
                        preferred_element_type=jnp.float32)
    s = s - jnp.max(s, axis=-1, keepdims=True)
    p = jnp.exp(s)
    p = p * pl.reciprocal(jnp.sum(p, axis=-1, keepdims=True), approx=True)

    o = lax.dot_general(p, v, (((2,), (1,)), ((0,), (0,))),
                        preferred_element_type=jnp.float32)      # [H, T, HD]

    # output projection applied per head, summed over heads == concat+matmul
    proj = lax.dot_general(o.astype(jnp.bfloat16), wo_ref[...],
                           (((2,), (1,)), ((0,), (0,))),
                           preferred_element_type=jnp.float32)   # [H, T, E]
    attn_out = jnp.sum(proj, axis=0) + bo_ref[...]               # [T, E]

    # ---- residual + LayerNorm over EMB ----
    z = x + attn_out
    mu = jnp.mean(z, axis=-1, keepdims=True)
    zc = z - mu
    var = jnp.mean(zc * zc, axis=-1, keepdims=True)
    y = zc * lax.rsqrt(var + LN_EPS) * g_ref[...] + beta_ref[...]

    # ---- mean pool over time, then MLP head (dropouts = identity) ----
    pooled = jnp.mean(y, axis=0, keepdims=True)                  # [1, EMB]
    h1 = jnp.maximum(
        jnp.dot(pooled.astype(jnp.bfloat16), w1_ref[...],
                preferred_element_type=jnp.float32) + b1_ref[...], 0.0)
    logits = jnp.dot(h1.astype(jnp.bfloat16), w2_ref[...],
                     preferred_element_type=jnp.float32) + b2_ref[...]
    out_ref[0] = logits                                          # [1, CLASSES]


# ----------------- wrapper -----------------
def forward(token_ids, lengths, params):
    # The reference forward never uses `lengths` inside the attention or the
    # pooling, so it is ignored here as well.
    del lengths
    tok3 = token_ids.astype(jnp.int32).reshape(B, T, 1)

    def full(shape):
        return pl.BlockSpec(shape, lambda b, _s=shape: (0,) * len(_s))

    in_specs = [
        pl.BlockSpec((1, T, 1), lambda b: (b, 0, 0)),            # token ids
        full((VOCAB, EMB)),                                      # embedding table
        full((HEADS, EMB, HEAD_DIM)),                            # wq (scaled)
        full((HEADS, EMB, HEAD_DIM)),                            # wk
        full((HEADS, EMB, HEAD_DIM)),                            # wv
        full((HEADS, 1, HEAD_DIM)),                              # bq (scaled)
        full((HEADS, 1, HEAD_DIM)),                              # bk
        full((HEADS, 1, HEAD_DIM)),                              # bv
        full((HEADS, HEAD_DIM, EMB)),                            # wo
        full((1, EMB)),                                          # bo
        full((1, EMB)),                                          # layernorm gamma
        full((1, EMB)),                                          # layernorm beta
        full((EMB, HIDDEN)),                                     # mlp w1
        full((1, HIDDEN)),                                       # mlp b1
        full((HIDDEN, CLASSES)),                                 # mlp w2
        full((1, CLASSES)),                                      # mlp b2
    ]
    out3 = pl.pallas_call(
        fused_forward_kernel,
        out_shape=jax.ShapeDtypeStruct((B, 1, CLASSES), jnp.float32),
        grid=(B,),
        in_specs=in_specs,
        out_specs=pl.BlockSpec((1, 1, CLASSES), lambda b: (b, 0, 0)),
        compiler_params=pltpu.CompilerParams(
            dimension_semantics=("parallel",)),
    )(tok3, params["emb"],
      params["wq"], params["wk"], params["wv"],
      params["bq"], params["bk"], params["bv"],
      params["wo"], params["bo"], params["gamma"], params["beta"],
      params["w1"], params["b1"], params["w2"], params["b2"])
    return out3[:, 0, :]                                         # [B, CLASSES]


# ----------------- deterministic parameter init (torch layouts -> kernel layouts) -----------------
def init_params(key):
    def u(k, shape, scale=0.1):
        return jax.random.uniform(k, shape, jnp.float32, -scale, scale)

    ks = iter(jax.random.split(key, 16))
    emb = jax.random.normal(next(ks), (VOCAB, EMB), jnp.float32) * 0.1
    in_w = u(next(ks), (3 * EMB, EMB))     # torch in_proj_weight [3E, E]
    in_b = u(next(ks), (3 * EMB,))         # torch in_proj_bias  [3E]
    out_w = u(next(ks), (EMB, EMB))        # torch out_proj.weight [E, E]
    out_b = u(next(ks), (EMB,))
    W1 = u(next(ks), (HIDDEN, EMB))        # torch Linear(EMB, HIDDEN).weight
    b1 = u(next(ks), (HIDDEN,))
    W2 = u(next(ks), (CLASSES, HIDDEN))    # torch Linear(HIDDEN, CLASSES).weight
    b2 = u(next(ks), (CLASSES,))

    scale = 1.0 / math.sqrt(HEAD_DIM)
    Wq, Wk, Wv = in_w[:EMB], in_w[EMB:2 * EMB], in_w[2 * EMB:]
    bq, bk, bv = in_b[:EMB], in_b[EMB:2 * EMB], in_b[2 * EMB:]

    def to_heads(W):   # [E, E] torch weight -> [H, E, HD] for 'hte,hed->htd'
        return jnp.transpose(W.reshape(HEADS, HEAD_DIM, EMB), (0, 2, 1))

    return {
        "emb": emb,
        "wq": (to_heads(Wq) * scale).astype(jnp.bfloat16),
        "wk": to_heads(Wk).astype(jnp.bfloat16),
        "wv": to_heads(Wv).astype(jnp.bfloat16),
        "bq": (bq.reshape(HEADS, 1, HEAD_DIM) * scale),
        "bk": bk.reshape(HEADS, 1, HEAD_DIM),
        "bv": bv.reshape(HEADS, 1, HEAD_DIM),
        "wo": out_w.T.reshape(HEADS, HEAD_DIM, EMB).astype(jnp.bfloat16),
        "bo": out_b.reshape(1, EMB),
        "gamma": jnp.ones((1, EMB), jnp.float32),   # torch LayerNorm defaults
        "beta": jnp.zeros((1, EMB), jnp.float32),
        "w1": W1.T.astype(jnp.bfloat16),
        "b1": b1.reshape(1, HIDDEN),
        "w2": W2.T.astype(jnp.bfloat16),
        "b2": b2.reshape(1, CLASSES),
    }


if __name__ == "__main__":
    key = jax.random.PRNGKey(0)
    pkey, xkey = jax.random.split(key)
    params = init_params(pkey)
    token_ids = jax.random.randint(xkey, (B, T), 0, VOCAB, dtype=jnp.int32)
    lengths = jnp.array([T, T - 2], dtype=jnp.int32)   # unused by the reference forward

    logits = forward(token_ids, lengths, params)
    jax.block_until_ready(logits)
    assert logits.shape == (B, CLASSES) and logits.dtype == jnp.float32
    print("KERNEL_OK")
</pallas_src>

<mosaic_0001>
module attributes {stable_mosaic.version = 11 : i64} {
  func.func @fused_forward_kernel(%arg0: i32, %arg1: memref<1x8x1xi32, #tpu.memory_space<vmem>>, %arg2: memref<128x64xf32, #tpu.memory_space<vmem>>, %arg3: memref<8x64x8xbf16, #tpu.memory_space<vmem>>, %arg4: memref<8x64x8xbf16, #tpu.memory_space<vmem>>, %arg5: memref<8x64x8xbf16, #tpu.memory_space<vmem>>, %arg6: memref<8x1x8xf32, #tpu.memory_space<vmem>>, %arg7: memref<8x1x8xf32, #tpu.memory_space<vmem>>, %arg8: memref<8x1x8xf32, #tpu.memory_space<vmem>>, %arg9: memref<8x8x64xbf16, #tpu.memory_space<vmem>>, %arg10: memref<1x64xf32, #tpu.memory_space<vmem>>, %arg11: memref<1x64xf32, #tpu.memory_space<vmem>>, %arg12: memref<1x64xf32, #tpu.memory_space<vmem>>, %arg13: memref<64x32xbf16, #tpu.memory_space<vmem>>, %arg14: memref<1x32xf32, #tpu.memory_space<vmem>>, %arg15: memref<32x6xbf16, #tpu.memory_space<vmem>>, %arg16: memref<1x6xf32, #tpu.memory_space<vmem>>, %arg17: memref<1x1x6xf32, #tpu.memory_space<vmem>>) attributes {dimension_semantics = [#tpu.dimension_semantics<parallel>], iteration_bounds = array<i64: 2>, scalar_prefetch = 0 : i64, scratch_operands = 0 : i64, tpu.core_type = #tpu.core_type<tc>, window_params = [{transform_indices = @transform_0, window_bounds = array<i64: 1, 8, 1>}, {pipeline_mode = #tpu.pipeline_mode<synchronous>, transform_indices = @transform_1, window_bounds = array<i64: 128, 64>}, {pipeline_mode = #tpu.pipeline_mode<synchronous>, transform_indices = @transform_2, window_bounds = array<i64: 8, 64, 8>}, {pipeline_mode = #tpu.pipeline_mode<synchronous>, transform_indices = @transform_3, window_bounds = array<i64: 8, 64, 8>}, {pipeline_mode = #tpu.pipeline_mode<synchronous>, transform_indices = @transform_4, window_bounds = array<i64: 8, 64, 8>}, {pipeline_mode = #tpu.pipeline_mode<synchronous>, transform_indices = @transform_5, window_bounds = array<i64: 8, 1, 8>}, {pipeline_mode = #tpu.pipeline_mode<synchronous>, transform_indices = @transform_6, window_bounds = array<i64: 8, 1, 8>}, {pipeline_mode = #tpu.pipeline_mode<synchronous>, transform_indices = @transform_7, window_bounds = array<i64: 8, 1, 8>}, {pipeline_mode = #tpu.pipeline_mode<synchronous>, transform_indices = @transform_8, window_bounds = array<i64: 8, 8, 64>}, {pipeline_mode = #tpu.pipeline_mode<synchronous>, transform_indices = @transform_9, window_bounds = array<i64: 1, 64>}, {pipeline_mode = #tpu.pipeline_mode<synchronous>, transform_indices = @transform_10, window_bounds = array<i64: 1, 64>}, {pipeline_mode = #tpu.pipeline_mode<synchronous>, transform_indices = @transform_11, window_bounds = array<i64: 1, 64>}, {pipeline_mode = #tpu.pipeline_mode<synchronous>, transform_indices = @transform_12, window_bounds = array<i64: 64, 32>}, {pipeline_mode = #tpu.pipeline_mode<synchronous>, transform_indices = @transform_13, window_bounds = array<i64: 1, 32>}, {pipeline_mode = #tpu.pipeline_mode<synchronous>, transform_indices = @transform_14, window_bounds = array<i64: 32, 6>}, {pipeline_mode = #tpu.pipeline_mode<synchronous>, transform_indices = @transform_15, window_bounds = array<i64: 1, 6>}, {transform_indices = @transform_16, window_bounds = array<i64: 1, 1, 6>}]} {
    %c0 = arith.constant 0 : index
    %c0_0 = arith.constant 0 : index
    %c0_1 = arith.constant 0 : index
    %0 = vector.load %arg1[%c0, %c0_0, %c0_1] : memref<1x8x1xi32, #tpu.memory_space<vmem>>, vector<1x8x1xi32>
    %1 = vector.shape_cast %0 : vector<1x8x1xi32> to vector<8x1xi32>
    %2 = tpu.iota {dimensions = array<i32: 1>} : vector<8x128xi32>
    %3 = vector.broadcast %1 : vector<8x1xi32> to vector<8x128xi32>
    %4 = arith.cmpi eq, %2, %3 : vector<8x128xi32>
    %5 = arith.extui %4 : vector<8x128xi1> to vector<8x128xi32>
    %6 = arith.sitofp %5 : vector<8x128xi32> to vector<8x128xf32>
    %c0_2 = arith.constant 0 : index
    %c0_3 = arith.constant 0 : index
    %7 = vector.load %arg2[%c0_2, %c0_3] : memref<128x64xf32, #tpu.memory_space<vmem>>, vector<128x64xf32>
    %cst = arith.constant dense<0.000000e+00> : vector<8x64xf32>
    %8 = tpu.matmul %6, %7, %cst {dimension_numbers = #tpu.dot_dimension_numbers<[1], [0], [0], [1], [0, 0, 1, 1], [], []>} : vector<8x128xf32>, vector<128x64xf32>, vector<8x64xf32> -> vector<8x64xf32>
    %9 = arith.truncf %8 : vector<8x64xf32> to vector<8x64xbf16>
    %10 = vector.shape_cast %9 : vector<8x64xbf16> to vector<1x8x64xbf16>
    %11 = vector.shape_cast %10 : vector<1x8x64xbf16> to vector<1x8x64xbf16>
    %12 = vector.broadcast %11 : vector<1x8x64xbf16> to vector<8x8x64xbf16>
    %c0_4 = arith.constant 0 : index
    %c0_5 = arith.constant 0 : index
    %c0_6 = arith.constant 0 : index
    %13 = vector.load %arg3[%c0_4, %c0_5, %c0_6] : memref<8x64x8xbf16, #tpu.memory_space<vmem>>, vector<8x64x8xbf16>
    %cst_7 = arith.constant dense<0.000000e+00> : vector<8x8x8xf32>
    %14 = tpu.matmul %12, %13, %cst_7 {dimension_numbers = #tpu.dot_dimension_numbers<[2], [1], [1], [2], [0, 0, 0, 1, 1, 2], [0], [0]>} : vector<8x8x64xbf16>, vector<8x64x8xbf16>, vector<8x8x8xf32> -> vector<8x8x8xf32>
    %c0_8 = arith.constant 0 : index
    %c0_9 = arith.constant 0 : index
    %c0_10 = arith.constant 0 : index
    %15 = vector.load %arg6[%c0_8, %c0_9, %c0_10] : memref<8x1x8xf32, #tpu.memory_space<vmem>>, vector<8x1x8xf32>
    %16 = vector.broadcast %15 : vector<8x1x8xf32> to vector<8x8x8xf32>
    %17 = arith.addf %14, %16 : vector<8x8x8xf32>
    %c0_11 = arith.constant 0 : index
    %c0_12 = arith.constant 0 : index
    %c0_13 = arith.constant 0 : index
    %18 = vector.load %arg4[%c0_11, %c0_12, %c0_13] : memref<8x64x8xbf16, #tpu.memory_space<vmem>>, vector<8x64x8xbf16>
    %cst_14 = arith.constant dense<0.000000e+00> : vector<8x8x8xf32>
    %19 = tpu.matmul %12, %18, %cst_14 {dimension_numbers = #tpu.dot_dimension_numbers<[2], [1], [1], [2], [0, 0, 0, 1, 1, 2], [0], [0]>} : vector<8x8x64xbf16>, vector<8x64x8xbf16>, vector<8x8x8xf32> -> vector<8x8x8xf32>
    %c0_15 = arith.constant 0 : index
    %c0_16 = arith.constant 0 : index
    %c0_17 = arith.constant 0 : index
    %20 = vector.load %arg7[%c0_15, %c0_16, %c0_17] : memref<8x1x8xf32, #tpu.memory_space<vmem>>, vector<8x1x8xf32>
    %21 = vector.broadcast %20 : vector<8x1x8xf32> to vector<8x8x8xf32>
    %22 = arith.addf %19, %21 : vector<8x8x8xf32>
    %c0_18 = arith.constant 0 : index
    %c0_19 = arith.constant 0 : index
    %c0_20 = arith.constant 0 : index
    %23 = vector.load %arg5[%c0_18, %c0_19, %c0_20] : memref<8x64x8xbf16, #tpu.memory_space<vmem>>, vector<8x64x8xbf16>
    %cst_21 = arith.constant dense<0.000000e+00> : vector<8x8x8xf32>
    %24 = tpu.matmul %12, %23, %cst_21 {dimension_numbers = #tpu.dot_dimension_numbers<[2], [1], [1], [2], [0, 0, 0, 1, 1, 2], [0], [0]>} : vector<8x8x64xbf16>, vector<8x64x8xbf16>, vector<8x8x8xf32> -> vector<8x8x8xf32>
    %c0_22 = arith.constant 0 : index
    %c0_23 = arith.constant 0 : index
    %c0_24 = arith.constant 0 : index
    %25 = vector.load %arg8[%c0_22, %c0_23, %c0_24] : memref<8x1x8xf32, #tpu.memory_space<vmem>>, vector<8x1x8xf32>
    %26 = vector.broadcast %25 : vector<8x1x8xf32> to vector<8x8x8xf32>
    %27 = arith.addf %24, %26 : vector<8x8x8xf32>
    %cst_25 = arith.constant dense<0.000000e+00> : vector<8x8x8xf32>
    %28 = tpu.matmul %17, %22, %cst_25 {dimension_numbers = #tpu.dot_dimension_numbers<[2], [2], [1], [1], [0, 0, 0, 1, 1, 1], [0], [0]>} : vector<8x8x8xf32>, vector<8x8x8xf32>, vector<8x8x8xf32> -> vector<8x8x8xf32>
    %cst_26 = arith.constant dense<0xFF800000> : vector<8x8xf32>
    %29 = vector.multi_reduction <maximumf>, %28, %cst_26 [2] : vector<8x8x8xf32> to vector<8x8xf32>
    %30 = vector.shape_cast %29 : vector<8x8xf32> to vector<8x8x1xf32>
    %31 = vector.broadcast %30 : vector<8x8x1xf32> to vector<8x8x8xf32>
    %32 = arith.subf %28, %31 : vector<8x8x8xf32>
    %33 = math.exp %32 : vector<8x8x8xf32>
    %cst_27 = arith.constant dense<0.000000e+00> : vector<8x8xf32>
    %34 = vector.multi_reduction <add>, %33, %cst_27 [2] : vector<8x8x8xf32> to vector<8x8xf32>
    %35 = vector.shape_cast %34 : vector<8x8xf32> to vector<8x8x1xf32>
    %36 = tpu.reciprocal %35 {approx = true} : vector<8x8x1xf32> -> vector<8x8x1xf32>
    %37 = vector.broadcast %36 : vector<8x8x1xf32> to vector<8x8x8xf32>
    %38 = arith.mulf %33, %37 : vector<8x8x8xf32>
    %cst_28 = arith.constant dense<0.000000e+00> : vector<8x8x8xf32>
    %39 = tpu.matmul %38, %27, %cst_28 {dimension_numbers = #tpu.dot_dimension_numbers<[2], [1], [1], [2], [0, 0, 0, 1, 1, 2], [0], [0]>} : vector<8x8x8xf32>, vector<8x8x8xf32>, vector<8x8x8xf32> -> vector<8x8x8xf32>
    %40 = arith.truncf %39 : vector<8x8x8xf32> to vector<8x8x8xbf16>
    %c0_29 = arith.constant 0 : index
    %c0_30 = arith.constant 0 : index
    %c0_31 = arith.constant 0 : index
    %41 = vector.load %arg9[%c0_29, %c0_30, %c0_31] : memref<8x8x64xbf16, #tpu.memory_space<vmem>>, vector<8x8x64xbf16>
    %cst_32 = arith.constant dense<0.000000e+00> : vector<8x8x64xf32>
    %42 = tpu.matmul %40, %41, %cst_32 {dimension_numbers = #tpu.dot_dimension_numbers<[2], [1], [1], [2], [0, 0, 0, 1, 1, 2], [0], [0]>} : vector<8x8x8xbf16>, vector<8x8x64xbf16>, vector<8x8x64xf32> -> vector<8x8x64xf32>
    %cst_33 = arith.constant dense<0.000000e+00> : vector<8x64xf32>
    %43 = vector.multi_reduction <add>, %42, %cst_33 [0] : vector<8x8x64xf32> to vector<8x64xf32>
    %c0_34 = arith.constant 0 : index
    %c0_35 = arith.constant 0 : index
    %44 = vector.load %arg10[%c0_34, %c0_35] : memref<1x64xf32, #tpu.memory_space<vmem>>, vector<1x64xf32>
    %45 = vector.broadcast %44 : vector<1x64xf32> to vector<8x64xf32>
    %46 = arith.addf %43, %45 : vector<8x64xf32>
    %47 = arith.addf %8, %46 : vector<8x64xf32>
    %cst_36 = arith.constant dense<0.000000e+00> : vector<8xf32>
    %48 = vector.multi_reduction <add>, %47, %cst_36 [1] : vector<8x64xf32> to vector<8xf32>
    %49 = vector.shape_cast %48 : vector<8xf32> to vector<8x1xf32>
    %cst_37 = arith.constant 6.400000e+01 : f32
    %50 = vector.broadcast %cst_37 : f32 to vector<8x1xf32>
    %51 = arith.divf %49, %50 : vector<8x1xf32>
    %52 = vector.broadcast %51 : vector<8x1xf32> to vector<8x64xf32>
    %53 = arith.subf %47, %52 : vector<8x64xf32>
    %54 = arith.mulf %53, %53 : vector<8x64xf32>
    %cst_38 = arith.constant dense<0.000000e+00> : vector<8xf32>
    %55 = vector.multi_reduction <add>, %54, %cst_38 [1] : vector<8x64xf32> to vector<8xf32>
    %56 = vector.shape_cast %55 : vector<8xf32> to vector<8x1xf32>
    %cst_39 = arith.constant 6.400000e+01 : f32
    %57 = vector.broadcast %cst_39 : f32 to vector<8x1xf32>
    %58 = arith.divf %56, %57 : vector<8x1xf32>
    %cst_40 = arith.constant 9.99999974E-6 : f32
    %59 = vector.broadcast %cst_40 : f32 to vector<8x1xf32>
    %60 = arith.addf %58, %59 : vector<8x1xf32>
    %61 = math.rsqrt %60 : vector<8x1xf32>
    %62 = vector.broadcast %61 : vector<8x1xf32> to vector<8x64xf32>
    %63 = arith.mulf %53, %62 : vector<8x64xf32>
    %c0_41 = arith.constant 0 : index
    %c0_42 = arith.constant 0 : index
    %64 = vector.load %arg11[%c0_41, %c0_42] : memref<1x64xf32, #tpu.memory_space<vmem>>, vector<1x64xf32>
    %65 = vector.broadcast %64 : vector<1x64xf32> to vector<8x64xf32>
    %66 = arith.mulf %63, %65 : vector<8x64xf32>
    %c0_43 = arith.constant 0 : index
    %c0_44 = arith.constant 0 : index
    %67 = vector.load %arg12[%c0_43, %c0_44] : memref<1x64xf32, #tpu.memory_space<vmem>>, vector<1x64xf32>
    %68 = vector.broadcast %67 : vector<1x64xf32> to vector<8x64xf32>
    %69 = arith.addf %66, %68 : vector<8x64xf32>
    %cst_45 = arith.constant dense<0.000000e+00> : vector<64xf32>
    %70 = vector.multi_reduction <add>, %69, %cst_45 [0] : vector<8x64xf32> to vector<64xf32>
    %71 = vector.shape_cast %70 : vector<64xf32> to vector<1x64xf32>
    %cst_46 = arith.constant 8.000000e+00 : f32
    %72 = vector.broadcast %cst_46 : f32 to vector<1x64xf32>
    %73 = arith.divf %71, %72 : vector<1x64xf32>
    %74 = arith.truncf %73 : vector<1x64xf32> to vector<1x64xbf16>
    %c0_47 = arith.constant 0 : index
    %c0_48 = arith.constant 0 : index
    %75 = vector.load %arg13[%c0_47, %c0_48] : memref<64x32xbf16, #tpu.memory_space<vmem>>, vector<64x32xbf16>
    %cst_49 = arith.constant dense<0.000000e+00> : vector<1x32xf32>
    %76 = tpu.matmul %74, %75, %cst_49 {dimension_numbers = #tpu.dot_dimension_numbers<[1], [0], [0], [1], [0, 0, 1, 1], [], []>} : vector<1x64xbf16>, vector<64x32xbf16>, vector<1x32xf32> -> vector<1x32xf32>
    %c0_50 = arith.constant 0 : index
    %c0_51 = arith.constant 0 : index
    %77 = vector.load %arg14[%c0_50, %c0_51] : memref<1x32xf32, #tpu.memory_space<vmem>>, vector<1x32xf32>
    %78 = arith.addf %76, %77 : vector<1x32xf32>
    %cst_52 = arith.constant 0.000000e+00 : f32
    %79 = vector.broadcast %cst_52 : f32 to vector<1x32xf32>
    %80 = arith.maximumf %78, %79 : vector<1x32xf32>
    %81 = arith.truncf %80 : vector<1x32xf32> to vector<1x32xbf16>
    %c0_53 = arith.constant 0 : index
    %c0_54 = arith.constant 0 : index
    %82 = vector.load %arg15[%c0_53, %c0_54] : memref<32x6xbf16, #tpu.memory_space<vmem>>, vector<32x6xbf16>
    %cst_55 = arith.constant dense<0.000000e+00> : vector<1x6xf32>
    %83 = tpu.matmul %81, %82, %cst_55 {dimension_numbers = #tpu.dot_dimension_numbers<[1], [0], [0], [1], [0, 0, 1, 1], [], []>} : vector<1x32xbf16>, vector<32x6xbf16>, vector<1x6xf32> -> vector<1x6xf32>
    %c0_56 = arith.constant 0 : index
    %c0_57 = arith.constant 0 : index
    %84 = vector.load %arg16[%c0_56, %c0_57] : memref<1x6xf32, #tpu.memory_space<vmem>>, vector<1x6xf32>
    %85 = arith.addf %83, %84 : vector<1x6xf32>
    %c0_58 = arith.constant 0 : index
    %c0_59 = arith.constant 0 : index
    %c0_60 = arith.constant 0 : index
    %86 = vector.load %arg17[%c0_58, %c0_59, %c0_60] : memref<1x1x6xf32, #tpu.memory_space<vmem>>, vector<1x1x6xf32>
    %87 = vector.shape_cast %86 : vector<1x1x6xf32> to vector<1x6xf32>
    %88 = vector.shape_cast %85 : vector<1x6xf32> to vector<1x1x6xf32>
    tpu.vector_store %arg17[%c0_58, %c0_59, %c0_60], %88 {strides = array<i32>} : memref<1x1x6xf32, #tpu.memory_space<vmem>>, vector<1x1x6xf32>,
    return
  }
  func.func @transform_0(%arg0: i32) -> (i32, i32, i32) {
    %c0_i32 = arith.constant 0 : i32
    %c0_i32_0 = arith.constant 0 : i32
    %c0_i32_1 = arith.constant 0 : i32
    return %arg0, %c0_i32, %c0_i32_0 : i32, i32, i32
  }
  func.func @transform_1(%arg0: i32) -> (i32, i32) {
    %c0_i32 = arith.constant 0 : i32
    %c0_i32_0 = arith.constant 0 : i32
    %c0_i32_1 = arith.constant 0 : i32
    return %c0_i32, %c0_i32_0 : i32, i32
  }
  func.func @transform_2(%arg0: i32) -> (i32, i32, i32) {
    %c0_i32 = arith.constant 0 : i32
    %c0_i32_0 = arith.constant 0 : i32
    %c0_i32_1 = arith.constant 0 : i32
    %c0_i32_2 = arith.constant 0 : i32
    return %c0_i32, %c0_i32_0, %c0_i32_1 : i32, i32, i32
  }
  func.func @transform_3(%arg0: i32) -> (i32, i32, i32) {
    %c0_i32 = arith.constant 0 : i32
    %c0_i32_0 = arith.constant 0 : i32
    %c0_i32_1 = arith.constant 0 : i32
    %c0_i32_2 = arith.constant 0 : i32
    return %c0_i32, %c0_i32_0, %c0_i32_1 : i32, i32, i32
  }
  func.func @transform_4(%arg0: i32) -> (i32, i32, i32) {
    %c0_i32 = arith.constant 0 : i32
    %c0_i32_0 = arith.constant 0 : i32
    %c0_i32_1 = arith.constant 0 : i32
    %c0_i32_2 = arith.constant 0 : i32
    return %c0_i32, %c0_i32_0, %c0_i32_1 : i32, i32, i32
  }
  func.func @transform_5(%arg0: i32) -> (i32, i32, i32) {
    %c0_i32 = arith.constant 0 : i32
    %c0_i32_0 = arith.constant 0 : i32
    %c0_i32_1 = arith.constant 0 : i32
    %c0_i32_2 = arith.constant 0 : i32
    return %c0_i32, %c0_i32_0, %c0_i32_1 : i32, i32, i32
  }
  func.func @transform_6(%arg0: i32) -> (i32, i32, i32) {
    %c0_i32 = arith.constant 0 : i32
    %c0_i32_0 = arith.constant 0 : i32
    %c0_i32_1 = arith.constant 0 : i32
    %c0_i32_2 = arith.constant 0 : i32
    return %c0_i32, %c0_i32_0, %c0_i32_1 : i32, i32, i32
  }
  func.func @transform_7(%arg0: i32) -> (i32, i32, i32) {
    %c0_i32 = arith.constant 0 : i32
    %c0_i32_0 = arith.constant 0 : i32
    %c0_i32_1 = arith.constant 0 : i32
    %c0_i32_2 = arith.constant 0 : i32
    return %c0_i32, %c0_i32_0, %c0_i32_1 : i32, i32, i32
  }
  func.func @transform_8(%arg0: i32) -> (i32, i32, i32) {
    %c0_i32 = arith.constant 0 : i32
    %c0_i32_0 = arith.constant 0 : i32
    %c0_i32_1 = arith.constant 0 : i32
    %c0_i32_2 = arith.constant 0 : i32
    return %c0_i32, %c0_i32_0, %c0_i32_1 : i32, i32, i32
  }
  func.func @transform_9(%arg0: i32) -> (i32, i32) {
    %c0_i32 = arith.constant 0 : i32
    %c0_i32_0 = arith.constant 0 : i32
    %c0_i32_1 = arith.constant 0 : i32
    return %c0_i32, %c0_i32_0 : i32, i32
  }
  func.func @transform_10(%arg0: i32) -> (i32, i32) {
    %c0_i32 = arith.constant 0 : i32
    %c0_i32_0 = arith.constant 0 : i32
    %c0_i32_1 = arith.constant 0 : i32
    return %c0_i32, %c0_i32_0 : i32, i32
  }
  func.func @transform_11(%arg0: i32) -> (i32, i32) {
    %c0_i32 = arith.constant 0 : i32
    %c0_i32_0 = arith.constant 0 : i32
    %c0_i32_1 = arith.constant 0 : i32
    return %c0_i32, %c0_i32_0 : i32, i32
  }
  func.func @transform_12(%arg0: i32) -> (i32, i32) {
    %c0_i32 = arith.constant 0 : i32
    %c0_i32_0 = arith.constant 0 : i32
    %c0_i32_1 = arith.constant 0 : i32
    return %c0_i32, %c0_i32_0 : i32, i32
  }
  func.func @transform_13(%arg0: i32) -> (i32, i32) {
    %c0_i32 = arith.constant 0 : i32
    %c0_i32_0 = arith.constant 0 : i32
    %c0_i32_1 = arith.constant 0 : i32
    return %c0_i32, %c0_i32_0 : i32, i32
  }
  func.func @transform_14(%arg0: i32) -> (i32, i32) {
    %c0_i32 = arith.constant 0 : i32
    %c0_i32_0 = arith.constant 0 : i32
    %c0_i32_1 = arith.constant 0 : i32
    return %c0_i32, %c0_i32_0 : i32, i32
  }
  func.func @transform_15(%arg0: i32) -> (i32, i32) {
    %c0_i32 = arith.constant 0 : i32
    %c0_i32_0 = arith.constant 0 : i32
    %c0_i32_1 = arith.constant 0 : i32
    return %c0_i32, %c0_i32_0 : i32, i32
  }
  func.func @transform_16(%arg0: i32) -> (i32, i32, i32) {
    %c0_i32 = arith.constant 0 : i32
    %c0_i32_0 = arith.constant 0 : i32
    %c0_i32_1 = arith.constant 0 : i32
    return %arg0, %c0_i32, %c0_i32_0 : i32, i32, i32
  }
}

</mosaic_0001>

<llo_original>
// kernel: tpu_custom_call.1
$region0: #{tpu_custom_call.1}
  #allocation0 [shape = 'u32[]', space=smem, size = 0x4, offset = 0x4, fixed_abs, tag = 'smem constant byte address 0x4 - core index']
  #allocation1 [shape = 'u32[144,128]{1,0:T(1,128)}', space=vmem, size = 0x12000, scoped, tag = 'internal scratch']
  %s0 = inlined_call_operand.vmem [shape: s32[2,8,1], index: 0, kind: input, shape index: {}]
  %s1 = inlined_call_operand.vmem [shape: f32[128,64], index: 1, kind: input, shape index: {}]
  %s2 = inlined_call_operand.vmem [shape: bf16[8,64,8], index: 2, kind: input, shape index: {}]
  %s3 = inlined_call_operand.vmem [shape: bf16[8,64,8], index: 3, kind: input, shape index: {}]
  %s4 = inlined_call_operand.vmem [shape: bf16[8,64,8], index: 4, kind: input, shape index: {}]
  %s5 = inlined_call_operand.vmem [shape: f32[8,1,8], index: 5, kind: input, shape index: {}]
  %s6 = inlined_call_operand.vmem [shape: f32[8,1,8], index: 6, kind: input, shape index: {}]
  %s7 = inlined_call_operand.vmem [shape: f32[8,1,8], index: 7, kind: input, shape index: {}]
  %s8 = inlined_call_operand.vmem [shape: bf16[8,8,64], index: 8, kind: input, shape index: {}]
  %s9 = inlined_call_operand.vmem [shape: f32[1,64], index: 9, kind: input, shape index: {}]
  %s10 = inlined_call_operand.vmem [shape: f32[1,64], index: 10, kind: input, shape index: {}]
  %s11 = inlined_call_operand.vmem [shape: f32[1,64], index: 11, kind: input, shape index: {}]
  %s12 = inlined_call_operand.vmem [shape: bf16[64,32], index: 12, kind: input, shape index: {}]
  %s13 = inlined_call_operand.vmem [shape: f32[1,32], index: 13, kind: input, shape index: {}]
  %s14 = inlined_call_operand.vmem [shape: bf16[32,6], index: 14, kind: input, shape index: {}]
  %s15 = inlined_call_operand.vmem [shape: f32[1,6], index: 15, kind: input, shape index: {}]
  %s16 = inlined_call_operand.hbm [shape: f32[2,1,6], index: 16, kind: output, shape index: {}]
  %s17 = sld [smem:[#allocation0]]
  $region97: #{tpu_custom_call.1} parent=0
    _
  %s19 = ssub.s32 1, %s17
  %s20 = scalar_select 0, %s19, %s17
  $region1: #{tpu_custom_call.1} parent=0
    #allocation2 [shape = 'u8[1024]{0}', space=vmem, size = 0x400, scoped, tag = 'output window, operand 0']
    #allocation3 [shape = 's32[2]{0}', space=sflag, size = 0x8, scoped, tag = 'scoped memory for tpu_custom_call.1']
    %21 = vsyncpa [#allocation3], 0
    %s22 = scalar_lea.sflag [#allocation3], 1
    %23 = vsyncpa %s22, 0
    loop: start=0, step=1, limit=4
    $region2: #{tpu_custom_call.1} parent=1 // loop_pre_header
      _
    $region3: #{tpu_custom_call.1} parent=1 // loop_header
      %s25 = sphi 0, %s29
      %p26 = scmp.ge.s32.totalorder %s25, 4
      %s35 = sphi 0, %s37
      %s38 = sphi 0, %s35
      %s39 = sphi 0, %s38
      %s55 = sphi 0, %s39
      %s59 = sphi 0, %s59
      %s61 = sphi 0, %s59
      %s62 = sphi 0, %s61
      %s76 = sphi 0, %s62
      %s80 = sphi 0, %s80
      %s82 = sphi 0, %s80
      %s83 = sphi 0, %s82
      %s97 = sphi 0, %s83
      %s101 = sphi 0, %s101
      %s103 = sphi 0, %s101
      %s104 = sphi 0, %s103
      %s118 = sphi 0, %s104
      %s122 = sphi 0, %s122
      %s124 = sphi 0, %s122
      %s125 = sphi 0, %s124
      %s139 = sphi 0, %s125
      %s143 = sphi 0, %s143
      %s145 = sphi 0, %s143
      %s146 = sphi 0, %s145
      %s160 = sphi 0, %s146
      %s164 = sphi 0, %s164
      %s166 = sphi 0, %s164
      %s167 = sphi 0, %s166
      %s181 = sphi 0, %s167
      %s185 = sphi 0, %s185
      %s187 = sphi 0, %s185
      %s188 = sphi 0, %s187
      %s202 = sphi 0, %s188
      %s206 = sphi 0, %s206
      %s208 = sphi 0, %s206
      %s209 = sphi 0, %s208
      %s223 = sphi 0, %s209
      %s227 = sphi 0, %s227
      %s229 = sphi 0, %s227
      %s230 = sphi 0, %s229
      %s244 = sphi 0, %s230
      %s248 = sphi 0, %s248
      %s250 = sphi 0, %s248
      %s251 = sphi 0, %s250
      %s265 = sphi 0, %s251
      %s269 = sphi 0, %s269
      %s271 = sphi 0, %s269
      %s272 = sphi 0, %s271
      %s286 = sphi 0, %s272
      %s290 = sphi 0, %s290
      %s292 = sphi 0, %s290
      %s293 = sphi 0, %s292
      %s307 = sphi 0, %s293
      %s311 = sphi 0, %s311
      %s313 = sphi 0, %s311
      %s314 = sphi 0, %s313
      %s328 = sphi 0, %s314
      %s332 = sphi 0, %s332
      %s334 = sphi 0, %s332
      %s335 = sphi 0, %s334
      %s349 = sphi 0, %s335
      %s353 = sphi 0, %s353
      %s355 = sphi 0, %s353
      %s356 = sphi 0, %s355
      %s370 = sphi 0, %s356
      %s376 = sphi 0, %s378
      %s379 = sphi 0, %s376
      %s380 = sphi 0, %s379
      %s396 = sphi 0, %s380
    $region4: #{tpu_custom_call.1} parent=1 // loop_header_branch
      %28 = sbr.rel (%p26) target = $region8
    $region5: #{tpu_custom_call.1} parent=1 // loop_body
      %s30 = ssub.s32 %s25, 1
      %s31 = ssub.s32 %s25, 2
      %s32 = sadd.s32 %s25, 1
      %s33 = ssub.s32 %s25, %s32
      %p34 = scmp.eq.s32.totalorder %s33, 0
      %s36 = sadd.s32 %s35, 1
      %s37 = scalar_select %p34, %s35, %s36
      %p40 = pneg %p34
      %p41 = scmp.eq.s32.totalorder %s25, 1
      %p42 = por %p40, %p41
      %p43 = scmp.ne.s32.totalorder %s35, %s38
      %p44 = scmp.eq.s32.totalorder %s25, 0
      %p45 = por %p43, %p44
      %p46 = scmp.ne.s32.totalorder %s35, %s38
      %p47 = scmp.eq.s32.totalorder %s30, 1
      %p48 = por %p46, %p47
      %p49 = scmp.ne.s32.totalorder %s38, %s39
      %p50 = scmp.eq.s32.totalorder %s30, 0
      %p51 = por %p49, %p50
      %p52 = scmp.ne.s32.totalorder %s38, %s39
      %p53 = scmp.eq.s32.totalorder %s31, 1
      %p54 = por %p52, %p53
      %p56 = scmp.ne.s32.totalorder %s39, %s55
      %p57 = scmp.eq.s32.totalorder %s31, 0
      %p58 = por %p56, %p57
      %s60 = sadd.s32 %s59, 1
      %p63 = scmp.eq.s32.totalorder %s25, 1
      %p64 = scmp.ne.s32.totalorder %s59, %s61
      %p65 = scmp.eq.s32.totalorder %s25, 0
      %p66 = por %p64, %p65
      %p67 = scmp.ne.s32.totalorder %s59, %s61
      %p68 = scmp.eq.s32.totalorder %s30, 1
      %p69 = por %p67, %p68
      %p70 = scmp.ne.s32.totalorder %s61, %s62
      %p71 = scmp.eq.s32.totalorder %s30, 0
      %p72 = por %p70, %p71
      %p73 = scmp.ne.s32.totalorder %s61, %s62
      %p74 = scmp.eq.s32.totalorder %s31, 1
      %p75 = por %p73, %p74
      %p77 = scmp.ne.s32.totalorder %s62, %s76
      %p78 = scmp.eq.s32.totalorder %s31, 0
      %p79 = por %p77, %p78
      %s81 = sadd.s32 %s80, 1
      %p84 = scmp.eq.s32.totalorder %s25, 1
      %p85 = scmp.ne.s32.totalorder %s80, %s82
      %p86 = scmp.eq.s32.totalorder %s25, 0
      %p87 = por %p85, %p86
      %p88 = scmp.ne.s32.totalorder %s80, %s82
      %p89 = scmp.eq.s32.totalorder %s30, 1
      %p90 = por %p88, %p89
      %p91 = scmp.ne.s32.totalorder %s82, %s83
      %p92 = scmp.eq.s32.totalorder %s30, 0
      %p93 = por %p91, %p92
      %p94 = scmp.ne.s32.totalorder %s82, %s83
      %p95 = scmp.eq.s32.totalorder %s31, 1
      %p96 = por %p94, %p95
      %p98 = scmp.ne.s32.totalorder %s83, %s97
      %p99 = scmp.eq.s32.totalorder %s31, 0
      %p100 = por %p98, %p99
      %s102 = sadd.s32 %s101, 1
      %p105 = scmp.eq.s32.totalorder %s25, 1
      %p106 = scmp.ne.s32.totalorder %s101, %s103
      %p107 = scmp.eq.s32.totalorder %s25, 0
      %p108 = por %p106, %p107
      %p109 = scmp.ne.s32.totalorder %s101, %s103
      %p110 = scmp.eq.s32.totalorder %s30, 1
      %p111 = por %p109, %p110
      %p112 = scmp.ne.s32.totalorder %s103, %s104
      %p113 = scmp.eq.s32.totalorder %s30, 0
      %p114 = por %p112, %p113
      %p115 = scmp.ne.s32.totalorder %s103, %s104
      %p116 = scmp.eq.s32.totalorder %s31, 1
      %p117 = por %p115, %p116
      %p119 = scmp.ne.s32.totalorder %s104, %s118
      %p120 = scmp.eq.s32.totalorder %s31, 0
      %p121 = por %p119, %p120
      %s123 = sadd.s32 %s122, 1
      %p126 = scmp.eq.s32.totalorder %s25, 1
      %p127 = scmp.ne.s32.totalorder %s122, %s124
      %p128 = scmp.eq.s32.totalorder %s25, 0
      %p129 = por %p127, %p128
      %p130 = scmp.ne.s32.totalorder %s122, %s124
      %p131 = scmp.eq.s32.totalorder %s30, 1
      %p132 = por %p130, %p131
      %p133 = scmp.ne.s32.totalorder %s124, %s125
      %p134 = scmp.eq.s32.totalorder %s30, 0
      %p135 = por %p133, %p134
      %p136 = scmp.ne.s32.totalorder %s124, %s125
      %p137 = scmp.eq.s32.totalorder %s31, 1
      %p138 = por %p136, %p137
      %p140 = scmp.ne.s32.totalorder %s125, %s139
      %p141 = scmp.eq.s32.totalorder %s31, 0
      %p142 = por %p140, %p141
      %s144 = sadd.s32 %s143, 1
      %p147 = scmp.eq.s32.totalorder %s25, 1
      %p148 = scmp.ne.s32.totalorder %s143, %s145
      %p149 = scmp.eq.s32.totalorder %s25, 0
      %p150 = por %p148, %p149
      %p151 = scmp.ne.s32.totalorder %s143, %s145
      %p152 = scmp.eq.s32.totalorder %s30, 1
      %p153 = por %p151, %p152
      %p154 = scmp.ne.s32.totalorder %s145, %s146
      %p155 = scmp.eq.s32.totalorder %s30, 0
      %p156 = por %p154, %p155
      %p157 = scmp.ne.s32.totalorder %s145, %s146
      %p158 = scmp.eq.s32.totalorder %s31, 1
      %p159 = por %p157, %p158
      %p161 = scmp.ne.s32.totalorder %s146, %s160
      %p162 = scmp.eq.s32.totalorder %s31, 0
      %p163 = por %p161, %p162
      %s165 = sadd.s32 %s164, 1
      %p168 = scmp.eq.s32.totalorder %s25, 1
      %p169 = scmp.ne.s32.totalorder %s164, %s166
      %p170 = scmp.eq.s32.totalorder %s25, 0
      %p171 = por %p169, %p170
      %p172 = scmp.ne.s32.totalorder %s164, %s166
      %p173 = scmp.eq.s32.totalorder %s30, 1
      %p174 = por %p172, %p173
      %p175 = scmp.ne.s32.totalorder %s166, %s167
      %p176 = scmp.eq.s32.totalorder %s30, 0
      %p177 = por %p175, %p176
      %p178 = scmp.ne.s32.totalorder %s166, %s167
      %p179 = scmp.eq.s32.totalorder %s31, 1
      %p180 = por %p178, %p179
      %p182 = scmp.ne.s32.totalorder %s167, %s181
      %p183 = scmp.eq.s32.totalorder %s31, 0
      %p184 = por %p182, %p183
      %s186 = sadd.s32 %s185, 1
      %p189 = scmp.eq.s32.totalorder %s25, 1
      %p190 = scmp.ne.s32.totalorder %s185, %s187
      %p191 = scmp.eq.s32.totalorder %s25, 0
      %p192 = por %p190, %p191
      %p193 = scmp.ne.s32.totalorder %s185, %s187
      %p194 = scmp.eq.s32.totalorder %s30, 1
      %p195 = por %p193, %p194
      %p196 = scmp.ne.s32.totalorder %s187, %s188
      %p197 = scmp.eq.s32.totalorder %s30, 0
      %p198 = por %p196, %p197
      %p199 = scmp.ne.s32.totalorder %s187, %s188
      %p200 = scmp.eq.s32.totalorder %s31, 1
      %p201 = por %p199, %p200
      %p203 = scmp.ne.s32.totalorder %s188, %s202
      %p204 = scmp.eq.s32.totalorder %s31, 0
      %p205 = por %p203, %p204
      %s207 = sadd.s32 %s206, 1
      %p210 = scmp.eq.s32.totalorder %s25, 1
      %p211 = scmp.ne.s32.totalorder %s206, %s208
      %p212 = scmp.eq.s32.totalorder %s25, 0
      %p213 = por %p211, %p212
      %p214 = scmp.ne.s32.totalorder %s206, %s208
      %p215 = scmp.eq.s32.totalorder %s30, 1
      %p216 = por %p214, %p215
      %p217 = scmp.ne.s32.totalorder %s208, %s209
      %p218 = scmp.eq.s32.totalorder %s30, 0
      %p219 = por %p217, %p218
      %p220 = scmp.ne.s32.totalorder %s208, %s209
      %p221 = scmp.eq.s32.totalorder %s31, 1
      %p222 = por %p220, %p221
      %p224 = scmp.ne.s32.totalorder %s209, %s223
      %p225 = scmp.eq.s32.totalorder %s31, 0
      %p226 = por %p224, %p225
      %s228 = sadd.s32 %s227, 1
      %p231 = scmp.eq.s32.totalorder %s25, 1
      %p232 = scmp.ne.s32.totalorder %s227, %s229
      %p233 = scmp.eq.s32.totalorder %s25, 0
      %p234 = por %p232, %p233
      %p235 = scmp.ne.s32.totalorder %s227, %s229
      %p236 = scmp.eq.s32.totalorder %s30, 1
      %p237 = por %p235, %p236
      %p238 = scmp.ne.s32.totalorder %s229, %s230
      %p239 = scmp.eq.s32.totalorder %s30, 0
      %p240 = por %p238, %p239
      %p241 = scmp.ne.s32.totalorder %s229, %s230
      %p242 = scmp.eq.s32.totalorder %s31, 1
      %p243 = por %p241, %p242
      %p245 = scmp.ne.s32.totalorder %s230, %s244
      %p246 = scmp.eq.s32.totalorder %s31, 0
      %p247 = por %p245, %p246
      %s249 = sadd.s32 %s248, 1
      %p252 = scmp.eq.s32.totalorder %s25, 1
      %p253 = scmp.ne.s32.totalorder %s248, %s250
      %p254 = scmp.eq.s32.totalorder %s25, 0
      %p255 = por %p253, %p254
      %p256 = scmp.ne.s32.totalorder %s248, %s250
      %p257 = scmp.eq.s32.totalorder %s30, 1
      %p258 = por %p256, %p257
      %p259 = scmp.ne.s32.totalorder %s250, %s251
      %p260 = scmp.eq.s32.totalorder %s30, 0
      %p261 = por %p259, %p260
      %p262 = scmp.ne.s32.totalorder %s250, %s251
      %p263 = scmp.eq.s32.totalorder %s31, 1
      %p264 = por %p262, %p263
      %p266 = scmp.ne.s32.totalorder %s251, %s265
      %p267 = scmp.eq.s32.totalorder %s31, 0
      %p268 = por %p266, %p267
      %s270 = sadd.s32 %s269, 1
      %p273 = scmp.eq.s32.totalorder %s25, 1
      %p274 = scmp.ne.s32.totalorder %s269, %s271
      %p275 = scmp.eq.s32.totalorder %s25, 0
      %p276 = por %p274, %p275
      %p277 = scmp.ne.s32.totalorder %s269, %s271
      %p278 = scmp.eq.s32.totalorder %s30, 1
      %p279 = por %p277, %p278
      %p280 = scmp.ne.s32.totalorder %s271, %s272
      %p281 = scmp.eq.s32.totalorder %s30, 0
      %p282 = por %p280, %p281
      %p283 = scmp.ne.s32.totalorder %s271, %s272
      %p284 = scmp.eq.s32.totalorder %s31, 1
      %p285 = por %p283, %p284
      %p287 = scmp.ne.s32.totalorder %s272, %s286
      %p288 = scmp.eq.s32.totalorder %s31, 0
      %p289 = por %p287, %p288
      %s291 = sadd.s32 %s290, 1
      %p294 = scmp.eq.s32.totalorder %s25, 1
      %p295 = scmp.ne.s32.totalorder %s290, %s292
      %p296 = scmp.eq.s32.totalorder %s25, 0
      %p297 = por %p295, %p296
      %p298 = scmp.ne.s32.totalorder %s290, %s292
      %p299 = scmp.eq.s32.totalorder %s30, 1
      %p300 = por %p298, %p299
      %p301 = scmp.ne.s32.totalorder %s292, %s293
      %p302 = scmp.eq.s32.totalorder %s30, 0
      %p303 = por %p301, %p302
      %p304 = scmp.ne.s32.totalorder %s292, %s293
      %p305 = scmp.eq.s32.totalorder %s31, 1
      %p306 = por %p304, %p305
      %p308 = scmp.ne.s32.totalorder %s293, %s307
      %p309 = scmp.eq.s32.totalorder %s31, 0
      %p310 = por %p308, %p309
      %s312 = sadd.s32 %s311, 1
      %p315 = scmp.eq.s32.totalorder %s25, 1
      %p316 = scmp.ne.s32.totalorder %s311, %s313
      %p317 = scmp.eq.s32.totalorder %s25, 0
      %p318 = por %p316, %p317
      %p319 = scmp.ne.s32.totalorder %s311, %s313
      %p320 = scmp.eq.s32.totalorder %s30, 1
      %p321 = por %p319, %p320
      %p322 = scmp.ne.s32.totalorder %s313, %s314
      %p323 = scmp.eq.s32.totalorder %s30, 0
      %p324 = por %p322, %p323
      %p325 = scmp.ne.s32.totalorder %s313, %s314
      %p326 = scmp.eq.s32.totalorder %s31, 1
      %p327 = por %p325, %p326
      %p329 = scmp.ne.s32.totalorder %s314, %s328
      %p330 = scmp.eq.s32.totalorder %s31, 0
      %p331 = por %p329, %p330
      %s333 = sadd.s32 %s332, 1
      %p336 = scmp.eq.s32.totalorder %s25, 1
      %p337 = scmp.ne.s32.totalorder %s332, %s334
      %p338 = scmp.eq.s32.totalorder %s25, 0
      %p339 = por %p337, %p338
      %p340 = scmp.ne.s32.totalorder %s332, %s334
      %p341 = scmp.eq.s32.totalorder %s30, 1
      %p342 = por %p340, %p341
      %p343 = scmp.ne.s32.totalorder %s334, %s335
      %p344 = scmp.eq.s32.totalorder %s30, 0
      %p345 = por %p343, %p344
      %p346 = scmp.ne.s32.totalorder %s334, %s335
      %p347 = scmp.eq.s32.totalorder %s31, 1
      %p348 = por %p346, %p347
      %p350 = scmp.ne.s32.totalorder %s335, %s349
      %p351 = scmp.eq.s32.totalorder %s31, 0
      %p352 = por %p350, %p351
      %s354 = sadd.s32 %s353, 1
      %p357 = scmp.eq.s32.totalorder %s25, 1
      %p358 = scmp.ne.s32.totalorder %s353, %s355
      %p359 = scmp.eq.s32.totalorder %s25, 0
      %p360 = por %p358, %p359
      %p361 = scmp.ne.s32.totalorder %s353, %s355
      %p362 = scmp.eq.s32.totalorder %s30, 1
      %p363 = por %p361, %p362
      %p364 = scmp.ne.s32.totalorder %s355, %s356
      %p365 = scmp.eq.s32.totalorder %s30, 0
      %p366 = por %p364, %p365
      %p367 = scmp.ne.s32.totalorder %s355, %s356
      %p368 = scmp.eq.s32.totalorder %s31, 1
      %p369 = por %p367, %p368
      %p371 = scmp.ne.s32.totalorder %s356, %s370
      %p372 = scmp.eq.s32.totalorder %s31, 0
      %p373 = por %p371, %p372
      %s374 = ssub.s32 %s25, %s32
      %p375 = scmp.eq.s32.totalorder %s374, 0
      %s377 = sadd.s32 %s376, 1
      %s378 = scalar_select %p375, %s376, %s377
      %p381 = pneg %p375
      %p382 = scmp.eq.s32.totalorder %s25, 1
      %p383 = por %p381, %p382
      %p384 = scmp.ne.s32.totalorder %s376, %s379
      %p385 = scmp.eq.s32.totalorder %s25, 0
      %p386 = por %p384, %p385
      %p387 = scmp.ne.s32.totalorder %s376, %s379
      %p388 = scmp.eq.s32.totalorder %s30, 1
      %p389 = por %p387, %p388
      %p390 = scmp.ne.s32.totalorder %s379, %s380
      %p391 = scmp.eq.s32.totalorder %s30, 0
      %p392 = por %p390, %p391
      %p393 = scmp.ne.s32.totalorder %s379, %s380
      %p394 = scmp.eq.s32.totalorder %s31, 1
      %p395 = por %p393, %p394
      %p397 = scmp.ne.s32.totalorder %s380, %s396
      %p398 = scmp.eq.s32.totalorder %s31, 0
      %p399 = por %p397, %p398
      %p400 = scmp.le.s32.totalorder 1, %s25
      %p401 = scmp.lt.s32.totalorder %s25, 3
      %p402 = pnand %p400, %p401
      %p403 = pneg %p402
      // Predicated region
      $region9: #{tpu_custom_call.1} parent=5 // pred_check
        _
      $region10: #{tpu_custom_call.1} parent=5 // pred_check_branch
        %405 = sbr.rel (%p402) target = $region12
      $region11: #{tpu_custom_call.1} parent=5 // pred_region
        %s406 = ssub.s32 %s25, 1
        // Predicated region
        $region13: #{tpu_custom_call.1} parent=11 // pred_check
          %p407 = pneg %p72
        $region14: #{tpu_custom_call.1} parent=11 // pred_check_branch
          %409 = sbr.rel (%p407) target = $region16
        $region15: #{tpu_custom_call.1} parent=11 // pred_region
          _
        $region16: #{tpu_custom_call.1} parent=11 // pred_fallthru
          _
        // Predicated region
        $region17: #{tpu_custom_call.1} parent=11 // pred_check
          %p410 = pneg %p93
        $region18: #{tpu_custom_call.1} parent=11 // pred_check_branch
          %412 = sbr.rel (%p410) target = $region20
        $region19: #{tpu_custom_call.1} parent=11 // pred_region
          _
        $region20: #{tpu_custom_call.1} parent=11 // pred_fallthru
          _
        // Predicated region
        $region21: #{tpu_custom_call.1} parent=11 // pred_check
          %p413 = pneg %p114
        $region22: #{tpu_custom_call.1} parent=11 // pred_check_branch
          %415 = sbr.rel (%p413) target = $region24
        $region23: #{tpu_custom_call.1} parent=11 // pred_region
          _
        $region24: #{tpu_custom_call.1} parent=11 // pred_fallthru
          _
        // Predicated region
        $region25: #{tpu_custom_call.1} parent=11 // pred_check
          %p416 = pneg %p135
        $region26: #{tpu_custom_call.1} parent=11 // pred_check_branch
          %418 = sbr.rel (%p416) target = $region28
        $region27: #{tpu_custom_call.1} parent=11 // pred_region
          _
        $region28: #{tpu_custom_call.1} parent=11 // pred_fallthru
          _
        // Predicated region
        $region29: #{tpu_custom_call.1} parent=11 // pred_check
          %p419 = pneg %p156
        $region30: #{tpu_custom_call.1} parent=11 // pred_check_branch
          %421 = sbr.rel (%p419) target = $region32
        $region31: #{tpu_custom_call.1} parent=11 // pred_region
          _
        $region32: #{tpu_custom_call.1} parent=11 // pred_fallthru
          _
        // Predicated region
        $region33: #{tpu_custom_call.1} parent=11 // pred_check
          %p422 = pneg %p177
        $region34: #{tpu_custom_call.1} parent=11 // pred_check_branch
          %424 = sbr.rel (%p422) target = $region36
        $region35: #{tpu_custom_call.1} parent=11 // pred_region
          _
        $region36: #{tpu_custom_call.1} parent=11 // pred_fallthru
          _
        // Predicated region
        $region37: #{tpu_custom_call.1} parent=11 // pred_check
          %p425 = pneg %p198
        $region38: #{tpu_custom_call.1} parent=11 // pred_check_branch
          %427 = sbr.rel (%p425) target = $region40
        $region39: #{tpu_custom_call.1} parent=11 // pred_region
          _
        $region40: #{tpu_custom_call.1} parent=11 // pred_fallthru
          _
        // Predicated region
        $region41: #{tpu_custom_call.1} parent=11 // pred_check
          %p428 = pneg %p219
        $region42: #{tpu_custom_call.1} parent=11 // pred_check_branch
          %430 = sbr.rel (%p428) target = $region44
        $region43: #{tpu_custom_call.1} parent=11 // pred_region
          _
        $region44: #{tpu_custom_call.1} parent=11 // pred_fallthru
          _
        // Predicated region
        $region45: #{tpu_custom_call.1} parent=11 // pred_check
          %p431 = pneg %p240
        $region46: #{tpu_custom_call.1} parent=11 // pred_check_branch
          %433 = sbr.rel (%p431) target = $region48
        $region47: #{tpu_custom_call.1} parent=11 // pred_region
          _
        $region48: #{tpu_custom_call.1} parent=11 // pred_fallthru
          _
        // Predicated region
        $region49: #{tpu_custom_call.1} parent=11 // pred_check
          %p434 = pneg %p261
        $region50: #{tpu_custom_call.1} parent=11 // pred_check_branch
          %436 = sbr.rel (%p434) target = $region52
        $region51: #{tpu_custom_call.1} parent=11 // pred_region
          _
        $region52: #{tpu_custom_call.1} parent=11 // pred_fallthru
          _
        // Predicated region
        $region53: #{tpu_custom_call.1} parent=11 // pred_check
          %p437 = pneg %p282
        $region54: #{tpu_custom_call.1} parent=11 // pred_check_branch
          %439 = sbr.rel (%p437) target = $region56
        $region55: #{tpu_custom_call.1} parent=11 // pred_region
          _
        $region56: #{tpu_custom_call.1} parent=11 // pred_fallthru
          _
        // Predicated region
        $region57: #{tpu_custom_call.1} parent=11 // pred_check
          %p440 = pneg %p303
        $region58: #{tpu_custom_call.1} parent=11 // pred_check_branch
          %442 = sbr.rel (%p440) target = $region60
        $region59: #{tpu_custom_call.1} parent=11 // pred_region
          _
        $region60: #{tpu_custom_call.1} parent=11 // pred_fallthru
          _
        // Predicated region
        $region61: #{tpu_custom_call.1} parent=11 // pred_check
          %p443 = pneg %p324
        $region62: #{tpu_custom_call.1} parent=11 // pred_check_branch
          %445 = sbr.rel (%p443) target = $region64
        $region63: #{tpu_custom_call.1} parent=11 // pred_region
          _
        $region64: #{tpu_custom_call.1} parent=11 // pred_fallthru
          _
        // Predicated region
        $region65: #{tpu_custom_call.1} parent=11 // pred_check
          %p446 = pneg %p345
        $region66: #{tpu_custom_call.1} parent=11 // pred_check_branch
          %448 = sbr.rel (%p446) target = $region68
        $region67: #{tpu_custom_call.1} parent=11 // pred_region
          _
        $region68: #{tpu_custom_call.1} parent=11 // pred_fallthru
          _
        // Predicated region
        $region69: #{tpu_custom_call.1} parent=11 // pred_check
          %p449 = pneg %p366
        $region70: #{tpu_custom_call.1} parent=11 // pred_check_branch
          %451 = sbr.rel (%p449) target = $region72
        $region71: #{tpu_custom_call.1} parent=11 // pred_region
          _
        $region72: #{tpu_custom_call.1} parent=11 // pred_fallthru
          _
      $region12: #{tpu_custom_call.1} parent=5 // pred_fallthru
        _
      %p452 = scmp.lt.s32.totalorder %s25, 2
      // Predicated region
      $region73: #{tpu_custom_call.1} parent=5 // pred_check
        %p453 = pneg %p452
      $region74: #{tpu_custom_call.1} parent=5 // pred_check_branch
        %455 = sbr.rel (%p453) target = $region76
      $region75: #{tpu_custom_call.1} parent=5 // pred_region
        // Predicated region
        $region77: #{tpu_custom_call.1} parent=75 // pred_check
          %p456 = pneg %p45
        $region78: #{tpu_custom_call.1} parent=75 // pred_check_branch
          %458 = sbr.rel (%p456) target = $region80
        $region79: #{tpu_custom_call.1} parent=75 // pred_region
          %p459 = scmp.lt.s32.totalorder %s25, 1
          %s460 = scalar_select %p459, %s25, 1
          %s461 = smul.addr %s460, 8
          %s462 = scalar_lea.vmem %s0, %s461
        $region80: #{tpu_custom_call.1} parent=75 // pred_fallthru
          _
      $region76: #{tpu_custom_call.1} parent=5 // pred_fallthru
        _
      %p463 = scmp.le.s32.totalorder 1, %s25
      %p464 = scmp.lt.s32.totalorder %s25, 3
      %p465 = pnand %p463, %p464
      %p466 = pneg %p465
      // Predicated region
      $region81: #{tpu_custom_call.1} parent=5 // pred_check
        _
      $region82: #{tpu_custom_call.1} parent=5 // pred_check_branch
        %468 = sbr.rel (%p465) target = $region84
      $region83: #{tpu_custom_call.1} parent=5 // pred_region
        %s469 = ssub.s32 %s25, 1
        %p470 = scmp.lt.s32.totalorder %s30, 1
        %s471 = scalar_select %p470, %s30, 1
        %s472 = smul.addr %s471, 8
        %s473 = scalar_lea.vmem %s0, %s472
        %p474 = pneg %p51
        %p475 = pneg %p48
        %p476 = pneg %p72
        %p477 = pneg %p69
        %p478 = pneg %p93
        %p479 = pneg %p90
        %p480 = pneg %p114
        %p481 = pneg %p111
        %p482 = pneg %p135
        %p483 = pneg %p132
        %p484 = pneg %p156
        %p485 = pneg %p153
        %p486 = pneg %p177
        %p487 = pneg %p174
        %p488 = pneg %p198
        %p489 = pneg %p195
        %p490 = pneg %p219
        %p491 = pneg %p216
        %p492 = pneg %p240
        %p493 = pneg %p237
        %p494 = pneg %p261
        %p495 = pneg %p258
        %p496 = pneg %p282
        %p497 = pneg %p279
        %p498 = pneg %p303
        %p499 = pneg %p300
        %p500 = pneg %p324
        %p501 = pneg %p321
        %p502 = pneg %p345
        %p503 = pneg %p342
        %p504 = pneg %p366
        %p505 = pneg %p363
        %p506 = pneg %p392
        %p507 = pneg %p389
        %s508 = sand.u32 %s379, 1
        %s509 = scalar_lea.sflag [#allocation3], %s508
        %s510 = sand.u32 %s379, 1
        %s511 = scalar_lea.vmem [#allocation2], %s510
        %p512 = scmp.lt.s32.totalorder %s30, 1
        %s513 = scalar_select %p512, %s30, 1
        %s514 = smul.addr %s513, 8
        %s515 = scalar_lea.vmem %s0, %s514
        %v517 = vld [vmem:[%s515] sm:$0xff]
        %v518 = vlaneseq
        %v519 = vand.u32 %v518, 127
        %520 = vset.pattern.permute.xlu0 0
        %521 = vperm.xlu0 %520, %v517
        %v522 = vpop.permute.xlu0 %521
        %vm523 = vcmp.eq.s32.totalorder %v519, %v522
        %v524 = vsel %vm523, 1, 0
        %v525 = vcvt.s32.f32 %v524
        %v526 = vld [vmem:[%s1] sm:$0xff]
        %v527 = vld [vmem:[%s1 + $0x8] sm:$0xff]
        %v528 = vld [vmem:[%s1 + $0x10] sm:$0xff]
        %v529 = vld [vmem:[%s1 + $0x18] sm:$0xff]
        %v530 = vld [vmem:[%s1 + $0x20] sm:$0xff]
        %v531 = vld [vmem:[%s1 + $0x28] sm:$0xff]
        %v532 = vld [vmem:[%s1 + $0x30] sm:$0xff]
        %v533 = vld [vmem:[%s1 + $0x38] sm:$0xff]
        %v534 = vld [vmem:[%s1 + $0x40] sm:$0xff]
        %v535 = vld [vmem:[%s1 + $0x48] sm:$0xff]
        %v536 = vld [vmem:[%s1 + $0x50] sm:$0xff]
        %v537 = vld [vmem:[%s1 + $0x58] sm:$0xff]
        %v538 = vld [vmem:[%s1 + $0x60] sm:$0xff]
        %v539 = vld [vmem:[%s1 + $0x68] sm:$0xff]
        %v540 = vld [vmem:[%s1 + $0x70] sm:$0xff]
        %v541 = vld [vmem:[%s1 + $0x78] sm:$0xff]
        %542 = vmatprep.subr.mxu0 0.0
        %543 = vmatpush1.msra.mxu0 %v526
        %544 = vmatprep.subr.mxu0 0.0
        %545 = vmatpush1.msra.mxu0 %v527
        %546 = vmatprep.subr.mxu0 0.0
        %547 = vmatpush1.msra.mxu0 %v528
        %548 = vmatprep.subr.mxu0 0.0
        %549 = vmatpush1.msra.mxu0 %v529
        %550 = vmatprep.subr.mxu0 0.0
        %551 = vmatpush1.msra.mxu0 %v530
        %552 = vmatprep.subr.mxu0 0.0
        %553 = vmatpush1.msra.mxu0 %v531
        %554 = vmatprep.subr.mxu0 0.0
        %555 = vmatpush1.msra.mxu0 %v532
        %556 = vmatprep.subr.mxu0 0.0
        %557 = vmatpush1.msra.mxu0 %v533
        %558 = vmatprep.subr.mxu0 0.0
        %559 = vmatpush1.msra.mxu0 %v534
        %560 = vmatprep.subr.mxu0 0.0
        %561 = vmatpush1.msra.mxu0 %v535
        %562 = vmatprep.subr.mxu0 0.0
        %563 = vmatpush1.msra.mxu0 %v536
        %564 = vmatprep.subr.mxu0 0.0
        %565 = vmatpush1.msra.mxu0 %v537
        %566 = vmatprep.subr.mxu0 0.0
        %567 = vmatpush1.msra.mxu0 %v538
        %568 = vmatprep.subr.mxu0 0.0
        %569 = vmatpush1.msra.mxu0 %v539
        %570 = vmatprep.subr.mxu0 0.0
        %571 = vmatpush1.msra.mxu0 %v540
        %572 = vmatprep.subr.mxu0 0.0
        %573 = vmatpush1.msra.mxu0 %v541
        %574 = vmatprep.subr.mxu0 0.0
        %575 = vmatpush1.msra.mxu0 0.0
        %576 = vmatprep.subr.mxu0 0.0
        %577 = vmatpush1.msra.mxu0 0.0
        %578 = vmatprep.subr.mxu0 0.0
        %579 = vmatpush1.msra.mxu0 0.0
        %580 = vmatprep.subr.mxu0 0.0
        %581 = vmatpush1.msra.mxu0 0.0
        %582 = vmatprep.subr.mxu0 0.0
        %583 = vmatpush1.msra.mxu0 0.0
        %584 = vmatprep.subr.mxu0 0.0
        %585 = vmatpush1.msra.mxu0 0.0
        %586 = vmatprep.subr.mxu0 0.0
        %587 = vmatpush1.msra.mxu0 0.0
        %588 = vmatprep.subr.mxu0 0.0
        %589 = vmatpush1.msra.mxu0 0.0
        %590 = vmatprep.subr.mxu0 0.0
        %591 = vmatpush1.msra.mxu0 0.0
        %592 = vmatprep.subr.mxu0 0.0
        %593 = vmatpush1.msra.mxu0 0.0
        %594 = vmatprep.subr.mxu0 0.0
        %595 = vmatpush1.msra.mxu0 0.0
        %596 = vmatprep.subr.mxu0 0.0
        %597 = vmatpush1.msra.mxu0 0.0
        %598 = vmatprep.subr.mxu0 0.0
        %599 = vmatpush1.msra.mxu0 0.0
        %600 = vmatprep.subr.mxu0 0.0
        %601 = vmatpush1.msra.mxu0 0.0
        %602 = vmatprep.subr.mxu0 0.0
        %603 = vmatpush1.msra.mxu0 0.0
        %604 = vmatprep.subr.mxu0 0.0
        %605 = vmatpush1.msra.mxu0 0.0
        %606 = vmatprep.mubr.f32.mxu0 0.0
        %607 = vmatmul.mubr.f32.gmra.mrb[0].mxu0 %v525
        %v608 = vpop.f32.mrb[0].mxu0
        %v609 = vadd.f32 0.0, %v608
        %v610 = vpop.f32.mrb[0].mxu0
        %611 = vdwg.mxu0
        %v612 = vpack.c.bf16 %v609, %v609
        %v613 = vld [vmem:[%s2] sm:$0xf]
        %v614 = vld [vmem:[%s2 + $0x4] sm:$0xf]
        %v615 = vld [vmem:[%s2 + $0x8] sm:$0xf]
        %v616 = vld [vmem:[%s2 + $0xc] sm:$0xf]
        %v617 = vld [vmem:[%s2 + $0x10] sm:$0xf]
        %v618 = vld [vmem:[%s2 + $0x14] sm:$0xf]
        %v619 = vld [vmem:[%s2 + $0x18] sm:$0xf]
        %v620 = vld [vmem:[%s2 + $0x1c] sm:$0xf]
        %v621 = vld [vmem:[%s2 + $0x20] sm:$0xf]
        %v622 = vld [vmem:[%s2 + $0x24] sm:$0xf]
        %v623 = vld [vmem:[%s2 + $0x28] sm:$0xf]
        %v624 = vld [vmem:[%s2 + $0x2c] sm:$0xf]
        %v625 = vld [vmem:[%s2 + $0x30] sm:$0xf]
        %v626 = vld [vmem:[%s2 + $0x34] sm:$0xf]
        %v627 = vld [vmem:[%s2 + $0x38] sm:$0xf]
        %v628 = vld [vmem:[%s2 + $0x3c] sm:$0xf]
        %v629 = vld [vmem:[%s2 + $0x40] sm:$0xf]
        %v630 = vld [vmem:[%s2 + $0x44] sm:$0xf]
        %v631 = vld [vmem:[%s2 + $0x48] sm:$0xf]
        %v632 = vld [vmem:[%s2 + $0x4c] sm:$0xf]
        %v633 = vld [vmem:[%s2 + $0x50] sm:$0xf]
        %v634 = vld [vmem:[%s2 + $0x54] sm:$0xf]
        %v635 = vld [vmem:[%s2 + $0x58] sm:$0xf]
        %v636 = vld [vmem:[%s2 + $0x5c] sm:$0xf]
        %v637 = vld [vmem:[%s2 + $0x60] sm:$0xf]
        %v638 = vld [vmem:[%s2 + $0x64] sm:$0xf]
        %v639 = vld [vmem:[%s2 + $0x68] sm:$0xf]
        %v640 = vld [vmem:[%s2 + $0x6c] sm:$0xf]
        %v641 = vld [vmem:[%s2 + $0x70] sm:$0xf]
        %v642 = vld [vmem:[%s2 + $0x74] sm:$0xf]
        %v643 = vld [vmem:[%s2 + $0x78] sm:$0xf]
        %v644 = vld [vmem:[%s2 + $0x7c] sm:$0xf]
        %v645 = vld [vmem:[%s2 + $0x80] sm:$0xf]
        %v646 = vld [vmem:[%s2 + $0x84] sm:$0xf]
        %v647 = vld [vmem:[%s2 + $0x88] sm:$0xf]
        %v648 = vld [vmem:[%s2 + $0x8c] sm:$0xf]
        %v649 = vld [vmem:[%s2 + $0x90] sm:$0xf]
        %v650 = vld [vmem:[%s2 + $0x94] sm:$0xf]
        %v651 = vld [vmem:[%s2 + $0x98] sm:$0xf]
        %v652 = vld [vmem:[%s2 + $0x9c] sm:$0xf]
        %v653 = vld [vmem:[%s2 + $0xa0] sm:$0xf]
        %v654 = vld [vmem:[%s2 + $0xa4] sm:$0xf]
        %v655 = vld [vmem:[%s2 + $0xa8] sm:$0xf]
        %v656 = vld [vmem:[%s2 + $0xac] sm:$0xf]
        %v657 = vld [vmem:[%s2 + $0xb0] sm:$0xf]
        %v658 = vld [vmem:[%s2 + $0xb4] sm:$0xf]
        %v659 = vld [vmem:[%s2 + $0xb8] sm:$0xf]
        %v660 = vld [vmem:[%s2 + $0xbc] sm:$0xf]
        %v661 = vld [vmem:[%s2 + $0xc0] sm:$0xf]
        %v662 = vld [vmem:[%s2 + $0xc4] sm:$0xf]
        %v663 = vld [vmem:[%s2 + $0xc8] sm:$0xf]
        %v664 = vld [vmem:[%s2 + $0xcc] sm:$0xf]
        %v665 = vld [vmem:[%s2 + $0xd0] sm:$0xf]
        %v666 = vld [vmem:[%s2 + $0xd4] sm:$0xf]
        %v667 = vld [vmem:[%s2 + $0xd8] sm:$0xf]
        %v668 = vld [vmem:[%s2 + $0xdc] sm:$0xf]
        %v669 = vld [vmem:[%s2 + $0xe0] sm:$0xf]
        %v670 = vld [vmem:[%s2 + $0xe4] sm:$0xf]
        %v671 = vld [vmem:[%s2 + $0xe8] sm:$0xf]
        %v672 = vld [vmem:[%s2 + $0xec] sm:$0xf]
        %v673 = vld [vmem:[%s2 + $0xf0] sm:$0xf]
        %v674 = vld [vmem:[%s2 + $0xf4] sm:$0xf]
        %v675 = vld [vmem:[%s2 + $0xf8] sm:$0xf]
        %v676 = vld [vmem:[%s2 + $0xfc] sm:$0xf]
        %v677 = vld [vmem:[%s5] sm:$0x1]
        %v678 = vld [vmem:[%s5 + $0x1] sm:$0x1]
        %v679 = vld [vmem:[%s5 + $0x2] sm:$0x1]
        %v680 = vld [vmem:[%s5 + $0x3] sm:$0x1]
        %v681 = vld [vmem:[%s5 + $0x4] sm:$0x1]
        %v682 = vld [vmem:[%s5 + $0x5] sm:$0x1]
        %v683 = vld [vmem:[%s5 + $0x6] sm:$0x1]
        %v684 = vld [vmem:[%s5 + $0x7] sm:$0x1]
        %v693 = vlaneseq
        %v694 = vshrl.u32 %v693, 7
        %v695 = vsub.s32 0, %v694
        %v696 = vrot.slane %v677, %v695
        %v697 = vlaneseq
        %v698 = vshrl.u32 %v697, 7
        %v699 = vsub.s32 0, %v698
        %v700 = vrot.slane %v678, %v699
        %v701 = vlaneseq
        %v702 = vshrl.u32 %v701, 7
        %v703 = vsub.s32 0, %v702
        %v704 = vrot.slane %v679, %v703
        %v705 = vlaneseq
        %v706 = vshrl.u32 %v705, 7
        %v707 = vsub.s32 0, %v706
        %v708 = vrot.slane %v680, %v707
        %v709 = vlaneseq
        %v710 = vshrl.u32 %v709, 7
        %v711 = vsub.s32 0, %v710
        %v712 = vrot.slane %v681, %v711
        %v713 = vlaneseq
        %v714 = vshrl.u32 %v713, 7
        %v715 = vsub.s32 0, %v714
        %v716 = vrot.slane %v682, %v715
        %v717 = vlaneseq
        %v718 = vshrl.u32 %v717, 7
        %v719 = vsub.s32 0, %v718
        %v720 = vrot.slane %v683, %v719
        %v721 = vlaneseq
        %v722 = vshrl.u32 %v721, 7
        %v723 = vsub.s32 0, %v722
        %v724 = vrot.slane %v684, %v723
        %v741 = vunpack.c.l.b16 %v613
        %v742 = vunpack.c.l.b16 %v614
        %v743 = vunpack.c.l.b16 %v615
        %v744 = vunpack.c.l.b16 %v616
        %v745 = vunpack.c.l.b16 %v617
        %v746 = vunpack.c.l.b16 %v618
        %v747 = vunpack.c.l.b16 %v619
        %v748 = vunpack.c.l.b16 %v620
        %v749 = vpack.c.b16 %v742, %v741
        %v750 = vpack.c.b16 %v744, %v743
        %v751 = vpack.c.b16 %v746, %v745
        %v752 = vpack.c.b16 %v748, %v747
        %vm757 = vcmask 523264
        %v759 = vsel %vm757, %v612, 0
        %761 = vmatprep.subr.bf16.mxu0 0
        %762 = vmatpush1.bf16.msra.mxu0 %v749
        %763 = vmatprep.subr.bf16.mxu0 0
        %764 = vmatpush1.bf16.msra.mxu0 %v750
        %765 = vmatprep.subr.bf16.mxu0 0
        %766 = vmatpush1.bf16.msra.mxu0 %v751
        %767 = vmatprep.subr.bf16.mxu0 0
        %768 = vmatpush1.bf16.msra.mxu0 %v752
        %769 = vmatprep.subr.bf16.mxu0 0
        %770 = vmatpush1.bf16.msra.mxu0 0
        %771 = vmatprep.subr.bf16.mxu0 0
        %772 = vmatpush1.bf16.msra.mxu0 0
        %773 = vmatprep.subr.bf16.mxu0 0
        %774 = vmatpush1.bf16.msra.mxu0 0
        %775 = vmatprep.subr.bf16.mxu0 0
        %776 = vmatpush1.bf16.msra.mxu0 0
        %777 = vmatprep.subr.bf16.mxu0 0
        %778 = vmatpush1.bf16.msra.mxu0 0
        %779 = vmatprep.subr.bf16.mxu0 0
        %780 = vmatpush1.bf16.msra.mxu0 0
        %781 = vmatprep.subr.bf16.mxu0 0
        %782 = vmatpush1.bf16.msra.mxu0 0
        %783 = vmatprep.subr.bf16.mxu0 0
        %784 = vmatpush1.bf16.msra.mxu0 0
        %785 = vmatprep.subr.bf16.mxu0 0
        %786 = vmatpush1.bf16.msra.mxu0 0
        %787 = vmatprep.subr.bf16.mxu0 0
        %788 = vmatpush1.bf16.msra.mxu0 0
        %789 = vmatprep.subr.bf16.mxu0 0
        %790 = vmatpush1.bf16.msra.mxu0 0
        %791 = vmatprep.subr.bf16.mxu0 0
        %792 = vmatpush1.bf16.msra.mxu0 0
        %793 = vmatprep.mubr.bf16.mxu0 0
        %794 = vmatmul.mubr.bf16.gmra.mrb[0].mxu0 %v759
        %v795 = vpop.f32.mrb[0].mxu0
        %v796 = vadd.f32 %v696, %v795
        %v797 = vpop.f32.mrb[0].mxu0
        %v798 = vpop.f32.mrb[0].mxu0
        %v799 = vpop.f32.mrb[0].mxu0
        %800 = vdwg.mxu0
        %v809 = vunpack.c.l.b16 %v621
        %v810 = vunpack.c.l.b16 %v622
        %v811 = vunpack.c.l.b16 %v623
        %v812 = vunpack.c.l.b16 %v624
        %v813 = vunpack.c.l.b16 %v625
        %v814 = vunpack.c.l.b16 %v626
        %v815 = vunpack.c.l.b16 %v627
        %v816 = vunpack.c.l.b16 %v628
        %v817 = vpack.c.b16 %v810, %v809
        %v818 = vpack.c.b16 %v812, %v811
        %v819 = vpack.c.b16 %v814, %v813
        %v820 = vpack.c.b16 %v816, %v815
        %825 = vmatprep.subr.bf16.mxu0 0
        %826 = vmatpush1.bf16.msra.mxu0 %v817
        %827 = vmatprep.subr.bf16.mxu0 0
        %828 = vmatpush1.bf16.msra.mxu0 %v818
        %829 = vmatprep.subr.bf16.mxu0 0
        %830 = vmatpush1.bf16.msra.mxu0 %v819
        %831 = vmatprep.subr.bf16.mxu0 0
        %832 = vmatpush1.bf16.msra.mxu0 %v820
        %833 = vmatprep.subr.bf16.mxu0 0
        %834 = vmatpush1.bf16.msra.mxu0 0
        %835 = vmatprep.subr.bf16.mxu0 0
        %836 = vmatpush1.bf16.msra.mxu0 0
        %837 = vmatprep.subr.bf16.mxu0 0
        %838 = vmatpush1.bf16.msra.mxu0 0
        %839 = vmatprep.subr.bf16.mxu0 0
        %840 = vmatpush1.bf16.msra.mxu0 0
        %841 = vmatprep.subr.bf16.mxu0 0
        %842 = vmatpush1.bf16.msra.mxu0 0
        %843 = vmatprep.subr.bf16.mxu0 0
        %844 = vmatpush1.bf16.msra.mxu0 0
        %845 = vmatprep.subr.bf16.mxu0 0
        %846 = vmatpush1.bf16.msra.mxu0 0
        %847 = vmatprep.subr.bf16.mxu0 0
        %848 = vmatpush1.bf16.msra.mxu0 0
        %849 = vmatprep.subr.bf16.mxu0 0
        %850 = vmatpush1.bf16.msra.mxu0 0
        %851 = vmatprep.subr.bf16.mxu0 0
        %852 = vmatpush1.bf16.msra.mxu0 0
        %853 = vmatprep.subr.bf16.mxu0 0
        %854 = vmatpush1.bf16.msra.mxu0 0
        %855 = vmatprep.subr.bf16.mxu0 0
        %856 = vmatpush1.bf16.msra.mxu0 0
        %857 = vmatprep.mubr.bf16.mxu0 0
        %858 = vmatmul.mubr.bf16.gmra.mrb[0].mxu0 %v759
        %v859 = vpop.f32.mrb[0].mxu0
        %v860 = vadd.f32 %v700, %v859
        %v861 = vpop.f32.mrb[0].mxu0
        %v862 = vpop.f32.mrb[0].mxu0
        %v863 = vpop.f32.mrb[0].mxu0
        %864 = vdwg.mxu0
        %v873 = vunpack.c.l.b16 %v629
        %v874 = vunpack.c.l.b16 %v630
        %v875 = vunpack.c.l.b16 %v631
        %v876 = vunpack.c.l.b16 %v632
        %v877 = vunpack.c.l.b16 %v633
        %v878 = vunpack.c.l.b16 %v634
        %v879 = vunpack.c.l.b16 %v635
        %v880 = vunpack.c.l.b16 %v636
        %v881 = vpack.c.b16 %v874, %v873
        %v882 = vpack.c.b16 %v876, %v875
        %v883 = vpack.c.b16 %v878, %v877
        %v884 = vpack.c.b16 %v880, %v879
        %889 = vmatprep.subr.bf16.mxu0 0
        %890 = vmatpush1.bf16.msra.mxu0 %v881
        %891 = vmatprep.subr.bf16.mxu0 0
        %892 = vmatpush1.bf16.msra.mxu0 %v882
        %893 = vmatprep.subr.bf16.mxu0 0
        %894 = vmatpush1.bf16.msra.mxu0 %v883
        %895 = vmatprep.subr.bf16.mxu0 0
        %896 = vmatpush1.bf16.msra.mxu0 %v884
        %897 = vmatprep.subr.bf16.mxu0 0
        %898 = vmatpush1.bf16.msra.mxu0 0
        %899 = vmatprep.subr.bf16.mxu0 0
        %900 = vmatpush1.bf16.msra.mxu0 0
        %901 = vmatprep.subr.bf16.mxu0 0
        %902 = vmatpush1.bf16.msra.mxu0 0
        %903 = vmatprep.subr.bf16.mxu0 0
        %904 = vmatpush1.bf16.msra.mxu0 0
        %905 = vmatprep.subr.bf16.mxu0 0
        %906 = vmatpush1.bf16.msra.mxu0 0
        %907 = vmatprep.subr.bf16.mxu0 0
        %908 = vmatpush1.bf16.msra.mxu0 0
        %909 = vmatprep.subr.bf16.mxu0 0
        %910 = vmatpush1.bf16.msra.mxu0 0
        %911 = vmatprep.subr.bf16.mxu0 0
        %912 = vmatpush1.bf16.msra.mxu0 0
        %913 = vmatprep.subr.bf16.mxu0 0
        %914 = vmatpush1.bf16.msra.mxu0 0
        %915 = vmatprep.subr.bf16.mxu0 0
        %916 = vmatpush1.bf16.msra.mxu0 0
        %917 = vmatprep.subr.bf16.mxu0 0
        %918 = vmatpush1.bf16.msra.mxu0 0
        %919 = vmatprep.subr.bf16.mxu0 0
        %920 = vmatpush1.bf16.msra.mxu0 0
        %921 = vmatprep.mubr.bf16.mxu0 0
        %922 = vmatmul.mubr.bf16.gmra.mrb[0].mxu0 %v759
        %v923 = vpop.f32.mrb[0].mxu0
        %v924 = vadd.f32 %v704, %v923
        %v925 = vpop.f32.mrb[0].mxu0
        %v926 = vpop.f32.mrb[0].mxu0
        %v927 = vpop.f32.mrb[0].mxu0
        %928 = vdwg.mxu0
        %v937 = vunpack.c.l.b16 %v637
        %v938 = vunpack.c.l.b16 %v638
        %v939 = vunpack.c.l.b16 %v639
        %v940 = vunpack.c.l.b16 %v640
        %v941 = vunpack.c.l.b16 %v641
        %v942 = vunpack.c.l.b16 %v642
        %v943 = vunpack.c.l.b16 %v643
        %v944 = vunpack.c.l.b16 %v644
        %v945 = vpack.c.b16 %v938, %v937
        %v946 = vpack.c.b16 %v940, %v939
        %v947 = vpack.c.b16 %v942, %v941
        %v948 = vpack.c.b16 %v944, %v943
        %953 = vmatprep.subr.bf16.mxu0 0
        %954 = vmatpush1.bf16.msra.mxu0 %v945
        %955 = vmatprep.subr.bf16.mxu0 0
        %956 = vmatpush1.bf16.msra.mxu0 %v946
        %957 = vmatprep.subr.bf16.mxu0 0
        %958 = vmatpush1.bf16.msra.mxu0 %v947
        %959 = vmatprep.subr.bf16.mxu0 0
        %960 = vmatpush1.bf16.msra.mxu0 %v948
        %961 = vmatprep.subr.bf16.mxu0 0
        %962 = vmatpush1.bf16.msra.mxu0 0
        %963 = vmatprep.subr.bf16.mxu0 0
        %964 = vmatpush1.bf16.msra.mxu0 0
        %965 = vmatprep.subr.bf16.mxu0 0
        %966 = vmatpush1.bf16.msra.mxu0 0
        %967 = vmatprep.subr.bf16.mxu0 0
        %968 = vmatpush1.bf16.msra.mxu0 0
        %969 = vmatprep.subr.bf16.mxu0 0
        %970 = vmatpush1.bf16.msra.mxu0 0
        %971 = vmatprep.subr.bf16.mxu0 0
        %972 = vmatpush1.bf16.msra.mxu0 0
        %973 = vmatprep.subr.bf16.mxu0 0
        %974 = vmatpush1.bf16.msra.mxu0 0
        %975 = vmatprep.subr.bf16.mxu0 0
        %976 = vmatpush1.bf16.msra.mxu0 0
        %977 = vmatprep.subr.bf16.mxu0 0
        %978 = vmatpush1.bf16.msra.mxu0 0
        %979 = vmatprep.subr.bf16.mxu0 0
        %980 = vmatpush1.bf16.msra.mxu0 0
        %981 = vmatprep.subr.bf16.mxu0 0
        %982 = vmatpush1.bf16.msra.mxu0 0
        %983 = vmatprep.subr.bf16.mxu0 0
        %984 = vmatpush1.bf16.msra.mxu0 0
        %985 = vmatprep.mubr.bf16.mxu0 0
        %986 = vmatmul.mubr.bf16.gmra.mrb[0].mxu0 %v759
        %v987 = vpop.f32.mrb[0].mxu0
        %v988 = vadd.f32 %v708, %v987
        %v989 = vpop.f32.mrb[0].mxu0
        %v990 = vpop.f32.mrb[0].mxu0
        %v991 = vpop.f32.mrb[0].mxu0
        %992 = vdwg.mxu0
        %v1001 = vunpack.c.l.b16 %v645
        %v1002 = vunpack.c.l.b16 %v646
        %v1003 = vunpack.c.l.b16 %v647
        %v1004 = vunpack.c.l.b16 %v648
        %v1005 = vunpack.c.l.b16 %v649
        %v1006 = vunpack.c.l.b16 %v650
        %v1007 = vunpack.c.l.b16 %v651
        %v1008 = vunpack.c.l.b16 %v652
        %v1009 = vpack.c.b16 %v1002, %v1001
        %v1010 = vpack.c.b16 %v1004, %v1003
        %v1011 = vpack.c.b16 %v1006, %v1005
        %v1012 = vpack.c.b16 %v1008, %v1007
        %1017 = vmatprep.subr.bf16.mxu0 0
        %1018 = vmatpush1.bf16.msra.mxu0 %v1009
        %1019 = vmatprep.subr.bf16.mxu0 0
        %1020 = vmatpush1.bf16.msra.mxu0 %v1010
        %1021 = vmatprep.subr.bf16.mxu0 0
        %1022 = vmatpush1.bf16.msra.mxu0 %v1011
        %1023 = vmatprep.subr.bf16.mxu0 0
        %1024 = vmatpush1.bf16.msra.mxu0 %v1012
        %1025 = vmatprep.subr.bf16.mxu0 0
        %1026 = vmatpush1.bf16.msra.mxu0 0
        %1027 = vmatprep.subr.bf16.mxu0 0
        %1028 = vmatpush1.bf16.msra.mxu0 0
        %1029 = vmatprep.subr.bf16.mxu0 0
        %1030 = vmatpush1.bf16.msra.mxu0 0
        %1031 = vmatprep.subr.bf16.mxu0 0
        %1032 = vmatpush1.bf16.msra.mxu0 0
        %1033 = vmatprep.subr.bf16.mxu0 0
        %1034 = vmatpush1.bf16.msra.mxu0 0
        %1035 = vmatprep.subr.bf16.mxu0 0
        %1036 = vmatpush1.bf16.msra.mxu0 0
        %1037 = vmatprep.subr.bf16.mxu0 0
        %1038 = vmatpush1.bf16.msra.mxu0 0
        %1039 = vmatprep.subr.bf16.mxu0 0
        %1040 = vmatpush1.bf16.msra.mxu0 0
        %1041 = vmatprep.subr.bf16.mxu0 0
        %1042 = vmatpush1.bf16.msra.mxu0 0
        %1043 = vmatprep.subr.bf16.mxu0 0
        %1044 = vmatpush1.bf16.msra.mxu0 0
        %1045 = vmatprep.subr.bf16.mxu0 0
        %1046 = vmatpush1.bf16.msra.mxu0 0
        %1047 = vmatprep.subr.bf16.mxu0 0
        %1048 = vmatpush1.bf16.msra.mxu0 0
        %1049 = vmatprep.mubr.bf16.mxu0 0
        %1050 = vmatmul.mubr.bf16.gmra.mrb[0].mxu0 %v759
        %v1051 = vpop.f32.mrb[0].mxu0
        %v1052 = vadd.f32 %v712, %v1051
        %v1053 = vpop.f32.mrb[0].mxu0
        %v1054 = vpop.f32.mrb[0].mxu0
        %v1055 = vpop.f32.mrb[0].mxu0
        %1056 = vdwg.mxu0
        %v1065 = vunpack.c.l.b16 %v653
        %v1066 = vunpack.c.l.b16 %v654
        %v1067 = vunpack.c.l.b16 %v655
        %v1068 = vunpack.c.l.b16 %v656
        %v1069 = vunpack.c.l.b16 %v657
        %v1070 = vunpack.c.l.b16 %v658
        %v1071 = vunpack.c.l.b16 %v659
        %v1072 = vunpack.c.l.b16 %v660
        %v1073 = vpack.c.b16 %v1066, %v1065
        %v1074 = vpack.c.b16 %v1068, %v1067
        %v1075 = vpack.c.b16 %v1070, %v1069
        %v1076 = vpack.c.b16 %v1072, %v1071
        %1081 = vmatprep.subr.bf16.mxu0 0
        %1082 = vmatpush1.bf16.msra.mxu0 %v1073
        %1083 = vmatprep.subr.bf16.mxu0 0
        %1084 = vmatpush1.bf16.msra.mxu0 %v1074
        %1085 = vmatprep.subr.bf16.mxu0 0
        %1086 = vmatpush1.bf16.msra.mxu0 %v1075
        %1087 = vmatprep.subr.bf16.mxu0 0
        %1088 = vmatpush1.bf16.msra.mxu0 %v1076
        %1089 = vmatprep.subr.bf16.mxu0 0
        %1090 = vmatpush1.bf16.msra.mxu0 0
        %1091 = vmatprep.subr.bf16.mxu0 0
        %1092 = vmatpush1.bf16.msra.mxu0 0
        %1093 = vmatprep.subr.bf16.mxu0 0
        %1094 = vmatpush1.bf16.msra.mxu0 0
        %1095 = vmatprep.subr.bf16.mxu0 0
        %1096 = vmatpush1.bf16.msra.mxu0 0
        %1097 = vmatprep.subr.bf16.mxu0 0
        %1098 = vmatpush1.bf16.msra.mxu0 0
        %1099 = vmatprep.subr.bf16.mxu0 0
        %1100 = vmatpush1.bf16.msra.mxu0 0
        %1101 = vmatprep.subr.bf16.mxu0 0
        %1102 = vmatpush1.bf16.msra.mxu0 0
        %1103 = vmatprep.subr.bf16.mxu0 0
        %1104 = vmatpush1.bf16.msra.mxu0 0
        %1105 = vmatprep.subr.bf16.mxu0 0
        %1106 = vmatpush1.bf16.msra.mxu0 0
        %1107 = vmatprep.subr.bf16.mxu0 0
        %1108 = vmatpush1.bf16.msra.mxu0 0
        %1109 = vmatprep.subr.bf16.mxu0 0
        %1110 = vmatpush1.bf16.msra.mxu0 0
        %1111 = vmatprep.subr.bf16.mxu0 0
        %1112 = vmatpush1.bf16.msra.mxu0 0
        %1113 = vmatprep.mubr.bf16.mxu0 0
        %1114 = vmatmul.mubr.bf16.gmra.mrb[0].mxu0 %v759
        %v1115 = vpop.f32.mrb[0].mxu0
        %v1116 = vadd.f32 %v716, %v1115
        %v1117 = vpop.f32.mrb[0].mxu0
        %v1118 = vpop.f32.mrb[0].mxu0
        %v1119 = vpop.f32.mrb[0].mxu0
        %1120 = vdwg.mxu0
        %v1129 = vunpack.c.l.b16 %v661
        %v1130 = vunpack.c.l.b16 %v662
        %v1131 = vunpack.c.l.b16 %v663
        %v1132 = vunpack.c.l.b16 %v664
        %v1133 = vunpack.c.l.b16 %v665
        %v1134 = vunpack.c.l.b16 %v666
        %v1135 = vunpack.c.l.b16 %v667
        %v1136 = vunpack.c.l.b16 %v668
        %v1137 = vpack.c.b16 %v1130, %v1129
        %v1138 = vpack.c.b16 %v1132, %v1131
        %v1139 = vpack.c.b16 %v1134, %v1133
        %v1140 = vpack.c.b16 %v1136, %v1135
        %1145 = vmatprep.subr.bf16.mxu0 0
        %1146 = vmatpush1.bf16.msra.mxu0 %v1137
        %1147 = vmatprep.subr.bf16.mxu0 0
        %1148 = vmatpush1.bf16.msra.mxu0 %v1138
        %1149 = vmatprep.subr.bf16.mxu0 0
        %1150 = vmatpush1.bf16.msra.mxu0 %v1139
        %1151 = vmatprep.subr.bf16.mxu0 0
        %1152 = vmatpush1.bf16.msra.mxu0 %v1140
        %1153 = vmatprep.subr.bf16.mxu0 0
        %1154 = vmatpush1.bf16.msra.mxu0 0
        %1155 = vmatprep.subr.bf16.mxu0 0
        %1156 = vmatpush1.bf16.msra.mxu0 0
        %1157 = vmatprep.subr.bf16.mxu0 0
        %1158 = vmatpush1.bf16.msra.mxu0 0
        %1159 = vmatprep.subr.bf16.mxu0 0
        %1160 = vmatpush1.bf16.msra.mxu0 0
        %1161 = vmatprep.subr.bf16.mxu0 0
        %1162 = vmatpush1.bf16.msra.mxu0 0
        %1163 = vmatprep.subr.bf16.mxu0 0
        %1164 = vmatpush1.bf16.msra.mxu0 0
        %1165 = vmatprep.subr.bf16.mxu0 0
        %1166 = vmatpush1.bf16.msra.mxu0 0
        %1167 = vmatprep.subr.bf16.mxu0 0
        %1168 = vmatpush1.bf16.msra.mxu0 0
        %1169 = vmatprep.subr.bf16.mxu0 0
        %1170 = vmatpush1.bf16.msra.mxu0 0
        %1171 = vmatprep.subr.bf16.mxu0 0
        %1172 = vmatpush1.bf16.msra.mxu0 0
        %1173 = vmatprep.subr.bf16.mxu0 0
        %1174 = vmatpush1.bf16.msra.mxu0 0
        %1175 = vmatprep.subr.bf16.mxu0 0
        %1176 = vmatpush1.bf16.msra.mxu0 0
        %1177 = vmatprep.mubr.bf16.mxu0 0
        %1178 = vmatmul.mubr.bf16.gmra.mrb[0].mxu0 %v759
        %v1179 = vpop.f32.mrb[0].mxu0
        %v1180 = vadd.f32 %v720, %v1179
        %v1181 = vpop.f32.mrb[0].mxu0
        %v1182 = vpop.f32.mrb[0].mxu0
        %v1183 = vpop.f32.mrb[0].mxu0
        %1184 = vdwg.mxu0
        %v1193 = vunpack.c.l.b16 %v669
        %v1194 = vunpack.c.l.b16 %v670
        %v1195 = vunpack.c.l.b16 %v671
        %v1196 = vunpack.c.l.b16 %v672
        %v1197 = vunpack.c.l.b16 %v673
        %v1198 = vunpack.c.l.b16 %v674
        %v1199 = vunpack.c.l.b16 %v675
        %v1200 = vunpack.c.l.b16 %v676
        %v1201 = vpack.c.b16 %v1194, %v1193
        %v1202 = vpack.c.b16 %v1196, %v1195
        %v1203 = vpack.c.b16 %v1198, %v1197
        %v1204 = vpack.c.b16 %v1200, %v1199
        %1209 = vmatprep.subr.bf16.mxu0 0
        %1210 = vmatpush1.bf16.msra.mxu0 %v1201
        %1211 = vmatprep.subr.bf16.mxu0 0
        %1212 = vmatpush1.bf16.msra.mxu0 %v1202
        %1213 = vmatprep.subr.bf16.mxu0 0
        %1214 = vmatpush1.bf16.msra.mxu0 %v1203
        %1215 = vmatprep.subr.bf16.mxu0 0
        %1216 = vmatpush1.bf16.msra.mxu0 %v1204
        %1217 = vmatprep.subr.bf16.mxu0 0
        %1218 = vmatpush1.bf16.msra.mxu0 0
        %1219 = vmatprep.subr.bf16.mxu0 0
        %1220 = vmatpush1.bf16.msra.mxu0 0
        %1221 = vmatprep.subr.bf16.mxu0 0
        %1222 = vmatpush1.bf16.msra.mxu0 0
        %1223 = vmatprep.subr.bf16.mxu0 0
        %1224 = vmatpush1.bf16.msra.mxu0 0
        %1225 = vmatprep.subr.bf16.mxu0 0
        %1226 = vmatpush1.bf16.msra.mxu0 0
        %1227 = vmatprep.subr.bf16.mxu0 0
        %1228 = vmatpush1.bf16.msra.mxu0 0
        %1229 = vmatprep.subr.bf16.mxu0 0
        %1230 = vmatpush1.bf16.msra.mxu0 0
        %1231 = vmatprep.subr.bf16.mxu0 0
        %1232 = vmatpush1.bf16.msra.mxu0 0
        %1233 = vmatprep.subr.bf16.mxu0 0
        %1234 = vmatpush1.bf16.msra.mxu0 0
        %1235 = vmatprep.subr.bf16.mxu0 0
        %1236 = vmatpush1.bf16.msra.mxu0 0
        %1237 = vmatprep.subr.bf16.mxu0 0
        %1238 = vmatpush1.bf16.msra.mxu0 0
        %1239 = vmatprep.subr.bf16.mxu0 0
        %1240 = vmatpush1.bf16.msra.mxu0 0
        %1241 = vmatprep.mubr.bf16.mxu0 0
        %1242 = vmatmul.mubr.bf16.gmra.mrb[0].mxu0 %v759
        %v1243 = vpop.f32.mrb[0].mxu0
        %v1244 = vadd.f32 %v724, %v1243
        %v1245 = vpop.f32.mrb[0].mxu0
        %v1246 = vpop.f32.mrb[0].mxu0
        %v1247 = vpop.f32.mrb[0].mxu0
        %1248 = vdwg.mxu0
        %v1249 = vld [vmem:[%s3] sm:$0xf]
        %v1250 = vld [vmem:[%s3 + $0x4] sm:$0xf]
        %v1251 = vld [vmem:[%s3 + $0x8] sm:$0xf]
        %v1252 = vld [vmem:[%s3 + $0xc] sm:$0xf]
        %v1253 = vld [vmem:[%s3 + $0x10] sm:$0xf]
        %v1254 = vld [vmem:[%s3 + $0x14] sm:$0xf]
        %v1255 = vld [vmem:[%s3 + $0x18] sm:$0xf]
        %v1256 = vld [vmem:[%s3 + $0x1c] sm:$0xf]
        %v1257 = vld [vmem:[%s3 + $0x20] sm:$0xf]
        %v1258 = vld [vmem:[%s3 + $0x24] sm:$0xf]
        %v1259 = vld [vmem:[%s3 + $0x28] sm:$0xf]
        %v1260 = vld [vmem:[%s3 + $0x2c] sm:$0xf]
        %v1261 = vld [vmem:[%s3 + $0x30] sm:$0xf]
        %v1262 = vld [vmem:[%s3 + $0x34] sm:$0xf]
        %v1263 = vld [vmem:[%s3 + $0x38] sm:$0xf]
        %v1264 = vld [vmem:[%s3 + $0x3c] sm:$0xf]
        %v1265 = vld [vmem:[%s3 + $0x40] sm:$0xf]
        %v1266 = vld [vmem:[%s3 + $0x44] sm:$0xf]
        %v1267 = vld [vmem:[%s3 + $0x48] sm:$0xf]
        %v1268 = vld [vmem:[%s3 + $0x4c] sm:$0xf]
        %v1269 = vld [vmem:[%s3 + $0x50] sm:$0xf]
        %v1270 = vld [vmem:[%s3 + $0x54] sm:$0xf]
        %v1271 = vld [vmem:[%s3 + $0x58] sm:$0xf]
        %v1272 = vld [vmem:[%s3 + $0x5c] sm:$0xf]
        %v1273 = vld [vmem:[%s3 + $0x60] sm:$0xf]
        %v1274 = vld [vmem:[%s3 + $0x64] sm:$0xf]
        %v1275 = vld [vmem:[%s3 + $0x68] sm:$0xf]
        %v1276 = vld [vmem:[%s3 + $0x6c] sm:$0xf]
        %v1277 = vld [vmem:[%s3 + $0x70] sm:$0xf]
        %v1278 = vld [vmem:[%s3 + $0x74] sm:$0xf]
        %v1279 = vld [vmem:[%s3 + $0x78] sm:$0xf]
        %v1280 = vld [vmem:[%s3 + $0x7c] sm:$0xf]
        %v1281 = vld [vmem:[%s3 + $0x80] sm:$0xf]
        %v1282 = vld [vmem:[%s3 + $0x84] sm:$0xf]
        %v1283 = vld [vmem:[%s3 + $0x88] sm:$0xf]
        %v1284 = vld [vmem:[%s3 + $0x8c] sm:$0xf]
        %v1285 = vld [vmem:[%s3 + $0x90] sm:$0xf]
        %v1286 = vld [vmem:[%s3 + $0x94] sm:$0xf]
        %v1287 = vld [vmem:[%s3 + $0x98] sm:$0xf]
        %v1288 = vld [vmem:[%s3 + $0x9c] sm:$0xf]
        %v1289 = vld [vmem:[%s3 + $0xa0] sm:$0xf]
        %v1290 = vld [vmem:[%s3 + $0xa4] sm:$0xf]
        %v1291 = vld [vmem:[%s3 + $0xa8] sm:$0xf]
        %v1292 = vld [vmem:[%s3 + $0xac] sm:$0xf]
        %v1293 = vld [vmem:[%s3 + $0xb0] sm:$0xf]
        %v1294 = vld [vmem:[%s3 + $0xb4] sm:$0xf]
        %v1295 = vld [vmem:[%s3 + $0xb8] sm:$0xf]
        %v1296 = vld [vmem:[%s3 + $0xbc] sm:$0xf]
        %v1297 = vld [vmem:[%s3 + $0xc0] sm:$0xf]
        %v1298 = vld [vmem:[%s3 + $0xc4] sm:$0xf]
        %v1299 = vld [vmem:[%s3 + $0xc8] sm:$0xf]
        %v1300 = vld [vmem:[%s3 + $0xcc] sm:$0xf]
        %v1301 = vld [vmem:[%s3 + $0xd0] sm:$0xf]
        %v1302 = vld [vmem:[%s3 + $0xd4] sm:$0xf]
        %v1303 = vld [vmem:[%s3 + $0xd8] sm:$0xf]
        %v1304 = vld [vmem:[%s3 + $0xdc] sm:$0xf]
        %v1305 = vld [vmem:[%s3 + $0xe0] sm:$0xf]
        %v1306 = vld [vmem:[%s3 + $0xe4] sm:$0xf]
        %v1307 = vld [vmem:[%s3 + $0xe8] sm:$0xf]
        %v1308 = vld [vmem:[%s3 + $0xec] sm:$0xf]
        %v1309 = vld [vmem:[%s3 + $0xf0] sm:$0xf]
        %v1310 = vld [vmem:[%s3 + $0xf4] sm:$0xf]
        %v1311 = vld [vmem:[%s3 + $0xf8] sm:$0xf]
        %v1312 = vld [vmem:[%s3 + $0xfc] sm:$0xf]
        %v1313 = vld [vmem:[%s6] sm:$0x1]
        %v1314 = vld [vmem:[%s6 + $0x1] sm:$0x1]
        %v1315 = vld [vmem:[%s6 + $0x2] sm:$0x1]
        %v1316 = vld [vmem:[%s6 + $0x3] sm:$0x1]
        %v1317 = vld [vmem:[%s6 + $0x4] sm:$0x1]
        %v1318 = vld [vmem:[%s6 + $0x5] sm:$0x1]
        %v1319 = vld [vmem:[%s6 + $0x6] sm:$0x1]
        %v1320 = vld [vmem:[%s6 + $0x7] sm:$0x1]
        %v1329 = vlaneseq
        %v1330 = vshrl.u32 %v1329, 7
        %v1331 = vsub.s32 0, %v1330
        %v1332 = vrot.slane %v1313, %v1331
        %v1333 = vlaneseq
        %v1334 = vshrl.u32 %v1333, 7
        %v1335 = vsub.s32 0, %v1334
        %v1336 = vrot.slane %v1314, %v1335
        %v1337 = vlaneseq
        %v1338 = vshrl.u32 %v1337, 7
        %v1339 = vsub.s32 0, %v1338
        %v1340 = vrot.slane %v1315, %v1339
        %v1341 = vlaneseq
        %v1342 = vshrl.u32 %v1341, 7
        %v1343 = vsub.s32 0, %v1342
        %v1344 = vrot.slane %v1316, %v1343
        %v1345 = vlaneseq
        %v1346 = vshrl.u32 %v1345, 7
        %v1347 = vsub.s32 0, %v1346
        %v1348 = vrot.slane %v1317, %v1347
        %v1349 = vlaneseq
        %v1350 = vshrl.u32 %v1349, 7
        %v1351 = vsub.s32 0, %v1350
        %v1352 = vrot.slane %v1318, %v1351
        %v1353 = vlaneseq
        %v1354 = vshrl.u32 %v1353, 7
        %v1355 = vsub.s32 0, %v1354
        %v1356 = vrot.slane %v1319, %v1355
        %v1357 = vlaneseq
        %v1358 = vshrl.u32 %v1357, 7
        %v1359 = vsub.s32 0, %v1358
        %v1360 = vrot.slane %v1320, %v1359
        %v1377 = vunpack.c.l.b16 %v1249
        %v1378 = vunpack.c.l.b16 %v1250
        %v1379 = vunpack.c.l.b16 %v1251
        %v1380 = vunpack.c.l.b16 %v1252
        %v1381 = vunpack.c.l.b16 %v1253
        %v1382 = vunpack.c.l.b16 %v1254
        %v1383 = vunpack.c.l.b16 %v1255
        %v1384 = vunpack.c.l.b16 %v1256
        %v1385 = vpack.c.b16 %v1378, %v1377
        %v1386 = vpack.c.b16 %v1380, %v1379
        %v1387 = vpack.c.b16 %v1382, %v1381
        %v1388 = vpack.c.b16 %v1384, %v1383
        %1393 = vmatprep.subr.bf16.mxu0 0
        %1394 = vmatpush1.bf16.msra.mxu0 %v1385
        %1395 = vmatprep.subr.bf16.mxu0 0
        %1396 = vmatpush1.bf16.msra.mxu0 %v1386
        %1397 = vmatprep.subr.bf16.mxu0 0
        %1398 = vmatpush1.bf16.msra.mxu0 %v1387
        %1399 = vmatprep.subr.bf16.mxu0 0
        %1400 = vmatpush1.bf16.msra.mxu0 %v1388
        %1401 = vmatprep.subr.bf16.mxu0 0
        %1402 = vmatpush1.bf16.msra.mxu0 0
        %1403 = vmatprep.subr.bf16.mxu0 0
        %1404 = vmatpush1.bf16.msra.mxu0 0
        %1405 = vmatprep.subr.bf16.mxu0 0
        %1406 = vmatpush1.bf16.msra.mxu0 0
        %1407 = vmatprep.subr.bf16.mxu0 0
        %1408 = vmatpush1.bf16.msra.mxu0 0
        %1409 = vmatprep.subr.bf16.mxu0 0
        %1410 = vmatpush1.bf16.msra.mxu0 0
        %1411 = vmatprep.subr.bf16.mxu0 0
        %1412 = vmatpush1.bf16.msra.mxu0 0
        %1413 = vmatprep.subr.bf16.mxu0 0
        %1414 = vmatpush1.bf16.msra.mxu0 0
        %1415 = vmatprep.subr.bf16.mxu0 0
        %1416 = vmatpush1.bf16.msra.mxu0 0
        %1417 = vmatprep.subr.bf16.mxu0 0
        %1418 = vmatpush1.bf16.msra.mxu0 0
        %1419 = vmatprep.subr.bf16.mxu0 0
        %1420 = vmatpush1.bf16.msra.mxu0 0
        %1421 = vmatprep.subr.bf16.mxu0 0
        %1422 = vmatpush1.bf16.msra.mxu0 0
        %1423 = vmatprep.subr.bf16.mxu0 0
        %1424 = vmatpush1.bf16.msra.mxu0 0
        %1425 = vmatprep.mubr.bf16.mxu0 0
        %1426 = vmatmul.mubr.bf16.gmra.mrb[0].mxu0 %v759
        %v1427 = vpop.f32.mrb[0].mxu0
        %v1428 = vadd.f32 %v1332, %v1427
        %v1429 = vpop.f32.mrb[0].mxu0
        %v1430 = vpop.f32.mrb[0].mxu0
        %v1431 = vpop.f32.mrb[0].mxu0
        %1432 = vdwg.mxu0
        %v1441 = vunpack.c.l.b16 %v1257
        %v1442 = vunpack.c.l.b16 %v1258
        %v1443 = vunpack.c.l.b16 %v1259
        %v1444 = vunpack.c.l.b16 %v1260
        %v1445 = vunpack.c.l.b16 %v1261
        %v1446 = vunpack.c.l.b16 %v1262
        %v1447 = vunpack.c.l.b16 %v1263
        %v1448 = vunpack.c.l.b16 %v1264
        %v1449 = vpack.c.b16 %v1442, %v1441
        %v1450 = vpack.c.b16 %v1444, %v1443
        %v1451 = vpack.c.b16 %v1446, %v1445
        %v1452 = vpack.c.b16 %v1448, %v1447
        %1457 = vmatprep.subr.bf16.mxu0 0
        %1458 = vmatpush1.bf16.msra.mxu0 %v1449
        %1459 = vmatprep.subr.bf16.mxu0 0
        %1460 = vmatpush1.bf16.msra.mxu0 %v1450
        %1461 = vmatprep.subr.bf16.mxu0 0
        %1462 = vmatpush1.bf16.msra.mxu0 %v1451
        %1463 = vmatprep.subr.bf16.mxu0 0
        %1464 = vmatpush1.bf16.msra.mxu0 %v1452
        %1465 = vmatprep.subr.bf16.mxu0 0
        %1466 = vmatpush1.bf16.msra.mxu0 0
        %1467 = vmatprep.subr.bf16.mxu0 0
        %1468 = vmatpush1.bf16.msra.mxu0 0
        %1469 = vmatprep.subr.bf16.mxu0 0
        %1470 = vmatpush1.bf16.msra.mxu0 0
        %1471 = vmatprep.subr.bf16.mxu0 0
        %1472 = vmatpush1.bf16.msra.mxu0 0
        %1473 = vmatprep.subr.bf16.mxu0 0
        %1474 = vmatpush1.bf16.msra.mxu0 0
        %1475 = vmatprep.subr.bf16.mxu0 0
        %1476 = vmatpush1.bf16.msra.mxu0 0
        %1477 = vmatprep.subr.bf16.mxu0 0
        %1478 = vmatpush1.bf16.msra.mxu0 0
        %1479 = vmatprep.subr.bf16.mxu0 0
        %1480 = vmatpush1.bf16.msra.mxu0 0
        %1481 = vmatprep.subr.bf16.mxu0 0
        %1482 = vmatpush1.bf16.msra.mxu0 0
        %1483 = vmatprep.subr.bf16.mxu0 0
        %1484 = vmatpush1.bf16.msra.mxu0 0
        %1485 = vmatprep.subr.bf16.mxu0 0
        %1486 = vmatpush1.bf16.msra.mxu0 0
        %1487 = vmatprep.subr.bf16.mxu0 0
        %1488 = vmatpush1.bf16.msra.mxu0 0
        %1489 = vmatprep.mubr.bf16.mxu0 0
        %1490 = vmatmul.mubr.bf16.gmra.mrb[0].mxu0 %v759
        %v1491 = vpop.f32.mrb[0].mxu0
        %v1492 = vadd.f32 %v1336, %v1491
        %v1493 = vpop.f32.mrb[0].mxu0
        %v1494 = vpop.f32.mrb[0].mxu0
        %v1495 = vpop.f32.mrb[0].mxu0
        %1496 = vdwg.mxu0
        %v1505 = vunpack.c.l.b16 %v1265
        %v1506 = vunpack.c.l.b16 %v1266
        %v1507 = vunpack.c.l.b16 %v1267
        %v1508 = vunpack.c.l.b16 %v1268
        %v1509 = vunpack.c.l.b16 %v1269
        %v1510 = vunpack.c.l.b16 %v1270
        %v1511 = vunpack.c.l.b16 %v1271
        %v1512 = vunpack.c.l.b16 %v1272
        %v1513 = vpack.c.b16 %v1506, %v1505
        %v1514 = vpack.c.b16 %v1508, %v1507
        %v1515 = vpack.c.b16 %v1510, %v1509
        %v1516 = vpack.c.b16 %v1512, %v1511
        %1521 = vmatprep.subr.bf16.mxu0 0
        %1522 = vmatpush1.bf16.msra.mxu0 %v1513
        %1523 = vmatprep.subr.bf16.mxu0 0
        %1524 = vmatpush1.bf16.msra.mxu0 %v1514
        %1525 = vmatprep.subr.bf16.mxu0 0
        %1526 = vmatpush1.bf16.msra.mxu0 %v1515
        %1527 = vmatprep.subr.bf16.mxu0 0
        %1528 = vmatpush1.bf16.msra.mxu0 %v1516
        %1529 = vmatprep.subr.bf16.mxu0 0
        %1530 = vmatpush1.bf16.msra.mxu0 0
        %1531 = vmatprep.subr.bf16.mxu0 0
        %1532 = vmatpush1.bf16.msra.mxu0 0
        %1533 = vmatprep.subr.bf16.mxu0 0
        %1534 = vmatpush1.bf16.msra.mxu0 0
        %1535 = vmatprep.subr.bf16.mxu0 0
        %1536 = vmatpush1.bf16.msra.mxu0 0
        %1537 = vmatprep.subr.bf16.mxu0 0
        %1538 = vmatpush1.bf16.msra.mxu0 0
        %1539 = vmatprep.subr.bf16.mxu0 0
        %1540 = vmatpush1.bf16.msra.mxu0 0
        %1541 = vmatprep.subr.bf16.mxu0 0
        %1542 = vmatpush1.bf16.msra.mxu0 0
        %1543 = vmatprep.subr.bf16.mxu0 0
        %1544 = vmatpush1.bf16.msra.mxu0 0
        %1545 = vmatprep.subr.bf16.mxu0 0
        %1546 = vmatpush1.bf16.msra.mxu0 0
        %1547 = vmatprep.subr.bf16.mxu0 0
        %1548 = vmatpush1.bf16.msra.mxu0 0
        %1549 = vmatprep.subr.bf16.mxu0 0
        %1550 = vmatpush1.bf16.msra.mxu0 0
        %1551 = vmatprep.subr.bf16.mxu0 0
        %1552 = vmatpush1.bf16.msra.mxu0 0
        %1553 = vmatprep.mubr.bf16.mxu0 0
        %1554 = vmatmul.mubr.bf16.gmra.mrb[0].mxu0 %v759
        %v1555 = vpop.f32.mrb[0].mxu0
        %v1556 = vadd.f32 %v1340, %v1555
        %v1557 = vpop.f32.mrb[0].mxu0
        %v1558 = vpop.f32.mrb[0].mxu0
        %v1559 = vpop.f32.mrb[0].mxu0
        %1560 = vdwg.mxu0
        %v1569 = vunpack.c.l.b16 %v1273
        %v1570 = vunpack.c.l.b16 %v1274
        %v1571 = vunpack.c.l.b16 %v1275
        %v1572 = vunpack.c.l.b16 %v1276
        %v1573 = vunpack.c.l.b16 %v1277
        %v1574 = vunpack.c.l.b16 %v1278
        %v1575 = vunpack.c.l.b16 %v1279
        %v1576 = vunpack.c.l.b16 %v1280
        %v1577 = vpack.c.b16 %v1570, %v1569
        %v1578 = vpack.c.b16 %v1572, %v1571
        %v1579 = vpack.c.b16 %v1574, %v1573
        %v1580 = vpack.c.b16 %v1576, %v1575
        %1585 = vmatprep.subr.bf16.mxu0 0
        %1586 = vmatpush1.bf16.msra.mxu0 %v1577
        %1587 = vmatprep.subr.bf16.mxu0 0
        %1588 = vmatpush1.bf16.msra.mxu0 %v1578
        %1589 = vmatprep.subr.bf16.mxu0 0
        %1590 = vmatpush1.bf16.msra.mxu0 %v1579
        %1591 = vmatprep.subr.bf16.mxu0 0
        %1592 = vmatpush1.bf16.msra.mxu0 %v1580
        %1593 = vmatprep.subr.bf16.mxu0 0
        %1594 = vmatpush1.bf16.msra.mxu0 0
        %1595 = vmatprep.subr.bf16.mxu0 0
        %1596 = vmatpush1.bf16.msra.mxu0 0
        %1597 = vmatprep.subr.bf16.mxu0 0
        %1598 = vmatpush1.bf16.msra.mxu0 0
        %1599 = vmatprep.subr.bf16.mxu0 0
        %1600 = vmatpush1.bf16.msra.mxu0 0
        %1601 = vmatprep.subr.bf16.mxu0 0
        %1602 = vmatpush1.bf16.msra.mxu0 0
        %1603 = vmatprep.subr.bf16.mxu0 0
        %1604 = vmatpush1.bf16.msra.mxu0 0
        %1605 = vmatprep.subr.bf16.mxu0 0
        %1606 = vmatpush1.bf16.msra.mxu0 0
        %1607 = vmatprep.subr.bf16.mxu0 0
        %1608 = vmatpush1.bf16.msra.mxu0 0
        %1609 = vmatprep.subr.bf16.mxu0 0
        %1610 = vmatpush1.bf16.msra.mxu0 0
        %1611 = vmatprep.subr.bf16.mxu0 0
        %1612 = vmatpush1.bf16.msra.mxu0 0
        %1613 = vmatprep.subr.bf16.mxu0 0
        %1614 = vmatpush1.bf16.msra.mxu0 0
        %1615 = vmatprep.subr.bf16.mxu0 0
        %1616 = vmatpush1.bf16.msra.mxu0 0
        %1617 = vmatprep.mubr.bf16.mxu0 0
        %1618 = vmatmul.mubr.bf16.gmra.mrb[0].mxu0 %v759
        %v1619 = vpop.f32.mrb[0].mxu0
        %v1620 = vadd.f32 %v1344, %v1619
        %v1621 = vpop.f32.mrb[0].mxu0
        %v1622 = vpop.f32.mrb[0].mxu0
        %v1623 = vpop.f32.mrb[0].mxu0
        %1624 = vdwg.mxu0
        %v1633 = vunpack.c.l.b16 %v1281
        %v1634 = vunpack.c.l.b16 %v1282
        %v1635 = vunpack.c.l.b16 %v1283
        %v1636 = vunpack.c.l.b16 %v1284
        %v1637 = vunpack.c.l.b16 %v1285
        %v1638 = vunpack.c.l.b16 %v1286
        %v1639 = vunpack.c.l.b16 %v1287
        %v1640 = vunpack.c.l.b16 %v1288
        %v1641 = vpack.c.b16 %v1634, %v1633
        %v1642 = vpack.c.b16 %v1636, %v1635
        %v1643 = vpack.c.b16 %v1638, %v1637
        %v1644 = vpack.c.b16 %v1640, %v1639
        %1649 = vmatprep.subr.bf16.mxu0 0
        %1650 = vmatpush1.bf16.msra.mxu0 %v1641
        %1651 = vmatprep.subr.bf16.mxu0 0
        %1652 = vmatpush1.bf16.msra.mxu0 %v1642
        %1653 = vmatprep.subr.bf16.mxu0 0
        %1654 = vmatpush1.bf16.msra.mxu0 %v1643
        %1655 = vmatprep.subr.bf16.mxu0 0
        %1656 = vmatpush1.bf16.msra.mxu0 %v1644
        %1657 = vmatprep.subr.bf16.mxu0 0
        %1658 = vmatpush1.bf16.msra.mxu0 0
        %1659 = vmatprep.subr.bf16.mxu0 0
        %1660 = vmatpush1.bf16.msra.mxu0 0
        %1661 = vmatprep.subr.bf16.mxu0 0
        %1662 = vmatpush1.bf16.msra.mxu0 0
        %1663 = vmatprep.subr.bf16.mxu0 0
        %1664 = vmatpush1.bf16.msra.mxu0 0
        %1665 = vmatprep.subr.bf16.mxu0 0
        %1666 = vmatpush1.bf16.msra.mxu0 0
        %1667 = vmatprep.subr.bf16.mxu0 0
        %1668 = vmatpush1.bf16.msra.mxu0 0
        %1669 = vmatprep.subr.bf16.mxu0 0
        %1670 = vmatpush1.bf16.msra.mxu0 0
        %1671 = vmatprep.subr.bf16.mxu0 0
        %1672 = vmatpush1.bf16.msra.mxu0 0
        %1673 = vmatprep.subr.bf16.mxu0 0
        %1674 = vmatpush1.bf16.msra.mxu0 0
        %1675 = vmatprep.subr.bf16.mxu0 0
        %1676 = vmatpush1.bf16.msra.mxu0 0
        %1677 = vmatprep.subr.bf16.mxu0 0
        %1678 = vmatpush1.bf16.msra.mxu0 0
        %1679 = vmatprep.subr.bf16.mxu0 0
        %1680 = vmatpush1.bf16.msra.mxu0 0
        %1681 = vmatprep.mubr.bf16.mxu0 0
        %1682 = vmatmul.mubr.bf16.gmra.mrb[0].mxu0 %v759
        %v1683 = vpop.f32.mrb[0].mxu0
        %v1684 = vadd.f32 %v1348, %v1683
        %v1685 = vpop.f32.mrb[0].mxu0
        %v1686 = vpop.f32.mrb[0].mxu0
        %v1687 = vpop.f32.mrb[0].mxu0
        %1688 = vdwg.mxu0
        %v1697 = vunpack.c.l.b16 %v1289
        %v1698 = vunpack.c.l.b16 %v1290
        %v1699 = vunpack.c.l.b16 %v1291
        %v1700 = vunpack.c.l.b16 %v1292
        %v1701 = vunpack.c.l.b16 %v1293
        %v1702 = vunpack.c.l.b16 %v1294
        %v1703 = vunpack.c.l.b16 %v1295
        %v1704 = vunpack.c.l.b16 %v1296
        %v1705 = vpack.c.b16 %v1698, %v1697
        %v1706 = vpack.c.b16 %v1700, %v1699
        %v1707 = vpack.c.b16 %v1702, %v1701
        %v1708 = vpack.c.b16 %v1704, %v1703
        %1713 = vmatprep.subr.bf16.mxu0 0
        %1714 = vmatpush1.bf16.msra.mxu0 %v1705
        %1715 = vmatprep.subr.bf16.mxu0 0
        %1716 = vmatpush1.bf16.msra.mxu0 %v1706
        %1717 = vmatprep.subr.bf16.mxu0 0
        %1718 = vmatpush1.bf16.msra.mxu0 %v1707
        %1719 = vmatprep.subr.bf16.mxu0 0
        %1720 = vmatpush1.bf16.msra.mxu0 %v1708
        %1721 = vmatprep.subr.bf16.mxu0 0
        %1722 = vmatpush1.bf16.msra.mxu0 0
        %1723 = vmatprep.subr.bf16.mxu0 0
        %1724 = vmatpush1.bf16.msra.mxu0 0
        %1725 = vmatprep.subr.bf16.mxu0 0
        %1726 = vmatpush1.bf16.msra.mxu0 0
        %1727 = vmatprep.subr.bf16.mxu0 0
        %1728 = vmatpush1.bf16.msra.mxu0 0
        %1729 = vmatprep.subr.bf16.mxu0 0
        %1730 = vmatpush1.bf16.msra.mxu0 0
        %1731 = vmatprep.subr.bf16.mxu0 0
        %1732 = vmatpush1.bf16.msra.mxu0 0
        %1733 = vmatprep.subr.bf16.mxu0 0
        %1734 = vmatpush1.bf16.msra.mxu0 0
        %1735 = vmatprep.subr.bf16.mxu0 0
        %1736 = vmatpush1.bf16.msra.mxu0 0
        %1737 = vmatprep.subr.bf16.mxu0 0
        %1738 = vmatpush1.bf16.msra.mxu0 0
        %1739 = vmatprep.subr.bf16.mxu0 0
        %1740 = vmatpush1.bf16.msra.mxu0 0
        %1741 = vmatprep.subr.bf16.mxu0 0
        %1742 = vmatpush1.bf16.msra.mxu0 0
        %1743 = vmatprep.subr.bf16.mxu0 0
        %1744 = vmatpush1.bf16.msra.mxu0 0
        %1745 = vmatprep.mubr.bf16.mxu0 0
        %1746 = vmatmul.mubr.bf16.gmra.mrb[0].mxu0 %v759
        %v1747 = vpop.f32.mrb[0].mxu0
        %v1748 = vadd.f32 %v1352, %v1747
        %v1749 = vpop.f32.mrb[0].mxu0
        %v1750 = vpop.f32.mrb[0].mxu0
        %v1751 = vpop.f32.mrb[0].mxu0
        %1752 = vdwg.mxu0
        %v1761 = vunpack.c.l.b16 %v1297
        %v1762 = vunpack.c.l.b16 %v1298
        %v1763 = vunpack.c.l.b16 %v1299
        %v1764 = vunpack.c.l.b16 %v1300
        %v1765 = vunpack.c.l.b16 %v1301
        %v1766 = vunpack.c.l.b16 %v1302
        %v1767 = vunpack.c.l.b16 %v1303
        %v1768 = vunpack.c.l.b16 %v1304
        %v1769 = vpack.c.b16 %v1762, %v1761
        %v1770 = vpack.c.b16 %v1764, %v1763
        %v1771 = vpack.c.b16 %v1766, %v1765
        %v1772 = vpack.c.b16 %v1768, %v1767
        %1777 = vmatprep.subr.bf16.mxu0 0
        %1778 = vmatpush1.bf16.msra.mxu0 %v1769
        %1779 = vmatprep.subr.bf16.mxu0 0
        %1780 = vmatpush1.bf16.msra.mxu0 %v1770
        %1781 = vmatprep.subr.bf16.mxu0 0
        %1782 = vmatpush1.bf16.msra.mxu0 %v1771
        %1783 = vmatprep.subr.bf16.mxu0 0
        %1784 = vmatpush1.bf16.msra.mxu0 %v1772
        %1785 = vmatprep.subr.bf16.mxu0 0
        %1786 = vmatpush1.bf16.msra.mxu0 0
        %1787 = vmatprep.subr.bf16.mxu0 0
        %1788 = vmatpush1.bf16.msra.mxu0 0
        %1789 = vmatprep.subr.bf16.mxu0 0
        %1790 = vmatpush1.bf16.msra.mxu0 0
        %1791 = vmatprep.subr.bf16.mxu0 0
        %1792 = vmatpush1.bf16.msra.mxu0 0
        %1793 = vmatprep.subr.bf16.mxu0 0
        %1794 = vmatpush1.bf16.msra.mxu0 0
        %1795 = vmatprep.subr.bf16.mxu0 0
        %1796 = vmatpush1.bf16.msra.mxu0 0
        %1797 = vmatprep.subr.bf16.mxu0 0
        %1798 = vmatpush1.bf16.msra.mxu0 0
        %1799 = vmatprep.subr.bf16.mxu0 0
        %1800 = vmatpush1.bf16.msra.mxu0 0
        %1801 = vmatprep.subr.bf16.mxu0 0
        %1802 = vmatpush1.bf16.msra.mxu0 0
        %1803 = vmatprep.subr.bf16.mxu0 0
        %1804 = vmatpush1.bf16.msra.mxu0 0
        %1805 = vmatprep.subr.bf16.mxu0 0
        %1806 = vmatpush1.bf16.msra.mxu0 0
        %1807 = vmatprep.subr.bf16.mxu0 0
        %1808 = vmatpush1.bf16.msra.mxu0 0
        %1809 = vmatprep.mubr.bf16.mxu0 0
        %1810 = vmatmul.mubr.bf16.gmra.mrb[0].mxu0 %v759
        %v1811 = vpop.f32.mrb[0].mxu0
        %v1812 = vadd.f32 %v1356, %v1811
        %v1813 = vpop.f32.mrb[0].mxu0
        %v1814 = vpop.f32.mrb[0].mxu0
        %v1815 = vpop.f32.mrb[0].mxu0
        %1816 = vdwg.mxu0
        %v1825 = vunpack.c.l.b16 %v1305
        %v1826 = vunpack.c.l.b16 %v1306
        %v1827 = vunpack.c.l.b16 %v1307
        %v1828 = vunpack.c.l.b16 %v1308
        %v1829 = vunpack.c.l.b16 %v1309
        %v1830 = vunpack.c.l.b16 %v1310
        %v1831 = vunpack.c.l.b16 %v1311
        %v1832 = vunpack.c.l.b16 %v1312
        %v1833 = vpack.c.b16 %v1826, %v1825
        %v1834 = vpack.c.b16 %v1828, %v1827
        %v1835 = vpack.c.b16 %v1830, %v1829
        %v1836 = vpack.c.b16 %v1832, %v1831
        %1841 = vmatprep.subr.bf16.mxu0 0
        %1842 = vmatpush1.bf16.msra.mxu0 %v1833
        %1843 = vmatprep.subr.bf16.mxu0 0
        %1844 = vmatpush1.bf16.msra.mxu0 %v1834
        %1845 = vmatprep.subr.bf16.mxu0 0
        %1846 = vmatpush1.bf16.msra.mxu0 %v1835
        %1847 = vmatprep.subr.bf16.mxu0 0
        %1848 = vmatpush1.bf16.msra.mxu0 %v1836
        %1849 = vmatprep.subr.bf16.mxu0 0
        %1850 = vmatpush1.bf16.msra.mxu0 0
        %1851 = vmatprep.subr.bf16.mxu0 0
        %1852 = vmatpush1.bf16.msra.mxu0 0
        %1853 = vmatprep.subr.bf16.mxu0 0
        %1854 = vmatpush1.bf16.msra.mxu0 0
        %1855 = vmatprep.subr.bf16.mxu0 0
        %1856 = vmatpush1.bf16.msra.mxu0 0
        %1857 = vmatprep.subr.bf16.mxu0 0
        %1858 = vmatpush1.bf16.msra.mxu0 0
        %1859 = vmatprep.subr.bf16.mxu0 0
        %1860 = vmatpush1.bf16.msra.mxu0 0
        %1861 = vmatprep.subr.bf16.mxu0 0
        %1862 = vmatpush1.bf16.msra.mxu0 0
        %1863 = vmatprep.subr.bf16.mxu0 0
        %1864 = vmatpush1.bf16.msra.mxu0 0
        %1865 = vmatprep.subr.bf16.mxu0 0
        %1866 = vmatpush1.bf16.msra.mxu0 0
        %1867 = vmatprep.subr.bf16.mxu0 0
        %1868 = vmatpush1.bf16.msra.mxu0 0
        %1869 = vmatprep.subr.bf16.mxu0 0
        %1870 = vmatpush1.bf16.msra.mxu0 0
        %1871 = vmatprep.subr.bf16.mxu0 0
        %1872 = vmatpush1.bf16.msra.mxu0 0
        %1873 = vmatprep.mubr.bf16.mxu0 0
        %1874 = vmatmul.mubr.bf16.gmra.mrb[0].mxu0 %v759
        %v1875 = vpop.f32.mrb[0].mxu0
        %v1876 = vadd.f32 %v1360, %v1875
        %v1877 = vpop.f32.mrb[0].mxu0
        %v1878 = vpop.f32.mrb[0].mxu0
        %v1879 = vpop.f32.mrb[0].mxu0
        %1880 = vdwg.mxu0
        %v1881 = vld [vmem:[%s4] sm:$0xf]
        %v1882 = vld [vmem:[%s4 + $0x4] sm:$0xf]
        %v1883 = vld [vmem:[%s4 + $0x8] sm:$0xf]
        %v1884 = vld [vmem:[%s4 + $0xc] sm:$0xf]
        %v1885 = vld [vmem:[%s4 + $0x10] sm:$0xf]
        %v1886 = vld [vmem:[%s4 + $0x14] sm:$0xf]
        %v1887 = vld [vmem:[%s4 + $0x18] sm:$0xf]
        %v1888 = vld [vmem:[%s4 + $0x1c] sm:$0xf]
        %v1889 = vld [vmem:[%s4 + $0x20] sm:$0xf]
        %v1890 = vld [vmem:[%s4 + $0x24] sm:$0xf]
        %v1891 = vld [vmem:[%s4 + $0x28] sm:$0xf]
        %v1892 = vld [vmem:[%s4 + $0x2c] sm:$0xf]
        %v1893 = vld [vmem:[%s4 + $0x30] sm:$0xf]
        %v1894 = vld [vmem:[%s4 + $0x34] sm:$0xf]
        %v1895 = vld [vmem:[%s4 + $0x38] sm:$0xf]
        %v1896 = vld [vmem:[%s4 + $0x3c] sm:$0xf]
        %v1897 = vld [vmem:[%s4 + $0x40] sm:$0xf]
        %v1898 = vld [vmem:[%s4 + $0x44] sm:$0xf]
        %v1899 = vld [vmem:[%s4 + $0x48] sm:$0xf]
        %v1900 = vld [vmem:[%s4 + $0x4c] sm:$0xf]
        %v1901 = vld [vmem:[%s4 + $0x50] sm:$0xf]
        %v1902 = vld [vmem:[%s4 + $0x54] sm:$0xf]
        %v1903 = vld [vmem:[%s4 + $0x58] sm:$0xf]
        %v1904 = vld [vmem:[%s4 + $0x5c] sm:$0xf]
        %v1905 = vld [vmem:[%s4 + $0x60] sm:$0xf]
        %v1906 = vld [vmem:[%s4 + $0x64] sm:$0xf]
        %v1907 = vld [vmem:[%s4 + $0x68] sm:$0xf]
        %v1908 = vld [vmem:[%s4 + $0x6c] sm:$0xf]
        %v1909 = vld [vmem:[%s4 + $0x70] sm:$0xf]
        %v1910 = vld [vmem:[%s4 + $0x74] sm:$0xf]
        %v1911 = vld [vmem:[%s4 + $0x78] sm:$0xf]
        %v1912 = vld [vmem:[%s4 + $0x7c] sm:$0xf]
        %v1913 = vld [vmem:[%s4 + $0x80] sm:$0xf]
        %v1914 = vld [vmem:[%s4 + $0x84] sm:$0xf]
        %v1915 = vld [vmem:[%s4 + $0x88] sm:$0xf]
        %v1916 = vld [vmem:[%s4 + $0x8c] sm:$0xf]
        %v1917 = vld [vmem:[%s4 + $0x90] sm:$0xf]
        %v1918 = vld [vmem:[%s4 + $0x94] sm:$0xf]
        %v1919 = vld [vmem:[%s4 + $0x98] sm:$0xf]
        %v1920 = vld [vmem:[%s4 + $0x9c] sm:$0xf]
        %v1921 = vld [vmem:[%s4 + $0xa0] sm:$0xf]
        %v1922 = vld [vmem:[%s4 + $0xa4] sm:$0xf]
        %v1923 = vld [vmem:[%s4 + $0xa8] sm:$0xf]
        %v1924 = vld [vmem:[%s4 + $0xac] sm:$0xf]
        %v1925 = vld [vmem:[%s4 + $0xb0] sm:$0xf]
        %v1926 = vld [vmem:[%s4 + $0xb4] sm:$0xf]
        %v1927 = vld [vmem:[%s4 + $0xb8] sm:$0xf]
        %v1928 = vld [vmem:[%s4 + $0xbc] sm:$0xf]
        %v1929 = vld [vmem:[%s4 + $0xc0] sm:$0xf]
        %v1930 = vld [vmem:[%s4 + $0xc4] sm:$0xf]
        %v1931 = vld [vmem:[%s4 + $0xc8] sm:$0xf]
        %v1932 = vld [vmem:[%s4 + $0xcc] sm:$0xf]
        %v1933 = vld [vmem:[%s4 + $0xd0] sm:$0xf]
        %v1934 = vld [vmem:[%s4 + $0xd4] sm:$0xf]
        %v1935 = vld [vmem:[%s4 + $0xd8] sm:$0xf]
        %v1936 = vld [vmem:[%s4 + $0xdc] sm:$0xf]
        %v1937 = vld [vmem:[%s4 + $0xe0] sm:$0xf]
        %v1938 = vld [vmem:[%s4 + $0xe4] sm:$0xf]
        %v1939 = vld [vmem:[%s4 + $0xe8] sm:$0xf]
        %v1940 = vld [vmem:[%s4 + $0xec] sm:$0xf]
        %v1941 = vld [vmem:[%s4 + $0xf0] sm:$0xf]
        %v1942 = vld [vmem:[%s4 + $0xf4] sm:$0xf]
        %v1943 = vld [vmem:[%s4 + $0xf8] sm:$0xf]
        %v1944 = vld [vmem:[%s4 + $0xfc] sm:$0xf]
        %v1945 = vld [vmem:[%s7] sm:$0x1]
        %v1946 = vld [vmem:[%s7 + $0x1] sm:$0x1]
        %v1947 = vld [vmem:[%s7 + $0x2] sm:$0x1]
        %v1948 = vld [vmem:[%s7 + $0x3] sm:$0x1]
        %v1949 = vld [vmem:[%s7 + $0x4] sm:$0x1]
        %v1950 = vld [vmem:[%s7 + $0x5] sm:$0x1]
        %v1951 = vld [vmem:[%s7 + $0x6] sm:$0x1]
        %v1952 = vld [vmem:[%s7 + $0x7] sm:$0x1]
        %v1961 = vlaneseq
        %v1962 = vshrl.u32 %v1961, 7
        %v1963 = vsub.s32 0, %v1962
        %v1964 = vrot.slane %v1945, %v1963
        %v1965 = vlaneseq
        %v1966 = vshrl.u32 %v1965, 7
        %v1967 = vsub.s32 0, %v1966
        %v1968 = vrot.slane %v1946, %v1967
        %v1969 = vlaneseq
        %v1970 = vshrl.u32 %v1969, 7
        %v1971 = vsub.s32 0, %v1970
        %v1972 = vrot.slane %v1947, %v1971
        %v1973 = vlaneseq
        %v1974 = vshrl.u32 %v1973, 7
        %v1975 = vsub.s32 0, %v1974
        %v1976 = vrot.slane %v1948, %v1975
        %v1977 = vlaneseq
        %v1978 = vshrl.u32 %v1977, 7
        %v1979 = vsub.s32 0, %v1978
        %v1980 = vrot.slane %v1949, %v1979
        %v1981 = vlaneseq
        %v1982 = vshrl.u32 %v1981, 7
        %v1983 = vsub.s32 0, %v1982
        %v1984 = vrot.slane %v1950, %v1983
        %v1985 = vlaneseq
        %v1986 = vshrl.u32 %v1985, 7
        %v1987 = vsub.s32 0, %v1986
        %v1988 = vrot.slane %v1951, %v1987
        %v1989 = vlaneseq
        %v1990 = vshrl.u32 %v1989, 7
        %v1991 = vsub.s32 0, %v1990
        %v1992 = vrot.slane %v1952, %v1991
        %v2009 = vunpack.c.l.b16 %v1881
        %v2010 = vunpack.c.l.b16 %v1882
        %v2011 = vunpack.c.l.b16 %v1883
        %v2012 = vunpack.c.l.b16 %v1884
        %v2013 = vunpack.c.l.b16 %v1885
        %v2014 = vunpack.c.l.b16 %v1886
        %v2015 = vunpack.c.l.b16 %v1887
        %v2016 = vunpack.c.l.b16 %v1888
        %v2017 = vpack.c.b16 %v2010, %v2009
        %v2018 = vpack.c.b16 %v2012, %v2011
        %v2019 = vpack.c.b16 %v2014, %v2013
        %v2020 = vpack.c.b16 %v2016, %v2015
        %2025 = vmatprep.subr.bf16.mxu0 0
        %2026 = vmatpush1.bf16.msra.mxu0 %v2017
        %2027 = vmatprep.subr.bf16.mxu0 0
        %2028 = vmatpush1.bf16.msra.mxu0 %v2018
        %2029 = vmatprep.subr.bf16.mxu0 0
        %2030 = vmatpush1.bf16.msra.mxu0 %v2019
        %2031 = vmatprep.subr.bf16.mxu0 0
        %2032 = vmatpush1.bf16.msra.mxu0 %v2020
        %2033 = vmatprep.subr.bf16.mxu0 0
        %2034 = vmatpush1.bf16.msra.mxu0 0
        %2035 = vmatprep.subr.bf16.mxu0 0
        %2036 = vmatpush1.bf16.msra.mxu0 0
        %2037 = vmatprep.subr.bf16.mxu0 0
        %2038 = vmatpush1.bf16.msra.mxu0 0
        %2039 = vmatprep.subr.bf16.mxu0 0
        %2040 = vmatpush1.bf16.msra.mxu0 0
        %2041 = vmatprep.subr.bf16.mxu0 0
        %2042 = vmatpush1.bf16.msra.mxu0 0
        %2043 = vmatprep.subr.bf16.mxu0 0
        %2044 = vmatpush1.bf16.msra.mxu0 0
        %2045 = vmatprep.subr.bf16.mxu0 0
        %2046 = vmatpush1.bf16.msra.mxu0 0
        %2047 = vmatprep.subr.bf16.mxu0 0
        %2048 = vmatpush1.bf16.msra.mxu0 0
        %2049 = vmatprep.subr.bf16.mxu0 0
        %2050 = vmatpush1.bf16.msra.mxu0 0
        %2051 = vmatprep.subr.bf16.mxu0 0
        %2052 = vmatpush1.bf16.msra.mxu0 0
        %2053 = vmatprep.subr.bf16.mxu0 0
        %2054 = vmatpush1.bf16.msra.mxu0 0
        %2055 = vmatprep.subr.bf16.mxu0 0
        %2056 = vmatpush1.bf16.msra.mxu0 0
        %2057 = vmatprep.mubr.bf16.mxu0 0
        %2058 = vmatmul.mubr.bf16.gmra.mrb[0].mxu0 %v759
        %v2059 = vpop.f32.mrb[0].mxu0
        %v2060 = vadd.f32 %v1964, %v2059
        %v2061 = vpop.f32.mrb[0].mxu0
        %v2062 = vpop.f32.mrb[0].mxu0
        %v2063 = vpop.f32.mrb[0].mxu0
        %2064 = vdwg.mxu0
        %v2073 = vunpack.c.l.b16 %v1889
        %v2074 = vunpack.c.l.b16 %v1890
        %v2075 = vunpack.c.l.b16 %v1891
        %v2076 = vunpack.c.l.b16 %v1892
        %v2077 = vunpack.c.l.b16 %v1893
        %v2078 = vunpack.c.l.b16 %v1894
        %v2079 = vunpack.c.l.b16 %v1895
        %v2080 = vunpack.c.l.b16 %v1896
        %v2081 = vpack.c.b16 %v2074, %v2073
        %v2082 = vpack.c.b16 %v2076, %v2075
        %v2083 = vpack.c.b16 %v2078, %v2077
        %v2084 = vpack.c.b16 %v2080, %v2079
        %2089 = vmatprep.subr.bf16.mxu0 0
        %2090 = vmatpush1.bf16.msra.mxu0 %v2081
        %2091 = vmatprep.subr.bf16.mxu0 0
        %2092 = vmatpush1.bf16.msra.mxu0 %v2082
        %2093 = vmatprep.subr.bf16.mxu0 0
        %2094 = vmatpush1.bf16.msra.mxu0 %v2083
        %2095 = vmatprep.subr.bf16.mxu0 0
        %2096 = vmatpush1.bf16.msra.mxu0 %v2084
        %2097 = vmatprep.subr.bf16.mxu0 0
        %2098 = vmatpush1.bf16.msra.mxu0 0
        %2099 = vmatprep.subr.bf16.mxu0 0
        %2100 = vmatpush1.bf16.msra.mxu0 0
        %2101 = vmatprep.subr.bf16.mxu0 0
        %2102 = vmatpush1.bf16.msra.mxu0 0
        %2103 = vmatprep.subr.bf16.mxu0 0
        %2104 = vmatpush1.bf16.msra.mxu0 0
        %2105 = vmatprep.subr.bf16.mxu0 0
        %2106 = vmatpush1.bf16.msra.mxu0 0
        %2107 = vmatprep.subr.bf16.mxu0 0
        %2108 = vmatpush1.bf16.msra.mxu0 0
        %2109 = vmatprep.subr.bf16.mxu0 0
        %2110 = vmatpush1.bf16.msra.mxu0 0
        %2111 = vmatprep.subr.bf16.mxu0 0
        %2112 = vmatpush1.bf16.msra.mxu0 0
        %2113 = vmatprep.subr.bf16.mxu0 0
        %2114 = vmatpush1.bf16.msra.mxu0 0
        %2115 = vmatprep.subr.bf16.mxu0 0
        %2116 = vmatpush1.bf16.msra.mxu0 0
        %2117 = vmatprep.subr.bf16.mxu0 0
        %2118 = vmatpush1.bf16.msra.mxu0 0
        %2119 = vmatprep.subr.bf16.mxu0 0
        %2120 = vmatpush1.bf16.msra.mxu0 0
        %2121 = vmatprep.mubr.bf16.mxu0 0
        %2122 = vmatmul.mubr.bf16.gmra.mrb[0].mxu0 %v759
        %v2123 = vpop.f32.mrb[0].mxu0
        %v2124 = vadd.f32 %v1968, %v2123
        %v2125 = vpop.f32.mrb[0].mxu0
        %v2126 = vpop.f32.mrb[0].mxu0
        %v2127 = vpop.f32.mrb[0].mxu0
        %2128 = vdwg.mxu0
        %v2137 = vunpack.c.l.b16 %v1897
        %v2138 = vunpack.c.l.b16 %v1898
        %v2139 = vunpack.c.l.b16 %v1899
        %v2140 = vunpack.c.l.b16 %v1900
        %v2141 = vunpack.c.l.b16 %v1901
        %v2142 = vunpack.c.l.b16 %v1902
        %v2143 = vunpack.c.l.b16 %v1903
        %v2144 = vunpack.c.l.b16 %v1904
        %v2145 = vpack.c.b16 %v2138, %v2137
        %v2146 = vpack.c.b16 %v2140, %v2139
        %v2147 = vpack.c.b16 %v2142, %v2141
        %v2148 = vpack.c.b16 %v2144, %v2143
        %2153 = vmatprep.subr.bf16.mxu0 0
        %2154 = vmatpush1.bf16.msra.mxu0 %v2145
        %2155 = vmatprep.subr.bf16.mxu0 0
        %2156 = vmatpush1.bf16.msra.mxu0 %v2146
        %2157 = vmatprep.subr.bf16.mxu0 0
        %2158 = vmatpush1.bf16.msra.mxu0 %v2147
        %2159 = vmatprep.subr.bf16.mxu0 0
        %2160 = vmatpush1.bf16.msra.mxu0 %v2148
        %2161 = vmatprep.subr.bf16.mxu0 0
        %2162 = vmatpush1.bf16.msra.mxu0 0
        %2163 = vmatprep.subr.bf16.mxu0 0
        %2164 = vmatpush1.bf16.msra.mxu0 0
        %2165 = vmatprep.subr.bf16.mxu0 0
        %2166 = vmatpush1.bf16.msra.mxu0 0
        %2167 = vmatprep.subr.bf16.mxu0 0
        %2168 = vmatpush1.bf16.msra.mxu0 0
        %2169 = vmatprep.subr.bf16.mxu0 0
        %2170 = vmatpush1.bf16.msra.mxu0 0
        %2171 = vmatprep.subr.bf16.mxu0 0
        %2172 = vmatpush1.bf16.msra.mxu0 0
        %2173 = vmatprep.subr.bf16.mxu0 0
        %2174 = vmatpush1.bf16.msra.mxu0 0
        %2175 = vmatprep.subr.bf16.mxu0 0
        %2176 = vmatpush1.bf16.msra.mxu0 0
        %2177 = vmatprep.subr.bf16.mxu0 0
        %2178 = vmatpush1.bf16.msra.mxu0 0
        %2179 = vmatprep.subr.bf16.mxu0 0
        %2180 = vmatpush1.bf16.msra.mxu0 0
        %2181 = vmatprep.subr.bf16.mxu0 0
        %2182 = vmatpush1.bf16.msra.mxu0 0
        %2183 = vmatprep.subr.bf16.mxu0 0
        %2184 = vmatpush1.bf16.msra.mxu0 0
        %2185 = vmatprep.mubr.bf16.mxu0 0
        %2186 = vmatmul.mubr.bf16.gmra.mrb[0].mxu0 %v759
        %v2187 = vpop.f32.mrb[0].mxu0
        %v2188 = vadd.f32 %v1972, %v2187
        %v2189 = vpop.f32.mrb[0].mxu0
        %v2190 = vpop.f32.mrb[0].mxu0
        %v2191 = vpop.f32.mrb[0].mxu0
        %2192 = vdwg.mxu0
        %v2201 = vunpack.c.l.b16 %v1905
        %v2202 = vunpack.c.l.b16 %v1906
        %v2203 = vunpack.c.l.b16 %v1907
        %v2204 = vunpack.c.l.b16 %v1908
        %v2205 = vunpack.c.l.b16 %v1909
        %v2206 = vunpack.c.l.b16 %v1910
        %v2207 = vunpack.c.l.b16 %v1911
        %v2208 = vunpack.c.l.b16 %v1912
        %v2209 = vpack.c.b16 %v2202, %v2201
        %v2210 = vpack.c.b16 %v2204, %v2203
        %v2211 = vpack.c.b16 %v2206, %v2205
        %v2212 = vpack.c.b16 %v2208, %v2207
        %2217 = vmatprep.subr.bf16.mxu0 0
        %2218 = vmatpush1.bf16.msra.mxu0 %v2209
        %2219 = vmatprep.subr.bf16.mxu0 0
        %2220 = vmatpush1.bf16.msra.mxu0 %v2210
        %2221 = vmatprep.subr.bf16.mxu0 0
        %2222 = vmatpush1.bf16.msra.mxu0 %v2211
        %2223 = vmatprep.subr.bf16.mxu0 0
        %2224 = vmatpush1.bf16.msra.mxu0 %v2212
        %2225 = vmatprep.subr.bf16.mxu0 0
        %2226 = vmatpush1.bf16.msra.mxu0 0
        %2227 = vmatprep.subr.bf16.mxu0 0
        %2228 = vmatpush1.bf16.msra.mxu0 0
        %2229 = vmatprep.subr.bf16.mxu0 0
        %2230 = vmatpush1.bf16.msra.mxu0 0
        %2231 = vmatprep.subr.bf16.mxu0 0
        %2232 = vmatpush1.bf16.msra.mxu0 0
        %2233 = vmatprep.subr.bf16.mxu0 0
        %2234 = vmatpush1.bf16.msra.mxu0 0
        %2235 = vmatprep.subr.bf16.mxu0 0
        %2236 = vmatpush1.bf16.msra.mxu0 0
        %2237 = vmatprep.subr.bf16.mxu0 0
        %2238 = vmatpush1.bf16.msra.mxu0 0
        %2239 = vmatprep.subr.bf16.mxu0 0
        %2240 = vmatpush1.bf16.msra.mxu0 0
        %2241 = vmatprep.subr.bf16.mxu0 0
        %2242 = vmatpush1.bf16.msra.mxu0 0
        %2243 = vmatprep.subr.bf16.mxu0 0
        %2244 = vmatpush1.bf16.msra.mxu0 0
        %2245 = vmatprep.subr.bf16.mxu0 0
        %2246 = vmatpush1.bf16.msra.mxu0 0
        %2247 = vmatprep.subr.bf16.mxu0 0
        %2248 = vmatpush1.bf16.msra.mxu0 0
        %2249 = vmatprep.mubr.bf16.mxu0 0
        %2250 = vmatmul.mubr.bf16.gmra.mrb[0].mxu0 %v759
        %v2251 = vpop.f32.mrb[0].mxu0
        %v2252 = vadd.f32 %v1976, %v2251
        %v2253 = vpop.f32.mrb[0].mxu0
        %v2254 = vpop.f32.mrb[0].mxu0
        %v2255 = vpop.f32.mrb[0].mxu0
        %2256 = vdwg.mxu0
        %v2265 = vunpack.c.l.b16 %v1913
        %v2266 = vunpack.c.l.b16 %v1914
        %v2267 = vunpack.c.l.b16 %v1915
        %v2268 = vunpack.c.l.b16 %v1916
        %v2269 = vunpack.c.l.b16 %v1917
        %v2270 = vunpack.c.l.b16 %v1918
        %v2271 = vunpack.c.l.b16 %v1919
        %v2272 = vunpack.c.l.b16 %v1920
        %v2273 = vpack.c.b16 %v2266, %v2265
        %v2274 = vpack.c.b16 %v2268, %v2267
        %v2275 = vpack.c.b16 %v2270, %v2269
        %v2276 = vpack.c.b16 %v2272, %v2271
        %2281 = vmatprep.subr.bf16.mxu0 0
        %2282 = vmatpush1.bf16.msra.mxu0 %v2273
        %2283 = vmatprep.subr.bf16.mxu0 0
        %2284 = vmatpush1.bf16.msra.mxu0 %v2274
        %2285 = vmatprep.subr.bf16.mxu0 0
        %2286 = vmatpush1.bf16.msra.mxu0 %v2275
        %2287 = vmatprep.subr.bf16.mxu0 0
        %2288 = vmatpush1.bf16.msra.mxu0 %v2276
        %2289 = vmatprep.subr.bf16.mxu0 0
        %2290 = vmatpush1.bf16.msra.mxu0 0
        %2291 = vmatprep.subr.bf16.mxu0 0
        %2292 = vmatpush1.bf16.msra.mxu0 0
        %2293 = vmatprep.subr.bf16.mxu0 0
        %2294 = vmatpush1.bf16.msra.mxu0 0
        %2295 = vmatprep.subr.bf16.mxu0 0
        %2296 = vmatpush1.bf16.msra.mxu0 0
        %2297 = vmatprep.subr.bf16.mxu0 0
        %2298 = vmatpush1.bf16.msra.mxu0 0
        %2299 = vmatprep.subr.bf16.mxu0 0
        %2300 = vmatpush1.bf16.msra.mxu0 0
        %2301 = vmatprep.subr.bf16.mxu0 0
        %2302 = vmatpush1.bf16.msra.mxu0 0
        %2303 = vmatprep.subr.bf16.mxu0 0
        %2304 = vmatpush1.bf16.msra.mxu0 0
        %2305 = vmatprep.subr.bf16.mxu0 0
        %2306 = vmatpush1.bf16.msra.mxu0 0
        %2307 = vmatprep.subr.bf16.mxu0 0
        %2308 = vmatpush1.bf16.msra.mxu0 0
        %2309 = vmatprep.subr.bf16.mxu0 0
        %2310 = vmatpush1.bf16.msra.mxu0 0
        %2311 = vmatprep.subr.bf16.mxu0 0
        %2312 = vmatpush1.bf16.msra.mxu0 0
        %2313 = vmatprep.mubr.bf16.mxu0 0
        %2314 = vmatmul.mubr.bf16.gmra.mrb[0].mxu0 %v759
        %v2315 = vpop.f32.mrb[0].mxu0
        %v2316 = vadd.f32 %v1980, %v2315
        %v2317 = vpop.f32.mrb[0].mxu0
        %v2318 = vpop.f32.mrb[0].mxu0
        %v2319 = vpop.f32.mrb[0].mxu0
        %2320 = vdwg.mxu0
        %v2329 = vunpack.c.l.b16 %v1921
        %v2330 = vunpack.c.l.b16 %v1922
        %v2331 = vunpack.c.l.b16 %v1923
        %v2332 = vunpack.c.l.b16 %v1924
        %v2333 = vunpack.c.l.b16 %v1925
        %v2334 = vunpack.c.l.b16 %v1926
        %v2335 = vunpack.c.l.b16 %v1927
        %v2336 = vunpack.c.l.b16 %v1928
        %v2337 = vpack.c.b16 %v2330, %v2329
        %v2338 = vpack.c.b16 %v2332, %v2331
        %v2339 = vpack.c.b16 %v2334, %v2333
        %v2340 = vpack.c.b16 %v2336, %v2335
        %2345 = vmatprep.subr.bf16.mxu0 0
        %2346 = vmatpush1.bf16.msra.mxu0 %v2337
        %2347 = vmatprep.subr.bf16.mxu0 0
        %2348 = vmatpush1.bf16.msra.mxu0 %v2338
        %2349 = vmatprep.subr.bf16.mxu0 0
        %2350 = vmatpush1.bf16.msra.mxu0 %v2339
        %2351 = vmatprep.subr.bf16.mxu0 0
        %2352 = vmatpush1.bf16.msra.mxu0 %v2340
        %2353 = vmatprep.subr.bf16.mxu0 0
        %2354 = vmatpush1.bf16.msra.mxu0 0
        %2355 = vmatprep.subr.bf16.mxu0 0
        %2356 = vmatpush1.bf16.msra.mxu0 0
        %2357 = vmatprep.subr.bf16.mxu0 0
        %2358 = vmatpush1.bf16.msra.mxu0 0
        %2359 = vmatprep.subr.bf16.mxu0 0
        %2360 = vmatpush1.bf16.msra.mxu0 0
        %2361 = vmatprep.subr.bf16.mxu0 0
        %2362 = vmatpush1.bf16.msra.mxu0 0
        %2363 = vmatprep.subr.bf16.mxu0 0
        %2364 = vmatpush1.bf16.msra.mxu0 0
        %2365 = vmatprep.subr.bf16.mxu0 0
        %2366 = vmatpush1.bf16.msra.mxu0 0
        %2367 = vmatprep.subr.bf16.mxu0 0
        %2368 = vmatpush1.bf16.msra.mxu0 0
        %2369 = vmatprep.subr.bf16.mxu0 0
        %2370 = vmatpush1.bf16.msra.mxu0 0
        %2371 = vmatprep.subr.bf16.mxu0 0
        %2372 = vmatpush1.bf16.msra.mxu0 0
        %2373 = vmatprep.subr.bf16.mxu0 0
        %2374 = vmatpush1.bf16.msra.mxu0 0
        %2375 = vmatprep.subr.bf16.mxu0 0
        %2376 = vmatpush1.bf16.msra.mxu0 0
        %2377 = vmatprep.mubr.bf16.mxu0 0
        %2378 = vmatmul.mubr.bf16.gmra.mrb[0].mxu0 %v759
        %v2379 = vpop.f32.mrb[0].mxu0
        %v2380 = vadd.f32 %v1984, %v2379
        %v2381 = vpop.f32.mrb[0].mxu0
        %v2382 = vpop.f32.mrb[0].mxu0
        %v2383 = vpop.f32.mrb[0].mxu0
        %2384 = vdwg.mxu0
        %v2393 = vunpack.c.l.b16 %v1929
        %v2394 = vunpack.c.l.b16 %v1930
        %v2395 = vunpack.c.l.b16 %v1931
        %v2396 = vunpack.c.l.b16 %v1932
        %v2397 = vunpack.c.l.b16 %v1933
        %v2398 = vunpack.c.l.b16 %v1934
        %v2399 = vunpack.c.l.b16 %v1935
        %v2400 = vunpack.c.l.b16 %v1936
        %v2401 = vpack.c.b16 %v2394, %v2393
        %v2402 = vpack.c.b16 %v2396, %v2395
        %v2403 = vpack.c.b16 %v2398, %v2397
        %v2404 = vpack.c.b16 %v2400, %v2399
        %2409 = vmatprep.subr.bf16.mxu0 0
        %2410 = vmatpush1.bf16.msra.mxu0 %v2401
        %2411 = vmatprep.subr.bf16.mxu0 0
        %2412 = vmatpush1.bf16.msra.mxu0 %v2402
        %2413 = vmatprep.subr.bf16.mxu0 0
        %2414 = vmatpush1.bf16.msra.mxu0 %v2403
        %2415 = vmatprep.subr.bf16.mxu0 0
        %2416 = vmatpush1.bf16.msra.mxu0 %v2404
        %2417 = vmatprep.subr.bf16.mxu0 0
        %2418 = vmatpush1.bf16.msra.mxu0 0
        %2419 = vmatprep.subr.bf16.mxu0 0
        %2420 = vmatpush1.bf16.msra.mxu0 0
        %2421 = vmatprep.subr.bf16.mxu0 0
        %2422 = vmatpush1.bf16.msra.mxu0 0
        %2423 = vmatprep.subr.bf16.mxu0 0
        %2424 = vmatpush1.bf16.msra.mxu0 0
        %2425 = vmatprep.subr.bf16.mxu0 0
        %2426 = vmatpush1.bf16.msra.mxu0 0
        %2427 = vmatprep.subr.bf16.mxu0 0
        %2428 = vmatpush1.bf16.msra.mxu0 0
        %2429 = vmatprep.subr.bf16.mxu0 0
        %2430 = vmatpush1.bf16.msra.mxu0 0
        %2431 = vmatprep.subr.bf16.mxu0 0
        %2432 = vmatpush1.bf16.msra.mxu0 0
        %2433 = vmatprep.subr.bf16.mxu0 0
        %2434 = vmatpush1.bf16.msra.mxu0 0
        %2435 = vmatprep.subr.bf16.mxu0 0
        %2436 = vmatpush1.bf16.msra.mxu0 0
        %2437 = vmatprep.subr.bf16.mxu0 0
        %2438 = vmatpush1.bf16.msra.mxu0 0
        %2439 = vmatprep.subr.bf16.mxu0 0
        %2440 = vmatpush1.bf16.msra.mxu0 0
        %2441 = vmatprep.mubr.bf16.mxu0 0
        %2442 = vmatmul.mubr.bf16.gmra.mrb[0].mxu0 %v759
        %v2443 = vpop.f32.mrb[0].mxu0
        %v2444 = vadd.f32 %v1988, %v2443
        %v2445 = vpop.f32.mrb[0].mxu0
        %v2446 = vpop.f32.mrb[0].mxu0
        %v2447 = vpop.f32.mrb[0].mxu0
        %2448 = vdwg.mxu0
        %v2457 = vunpack.c.l.b16 %v1937
        %v2458 = vunpack.c.l.b16 %v1938
        %v2459 = vunpack.c.l.b16 %v1939
        %v2460 = vunpack.c.l.b16 %v1940
        %v2461 = vunpack.c.l.b16 %v1941
        %v2462 = vunpack.c.l.b16 %v1942
        %v2463 = vunpack.c.l.b16 %v1943
        %v2464 = vunpack.c.l.b16 %v1944
        %v2465 = vpack.c.b16 %v2458, %v2457
        %v2466 = vpack.c.b16 %v2460, %v2459
        %v2467 = vpack.c.b16 %v2462, %v2461
        %v2468 = vpack.c.b16 %v2464, %v2463
        %2473 = vmatprep.subr.bf16.mxu0 0
        %2474 = vmatpush1.bf16.msra.mxu0 %v2465
        %2475 = vmatprep.subr.bf16.mxu0 0
        %2476 = vmatpush1.bf16.msra.mxu0 %v2466
        %2477 = vmatprep.subr.bf16.mxu0 0
        %2478 = vmatpush1.bf16.msra.mxu0 %v2467
        %2479 = vmatprep.subr.bf16.mxu0 0
        %2480 = vmatpush1.bf16.msra.mxu0 %v2468
        %2481 = vmatprep.subr.bf16.mxu0 0
        %2482 = vmatpush1.bf16.msra.mxu0 0
        %2483 = vmatprep.subr.bf16.mxu0 0
        %2484 = vmatpush1.bf16.msra.mxu0 0
        %2485 = vmatprep.subr.bf16.mxu0 0
        %2486 = vmatpush1.bf16.msra.mxu0 0
        %2487 = vmatprep.subr.bf16.mxu0 0
        %2488 = vmatpush1.bf16.msra.mxu0 0
        %2489 = vmatprep.subr.bf16.mxu0 0
        %2490 = vmatpush1.bf16.msra.mxu0 0
        %2491 = vmatprep.subr.bf16.mxu0 0
        %2492 = vmatpush1.bf16.msra.mxu0 0
        %2493 = vmatprep.subr.bf16.mxu0 0
        %2494 = vmatpush1.bf16.msra.mxu0 0
        %2495 = vmatprep.subr.bf16.mxu0 0
        %2496 = vmatpush1.bf16.msra.mxu0 0
        %2497 = vmatprep.subr.bf16.mxu0 0
        %2498 = vmatpush1.bf16.msra.mxu0 0
        %2499 = vmatprep.subr.bf16.mxu0 0
        %2500 = vmatpush1.bf16.msra.mxu0 0
        %2501 = vmatprep.subr.bf16.mxu0 0
        %2502 = vmatpush1.bf16.msra.mxu0 0
        %2503 = vmatprep.subr.bf16.mxu0 0
        %2504 = vmatpush1.bf16.msra.mxu0 0
        %2505 = vmatprep.mubr.bf16.mxu0 0
        %2506 = vmatmul.mubr.bf16.gmra.mrb[0].mxu0 %v759
        %v2507 = vpop.f32.mrb[0].mxu0
        %v2508 = vadd.f32 %v1992, %v2507
        %v2509 = vpop.f32.mrb[0].mxu0
        %v2510 = vpop.f32.mrb[0].mxu0
        %v2511 = vpop.f32.mrb[0].mxu0
        %2512 = vdwg.mxu0
        %vm2513 = vcmask 64512
        %v2515 = vsel %vm2513, %v796, 0
        %v2518 = vsel %vm2513, %v1428, 0
        %2520 = vmatprep.subr.mxu0 0.0
        %2521 = vmatpush1.xpose.msra.mxu0 %v2518
        %2522 = vmatprep.subr.mxu0 0.0
        %2523 = vmatpush1.xpose.msra.mxu0 0.0
        %2524 = vmatprep.subr.mxu0 0.0
        %2525 = vmatpush1.xpose.msra.mxu0 0.0
        %2526 = vmatprep.subr.mxu0 0.0
        %2527 = vmatpush1.xpose.msra.mxu0 0.0
        %2528 = vmatprep.subr.mxu0 0.0
        %2529 = vmatpush1.xpose.msra.mxu0 0.0
        %2530 = vmatprep.subr.mxu0 0.0
        %2531 = vmatpush1.xpose.msra.mxu0 0.0
        %2532 = vmatprep.subr.mxu0 0.0
        %2533 = vmatpush1.xpose.msra.mxu0 0.0
        %2534 = vmatprep.subr.mxu0 0.0
        %2535 = vmatpush1.xpose.msra.mxu0 0.0
        %2536 = vmatprep.subr.mxu0 0.0
        %2537 = vmatpush1.xpose.msra.mxu0 0.0
        %2538 = vmatprep.subr.mxu0 0.0
        %2539 = vmatpush1.xpose.msra.mxu0 0.0
        %2540 = vmatprep.subr.mxu0 0.0
        %2541 = vmatpush1.xpose.msra.mxu0 0.0
        %2542 = vmatprep.subr.mxu0 0.0
        %2543 = vmatpush1.xpose.msra.mxu0 0.0
        %2544 = vmatprep.subr.mxu0 0.0
        %2545 = vmatpush1.xpose.msra.mxu0 0.0
        %2546 = vmatprep.subr.mxu0 0.0
        %2547 = vmatpush1.xpose.msra.mxu0 0.0
        %2548 = vmatprep.subr.mxu0 0.0
        %2549 = vmatpush1.xpose.msra.mxu0 0.0
        %2550 = vmatprep.subr.mxu0 0.0
        %2551 = vmatpush1.xpose.msra.mxu0 0.0
        %2552 = vmatprep.subr.mxu0 0.0
        %2553 = vmatpush1.xpose.msra.mxu0 0.0
        %2554 = vmatprep.subr.mxu0 0.0
        %2555 = vmatpush1.xpose.msra.mxu0 0.0
        %2556 = vmatprep.subr.mxu0 0.0
        %2557 = vmatpush1.xpose.msra.mxu0 0.0
        %2558 = vmatprep.subr.mxu0 0.0
        %2559 = vmatpush1.xpose.msra.mxu0 0.0
        %2560 = vmatprep.subr.mxu0 0.0
        %2561 = vmatpush1.xpose.msra.mxu0 0.0
        %2562 = vmatprep.subr.mxu0 0.0
        %2563 = vmatpush1.xpose.msra.mxu0 0.0
        %2564 = vmatprep.subr.mxu0 0.0
        %2565 = vmatpush1.xpose.msra.mxu0 0.0
        %2566 = vmatprep.subr.mxu0 0.0
        %2567 = vmatpush1.xpose.msra.mxu0 0.0
        %2568 = vmatprep.subr.mxu0 0.0
        %2569 = vmatpush1.xpose.msra.mxu0 0.0
        %2570 = vmatprep.subr.mxu0 0.0
        %2571 = vmatpush1.xpose.msra.mxu0 0.0
        %2572 = vmatprep.subr.mxu0 0.0
        %2573 = vmatpush1.xpose.msra.mxu0 0.0
        %2574 = vmatprep.subr.mxu0 0.0
        %2575 = vmatpush1.xpose.msra.mxu0 0.0
        %2576 = vmatprep.subr.mxu0 0.0
        %2577 = vmatpush1.xpose.msra.mxu0 0.0
        %2578 = vmatprep.subr.mxu0 0.0
        %2579 = vmatpush1.xpose.msra.mxu0 0.0
        %2580 = vmatprep.subr.mxu0 0.0
        %2581 = vmatpush1.xpose.msra.mxu0 0.0
        %2582 = vmatprep.subr.mxu0 0.0
        %2583 = vmatpush1.xpose.msra.mxu0 0.0
        %2584 = vmatprep.mubr.f32.mxu0 0.0
        %2585 = vmatmul.mubr.f32.gmra.mrb[0].mxu0 %v2515
        %v2586 = vpop.f32.mrb[0].mxu0
        %v2587 = vadd.f32 0.0, %v2586
        %v2588 = vpop.f32.mrb[0].mxu0
        %2589 = vdwg.mxu0
        %v2591 = vsel %vm2513, %v860, 0
        %v2594 = vsel %vm2513, %v1492, 0
        %2596 = vmatprep.subr.mxu0 0.0
        %2597 = vmatpush1.xpose.msra.mxu0 %v2594
        %2598 = vmatprep.subr.mxu0 0.0
        %2599 = vmatpush1.xpose.msra.mxu0 0.0
        %2600 = vmatprep.subr.mxu0 0.0
        %2601 = vmatpush1.xpose.msra.mxu0 0.0
        %2602 = vmatprep.subr.mxu0 0.0
        %2603 = vmatpush1.xpose.msra.mxu0 0.0
        %2604 = vmatprep.subr.mxu0 0.0
        %2605 = vmatpush1.xpose.msra.mxu0 0.0
        %2606 = vmatprep.subr.mxu0 0.0
        %2607 = vmatpush1.xpose.msra.mxu0 0.0
        %2608 = vmatprep.subr.mxu0 0.0
        %2609 = vmatpush1.xpose.msra.mxu0 0.0
        %2610 = vmatprep.subr.mxu0 0.0
        %2611 = vmatpush1.xpose.msra.mxu0 0.0
        %2612 = vmatprep.subr.mxu0 0.0
        %2613 = vmatpush1.xpose.msra.mxu0 0.0
        %2614 = vmatprep.subr.mxu0 0.0
        %2615 = vmatpush1.xpose.msra.mxu0 0.0
        %2616 = vmatprep.subr.mxu0 0.0
        %2617 = vmatpush1.xpose.msra.mxu0 0.0
        %2618 = vmatprep.subr.mxu0 0.0
        %2619 = vmatpush1.xpose.msra.mxu0 0.0
        %2620 = vmatprep.subr.mxu0 0.0
        %2621 = vmatpush1.xpose.msra.mxu0 0.0
        %2622 = vmatprep.subr.mxu0 0.0
        %2623 = vmatpush1.xpose.msra.mxu0 0.0
        %2624 = vmatprep.subr.mxu0 0.0
        %2625 = vmatpush1.xpose.msra.mxu0 0.0
        %2626 = vmatprep.subr.mxu0 0.0
        %2627 = vmatpush1.xpose.msra.mxu0 0.0
        %2628 = vmatprep.subr.mxu0 0.0
        %2629 = vmatpush1.xpose.msra.mxu0 0.0
        %2630 = vmatprep.subr.mxu0 0.0
        %2631 = vmatpush1.xpose.msra.mxu0 0.0
        %2632 = vmatprep.subr.mxu0 0.0
        %2633 = vmatpush1.xpose.msra.mxu0 0.0
        %2634 = vmatprep.subr.mxu0 0.0
        %2635 = vmatpush1.xpose.msra.mxu0 0.0
        %2636 = vmatprep.subr.mxu0 0.0
        %2637 = vmatpush1.xpose.msra.mxu0 0.0
        %2638 = vmatprep.subr.mxu0 0.0
        %2639 = vmatpush1.xpose.msra.mxu0 0.0
        %2640 = vmatprep.subr.mxu0 0.0
        %2641 = vmatpush1.xpose.msra.mxu0 0.0
        %2642 = vmatprep.subr.mxu0 0.0
        %2643 = vmatpush1.xpose.msra.mxu0 0.0
        %2644 = vmatprep.subr.mxu0 0.0
        %2645 = vmatpush1.xpose.msra.mxu0 0.0
        %2646 = vmatprep.subr.mxu0 0.0
        %2647 = vmatpush1.xpose.msra.mxu0 0.0
        %2648 = vmatprep.subr.mxu0 0.0
        %2649 = vmatpush1.xpose.msra.mxu0 0.0
        %2650 = vmatprep.subr.mxu0 0.0
        %2651 = vmatpush1.xpose.msra.mxu0 0.0
        %2652 = vmatprep.subr.mxu0 0.0
        %2653 = vmatpush1.xpose.msra.mxu0 0.0
        %2654 = vmatprep.subr.mxu0 0.0
        %2655 = vmatpush1.xpose.msra.mxu0 0.0
        %2656 = vmatprep.subr.mxu0 0.0
        %2657 = vmatpush1.xpose.msra.mxu0 0.0
        %2658 = vmatprep.subr.mxu0 0.0
        %2659 = vmatpush1.xpose.msra.mxu0 0.0
        %2660 = vmatprep.mubr.f32.mxu0 0.0
        %2661 = vmatmul.mubr.f32.gmra.mrb[0].mxu0 %v2591
        %v2662 = vpop.f32.mrb[0].mxu0
        %v2663 = vadd.f32 0.0, %v2662
        %v2664 = vpop.f32.mrb[0].mxu0
        %2665 = vdwg.mxu0
        %v2667 = vsel %vm2513, %v924, 0
        %v2670 = vsel %vm2513, %v1556, 0
        %2672 = vmatprep.subr.mxu0 0.0
        %2673 = vmatpush1.xpose.msra.mxu0 %v2670
        %2674 = vmatprep.subr.mxu0 0.0
        %2675 = vmatpush1.xpose.msra.mxu0 0.0
        %2676 = vmatprep.subr.mxu0 0.0
        %2677 = vmatpush1.xpose.msra.mxu0 0.0
        %2678 = vmatprep.subr.mxu0 0.0
        %2679 = vmatpush1.xpose.msra.mxu0 0.0
        %2680 = vmatprep.subr.mxu0 0.0
        %2681 = vmatpush1.xpose.msra.mxu0 0.0
        %2682 = vmatprep.subr.mxu0 0.0
        %2683 = vmatpush1.xpose.msra.mxu0 0.0
        %2684 = vmatprep.subr.mxu0 0.0
        %2685 = vmatpush1.xpose.msra.mxu0 0.0
        %2686 = vmatprep.subr.mxu0 0.0
        %2687 = vmatpush1.xpose.msra.mxu0 0.0
        %2688 = vmatprep.subr.mxu0 0.0
        %2689 = vmatpush1.xpose.msra.mxu0 0.0
        %2690 = vmatprep.subr.mxu0 0.0
        %2691 = vmatpush1.xpose.msra.mxu0 0.0
        %2692 = vmatprep.subr.mxu0 0.0
        %2693 = vmatpush1.xpose.msra.mxu0 0.0
        %2694 = vmatprep.subr.mxu0 0.0
        %2695 = vmatpush1.xpose.msra.mxu0 0.0
        %2696 = vmatprep.subr.mxu0 0.0
        %2697 = vmatpush1.xpose.msra.mxu0 0.0
        %2698 = vmatprep.subr.mxu0 0.0
        %2699 = vmatpush1.xpose.msra.mxu0 0.0
        %2700 = vmatprep.subr.mxu0 0.0
        %2701 = vmatpush1.xpose.msra.mxu0 0.0
        %2702 = vmatprep.subr.mxu0 0.0
        %2703 = vmatpush1.xpose.msra.mxu0 0.0
        %2704 = vmatprep.subr.mxu0 0.0
        %2705 = vmatpush1.xpose.msra.mxu0 0.0
        %2706 = vmatprep.subr.mxu0 0.0
        %2707 = vmatpush1.xpose.msra.mxu0 0.0
        %2708 = vmatprep.subr.mxu0 0.0
        %2709 = vmatpush1.xpose.msra.mxu0 0.0
        %2710 = vmatprep.subr.mxu0 0.0
        %2711 = vmatpush1.xpose.msra.mxu0 0.0
        %2712 = vmatprep.subr.mxu0 0.0
        %2713 = vmatpush1.xpose.msra.mxu0 0.0
        %2714 = vmatprep.subr.mxu0 0.0
        %2715 = vmatpush1.xpose.msra.mxu0 0.0
        %2716 = vmatprep.subr.mxu0 0.0
        %2717 = vmatpush1.xpose.msra.mxu0 0.0
        %2718 = vmatprep.subr.mxu0 0.0
        %2719 = vmatpush1.xpose.msra.mxu0 0.0
        %2720 = vmatprep.subr.mxu0 0.0
        %2721 = vmatpush1.xpose.msra.mxu0 0.0
        %2722 = vmatprep.subr.mxu0 0.0
        %2723 = vmatpush1.xpose.msra.mxu0 0.0
        %2724 = vmatprep.subr.mxu0 0.0
        %2725 = vmatpush1.xpose.msra.mxu0 0.0
        %2726 = vmatprep.subr.mxu0 0.0
        %2727 = vmatpush1.xpose.msra.mxu0 0.0
        %2728 = vmatprep.subr.mxu0 0.0
        %2729 = vmatpush1.xpose.msra.mxu0 0.0
        %2730 = vmatprep.subr.mxu0 0.0
        %2731 = vmatpush1.xpose.msra.mxu0 0.0
        %2732 = vmatprep.subr.mxu0 0.0
        %2733 = vmatpush1.xpose.msra.mxu0 0.0
        %2734 = vmatprep.subr.mxu0 0.0
        %2735 = vmatpush1.xpose.msra.mxu0 0.0
        %2736 = vmatprep.mubr.f32.mxu0 0.0
        %2737 = vmatmul.mubr.f32.gmra.mrb[0].mxu0 %v2667
        %v2738 = vpop.f32.mrb[0].mxu0
        %v2739 = vadd.f32 0.0, %v2738
        %v2740 = vpop.f32.mrb[0].mxu0
        %2741 = vdwg.mxu0
        %v2743 = vsel %vm2513, %v988, 0
        %v2746 = vsel %vm2513, %v1620, 0
        %2748 = vmatprep.subr.mxu0 0.0
        %2749 = vmatpush1.xpose.msra.mxu0 %v2746
        %2750 = vmatprep.subr.mxu0 0.0
        %2751 = vmatpush1.xpose.msra.mxu0 0.0
        %2752 = vmatprep.subr.mxu0 0.0
        %2753 = vmatpush1.xpose.msra.mxu0 0.0
        %2754 = vmatprep.subr.mxu0 0.0
        %2755 = vmatpush1.xpose.msra.mxu0 0.0
        %2756 = vmatprep.subr.mxu0 0.0
        %2757 = vmatpush1.xpose.msra.mxu0 0.0
        %2758 = vmatprep.subr.mxu0 0.0
        %2759 = vmatpush1.xpose.msra.mxu0 0.0
        %2760 = vmatprep.subr.mxu0 0.0
        %2761 = vmatpush1.xpose.msra.mxu0 0.0
        %2762 = vmatprep.subr.mxu0 0.0
        %2763 = vmatpush1.xpose.msra.mxu0 0.0
        %2764 = vmatprep.subr.mxu0 0.0
        %2765 = vmatpush1.xpose.msra.mxu0 0.0
        %2766 = vmatprep.subr.mxu0 0.0
        %2767 = vmatpush1.xpose.msra.mxu0 0.0
        %2768 = vmatprep.subr.mxu0 0.0
        %2769 = vmatpush1.xpose.msra.mxu0 0.0
        %2770 = vmatprep.subr.mxu0 0.0
        %2771 = vmatpush1.xpose.msra.mxu0 0.0
        %2772 = vmatprep.subr.mxu0 0.0
        %2773 = vmatpush1.xpose.msra.mxu0 0.0
        %2774 = vmatprep.subr.mxu0 0.0
        %2775 = vmatpush1.xpose.msra.mxu0 0.0
        %2776 = vmatprep.subr.mxu0 0.0
        %2777 = vmatpush1.xpose.msra.mxu0 0.0
        %2778 = vmatprep.subr.mxu0 0.0
        %2779 = vmatpush1.xpose.msra.mxu0 0.0
        %2780 = vmatprep.subr.mxu0 0.0
        %2781 = vmatpush1.xpose.msra.mxu0 0.0
        %2782 = vmatprep.subr.mxu0 0.0
        %2783 = vmatpush1.xpose.msra.mxu0 0.0
        %2784 = vmatprep.subr.mxu0 0.0
        %2785 = vmatpush1.xpose.msra.mxu0 0.0
        %2786 = vmatprep.subr.mxu0 0.0
        %2787 = vmatpush1.xpose.msra.mxu0 0.0
        %2788 = vmatprep.subr.mxu0 0.0
        %2789 = vmatpush1.xpose.msra.mxu0 0.0
        %2790 = vmatprep.subr.mxu0 0.0
        %2791 = vmatpush1.xpose.msra.mxu0 0.0
        %2792 = vmatprep.subr.mxu0 0.0
        %2793 = vmatpush1.xpose.msra.mxu0 0.0
        %2794 = vmatprep.subr.mxu0 0.0
        %2795 = vmatpush1.xpose.msra.mxu0 0.0
        %2796 = vmatprep.subr.mxu0 0.0
        %2797 = vmatpush1.xpose.msra.mxu0 0.0
        %2798 = vmatprep.subr.mxu0 0.0
        %2799 = vmatpush1.xpose.msra.mxu0 0.0
        %2800 = vmatprep.subr.mxu0 0.0
        %2801 = vmatpush1.xpose.msra.mxu0 0.0
        %2802 = vmatprep.subr.mxu0 0.0
        %2803 = vmatpush1.xpose.msra.mxu0 0.0
        %2804 = vmatprep.subr.mxu0 0.0
        %2805 = vmatpush1.xpose.msra.mxu0 0.0
        %2806 = vmatprep.subr.mxu0 0.0
        %2807 = vmatpush1.xpose.msra.mxu0 0.0
        %2808 = vmatprep.subr.mxu0 0.0
        %2809 = vmatpush1.xpose.msra.mxu0 0.0
        %2810 = vmatprep.subr.mxu0 0.0
        %2811 = vmatpush1.xpose.msra.mxu0 0.0
        %2812 = vmatprep.mubr.f32.mxu0 0.0
        %2813 = vmatmul.mubr.f32.gmra.mrb[0].mxu0 %v2743
        %v2814 = vpop.f32.mrb[0].mxu0
        %v2815 = vadd.f32 0.0, %v2814
        %v2816 = vpop.f32.mrb[0].mxu0
        %2817 = vdwg.mxu0
        %v2819 = vsel %vm2513, %v1052, 0
        %v2822 = vsel %vm2513, %v1684, 0
        %2824 = vmatprep.subr.mxu0 0.0
        %2825 = vmatpush1.xpose.msra.mxu0 %v2822
        %2826 = vmatprep.subr.mxu0 0.0
        %2827 = vmatpush1.xpose.msra.mxu0 0.0
        %2828 = vmatprep.subr.mxu0 0.0
        %2829 = vmatpush1.xpose.msra.mxu0 0.0
        %2830 = vmatprep.subr.mxu0 0.0
        %2831 = vmatpush1.xpose.msra.mxu0 0.0
        %2832 = vmatprep.subr.mxu0 0.0
        %2833 = vmatpush1.xpose.msra.mxu0 0.0
        %2834 = vmatprep.subr.mxu0 0.0
        %2835 = vmatpush1.xpose.msra.mxu0 0.0
        %2836 = vmatprep.subr.mxu0 0.0
        %2837 = vmatpush1.xpose.msra.mxu0 0.0
        %2838 = vmatprep.subr.mxu0 0.0
        %2839 = vmatpush1.xpose.msra.mxu0 0.0
        %2840 = vmatprep.subr.mxu0 0.0
        %2841 = vmatpush1.xpose.msra.mxu0 0.0
        %2842 = vmatprep.subr.mxu0 0.0
        %2843 = vmatpush1.xpose.msra.mxu0 0.0
        %2844 = vmatprep.subr.mxu0 0.0
        %2845 = vmatpush1.xpose.msra.mxu0 0.0
        %2846 = vmatprep.subr.mxu0 0.0
        %2847 = vmatpush1.xpose.msra.mxu0 0.0
        %2848 = vmatprep.subr.mxu0 0.0
        %2849 = vmatpush1.xpose.msra.mxu0 0.0
        %2850 = vmatprep.subr.mxu0 0.0
        %2851 = vmatpush1.xpose.msra.mxu0 0.0
        %2852 = vmatprep.subr.mxu0 0.0
        %2853 = vmatpush1.xpose.msra.mxu0 0.0
        %2854 = vmatprep.subr.mxu0 0.0
        %2855 = vmatpush1.xpose.msra.mxu0 0.0
        %2856 = vmatprep.subr.mxu0 0.0
        %2857 = vmatpush1.xpose.msra.mxu0 0.0
        %2858 = vmatprep.subr.mxu0 0.0
        %2859 = vmatpush1.xpose.msra.mxu0 0.0
        %2860 = vmatprep.subr.mxu0 0.0
        %2861 = vmatpush1.xpose.msra.mxu0 0.0
        %2862 = vmatprep.subr.mxu0 0.0
        %2863 = vmatpush1.xpose.msra.mxu0 0.0
        %2864 = vmatprep.subr.mxu0 0.0
        %2865 = vmatpush1.xpose.msra.mxu0 0.0
        %2866 = vmatprep.subr.mxu0 0.0
        %2867 = vmatpush1.xpose.msra.mxu0 0.0
        %2868 = vmatprep.subr.mxu0 0.0
        %2869 = vmatpush1.xpose.msra.mxu0 0.0
        %2870 = vmatprep.subr.mxu0 0.0
        %2871 = vmatpush1.xpose.msra.mxu0 0.0
        %2872 = vmatprep.subr.mxu0 0.0
        %2873 = vmatpush1.xpose.msra.mxu0 0.0
        %2874 = vmatprep.subr.mxu0 0.0
        %2875 = vmatpush1.xpose.msra.mxu0 0.0
        %2876 = vmatprep.subr.mxu0 0.0
        %2877 = vmatpush1.xpose.msra.mxu0 0.0
        %2878 = vmatprep.subr.mxu0 0.0
        %2879 = vmatpush1.xpose.msra.mxu0 0.0
        %2880 = vmatprep.subr.mxu0 0.0
        %2881 = vmatpush1.xpose.msra.mxu0 0.0
        %2882 = vmatprep.subr.mxu0 0.0
        %2883 = vmatpush1.xpose.msra.mxu0 0.0
        %2884 = vmatprep.subr.mxu0 0.0
        %2885 = vmatpush1.xpose.msra.mxu0 0.0
        %2886 = vmatprep.subr.mxu0 0.0
        %2887 = vmatpush1.xpose.msra.mxu0 0.0
        %2888 = vmatprep.mubr.f32.mxu0 0.0
        %2889 = vmatmul.mubr.f32.gmra.mrb[0].mxu0 %v2819
        %v2890 = vpop.f32.mrb[0].mxu0
        %v2891 = vadd.f32 0.0, %v2890
        %v2892 = vpop.f32.mrb[0].mxu0
        %2893 = vdwg.mxu0
        %v2895 = vsel %vm2513, %v1116, 0
        %v2898 = vsel %vm2513, %v1748, 0
        %2900 = vmatprep.subr.mxu0 0.0
        %2901 = vmatpush1.xpose.msra.mxu0 %v2898
        %2902 = vmatprep.subr.mxu0 0.0
        %2903 = vmatpush1.xpose.msra.mxu0 0.0
        %2904 = vmatprep.subr.mxu0 0.0
        %2905 = vmatpush1.xpose.msra.mxu0 0.0
        %2906 = vmatprep.subr.mxu0 0.0
        %2907 = vmatpush1.xpose.msra.mxu0 0.0
        %2908 = vmatprep.subr.mxu0 0.0
        %2909 = vmatpush1.xpose.msra.mxu0 0.0
        %2910 = vmatprep.subr.mxu0 0.0
        %2911 = vmatpush1.xpose.msra.mxu0 0.0
        %2912 = vmatprep.subr.mxu0 0.0
        %2913 = vmatpush1.xpose.msra.mxu0 0.0
        %2914 = vmatprep.subr.mxu0 0.0
        %2915 = vmatpush1.xpose.msra.mxu0 0.0
        %2916 = vmatprep.subr.mxu0 0.0
        %2917 = vmatpush1.xpose.msra.mxu0 0.0
        %2918 = vmatprep.subr.mxu0 0.0
        %2919 = vmatpush1.xpose.msra.mxu0 0.0
        %2920 = vmatprep.subr.mxu0 0.0
        %2921 = vmatpush1.xpose.msra.mxu0 0.0
        %2922 = vmatprep.subr.mxu0 0.0
        %2923 = vmatpush1.xpose.msra.mxu0 0.0
        %2924 = vmatprep.subr.mxu0 0.0
        %2925 = vmatpush1.xpose.msra.mxu0 0.0
        %2926 = vmatprep.subr.mxu0 0.0
        %2927 = vmatpush1.xpose.msra.mxu0 0.0
        %2928 = vmatprep.subr.mxu0 0.0
        %2929 = vmatpush1.xpose.msra.mxu0 0.0
        %2930 = vmatprep.subr.mxu0 0.0
        %2931 = vmatpush1.xpose.msra.mxu0 0.0
        %2932 = vmatprep.subr.mxu0 0.0
        %2933 = vmatpush1.xpose.msra.mxu0 0.0
        %2934 = vmatprep.subr.mxu0 0.0
        %2935 = vmatpush1.xpose.msra.mxu0 0.0
        %2936 = vmatprep.subr.mxu0 0.0
        %2937 = vmatpush1.xpose.msra.mxu0 0.0
        %2938 = vmatprep.subr.mxu0 0.0
        %2939 = vmatpush1.xpose.msra.mxu0 0.0
        %2940 = vmatprep.subr.mxu0 0.0
        %2941 = vmatpush1.xpose.msra.mxu0 0.0
        %2942 = vmatprep.subr.mxu0 0.0
        %2943 = vmatpush1.xpose.msra.mxu0 0.0
        %2944 = vmatprep.subr.mxu0 0.0
        %2945 = vmatpush1.xpose.msra.mxu0 0.0
        %2946 = vmatprep.subr.mxu0 0.0
        %2947 = vmatpush1.xpose.msra.mxu0 0.0
        %2948 = vmatprep.subr.mxu0 0.0
        %2949 = vmatpush1.xpose.msra.mxu0 0.0
        %2950 = vmatprep.subr.mxu0 0.0
        %2951 = vmatpush1.xpose.msra.mxu0 0.0
        %2952 = vmatprep.subr.mxu0 0.0
        %2953 = vmatpush1.xpose.msra.mxu0 0.0
        %2954 = vmatprep.subr.mxu0 0.0
        %2955 = vmatpush1.xpose.msra.mxu0 0.0
        %2956 = vmatprep.subr.mxu0 0.0
        %2957 = vmatpush1.xpose.msra.mxu0 0.0
        %2958 = vmatprep.subr.mxu0 0.0
        %2959 = vmatpush1.xpose.msra.mxu0 0.0
        %2960 = vmatprep.subr.mxu0 0.0
        %2961 = vmatpush1.xpose.msra.mxu0 0.0
        %2962 = vmatprep.subr.mxu0 0.0
        %2963 = vmatpush1.xpose.msra.mxu0 0.0
        %2964 = vmatprep.mubr.f32.mxu0 0.0
        %2965 = vmatmul.mubr.f32.gmra.mrb[0].mxu0 %v2895
        %v2966 = vpop.f32.mrb[0].mxu0
        %v2967 = vadd.f32 0.0, %v2966
        %v2968 = vpop.f32.mrb[0].mxu0
        %2969 = vdwg.mxu0
        %v2971 = vsel %vm2513, %v1180, 0
        %v2974 = vsel %vm2513, %v1812, 0
        %2976 = vmatprep.subr.mxu0 0.0
        %2977 = vmatpush1.xpose.msra.mxu0 %v2974
        %2978 = vmatprep.subr.mxu0 0.0
        %2979 = vmatpush1.xpose.msra.mxu0 0.0
        %2980 = vmatprep.subr.mxu0 0.0
        %2981 = vmatpush1.xpose.msra.mxu0 0.0
        %2982 = vmatprep.subr.mxu0 0.0
        %2983 = vmatpush1.xpose.msra.mxu0 0.0
        %2984 = vmatprep.subr.mxu0 0.0
        %2985 = vmatpush1.xpose.msra.mxu0 0.0
        %2986 = vmatprep.subr.mxu0 0.0
        %2987 = vmatpush1.xpose.msra.mxu0 0.0
        %2988 = vmatprep.subr.mxu0 0.0
        %2989 = vmatpush1.xpose.msra.mxu0 0.0
        %2990 = vmatprep.subr.mxu0 0.0
        %2991 = vmatpush1.xpose.msra.mxu0 0.0
        %2992 = vmatprep.subr.mxu0 0.0
        %2993 = vmatpush1.xpose.msra.mxu0 0.0
        %2994 = vmatprep.subr.mxu0 0.0
        %2995 = vmatpush1.xpose.msra.mxu0 0.0
        %2996 = vmatprep.subr.mxu0 0.0
        %2997 = vmatpush1.xpose.msra.mxu0 0.0
        %2998 = vmatprep.subr.mxu0 0.0
        %2999 = vmatpush1.xpose.msra.mxu0 0.0
        %3000 = vmatprep.subr.mxu0 0.0
        %3001 = vmatpush1.xpose.msra.mxu0 0.0
        %3002 = vmatprep.subr.mxu0 0.0
        %3003 = vmatpush1.xpose.msra.mxu0 0.0
        %3004 = vmatprep.subr.mxu0 0.0
        %3005 = vmatpush1.xpose.msra.mxu0 0.0
        %3006 = vmatprep.subr.mxu0 0.0
        %3007 = vmatpush1.xpose.msra.mxu0 0.0
        %3008 = vmatprep.subr.mxu0 0.0
        %3009 = vmatpush1.xpose.msra.mxu0 0.0
        %3010 = vmatprep.subr.mxu0 0.0
        %3011 = vmatpush1.xpose.msra.mxu0 0.0
        %3012 = vmatprep.subr.mxu0 0.0
        %3013 = vmatpush1.xpose.msra.mxu0 0.0
        %3014 = vmatprep.subr.mxu0 0.0
        %3015 = vmatpush1.xpose.msra.mxu0 0.0
        %3016 = vmatprep.subr.mxu0 0.0
        %3017 = vmatpush1.xpose.msra.mxu0 0.0
        %3018 = vmatprep.subr.mxu0 0.0
        %3019 = vmatpush1.xpose.msra.mxu0 0.0
        %3020 = vmatprep.subr.mxu0 0.0
        %3021 = vmatpush1.xpose.msra.mxu0 0.0
        %3022 = vmatprep.subr.mxu0 0.0
        %3023 = vmatpush1.xpose.msra.mxu0 0.0
        %3024 = vmatprep.subr.mxu0 0.0
        %3025 = vmatpush1.xpose.msra.mxu0 0.0
        %3026 = vmatprep.subr.mxu0 0.0
        %3027 = vmatpush1.xpose.msra.mxu0 0.0
        %3028 = vmatprep.subr.mxu0 0.0
        %3029 = vmatpush1.xpose.msra.mxu0 0.0
        %3030 = vmatprep.subr.mxu0 0.0
        %3031 = vmatpush1.xpose.msra.mxu0 0.0
        %3032 = vmatprep.subr.mxu0 0.0
        %3033 = vmatpush1.xpose.msra.mxu0 0.0
        %3034 = vmatprep.subr.mxu0 0.0
        %3035 = vmatpush1.xpose.msra.mxu0 0.0
        %3036 = vmatprep.subr.mxu0 0.0
        %3037 = vmatpush1.xpose.msra.mxu0 0.0
        %3038 = vmatprep.subr.mxu0 0.0
        %3039 = vmatpush1.xpose.msra.mxu0 0.0
        %3040 = vmatprep.mubr.f32.mxu0 0.0
        %3041 = vmatmul.mubr.f32.gmra.mrb[0].mxu0 %v2971
        %v3042 = vpop.f32.mrb[0].mxu0
        %v3043 = vadd.f32 0.0, %v3042
        %v3044 = vpop.f32.mrb[0].mxu0
        %3045 = vdwg.mxu0
        %v3047 = vsel %vm2513, %v1244, 0
        %v3050 = vsel %vm2513, %v1876, 0
        %3052 = vmatprep.subr.mxu0 0.0
        %3053 = vmatpush1.xpose.msra.mxu0 %v3050
        %3054 = vmatprep.subr.mxu0 0.0
        %3055 = vmatpush1.xpose.msra.mxu0 0.0
        %3056 = vmatprep.subr.mxu0 0.0
        %3057 = vmatpush1.xpose.msra.mxu0 0.0
        %3058 = vmatprep.subr.mxu0 0.0
        %3059 = vmatpush1.xpose.msra.mxu0 0.0
        %3060 = vmatprep.subr.mxu0 0.0
        %3061 = vmatpush1.xpose.msra.mxu0 0.0
        %3062 = vmatprep.subr.mxu0 0.0
        %3063 = vmatpush1.xpose.msra.mxu0 0.0
        %3064 = vmatprep.subr.mxu0 0.0
        %3065 = vmatpush1.xpose.msra.mxu0 0.0
        %3066 = vmatprep.subr.mxu0 0.0
        %3067 = vmatpush1.xpose.msra.mxu0 0.0
        %3068 = vmatprep.subr.mxu0 0.0
        %3069 = vmatpush1.xpose.msra.mxu0 0.0
        %3070 = vmatprep.subr.mxu0 0.0
        %3071 = vmatpush1.xpose.msra.mxu0 0.0
        %3072 = vmatprep.subr.mxu0 0.0
        %3073 = vmatpush1.xpose.msra.mxu0 0.0
        %3074 = vmatprep.subr.mxu0 0.0
        %3075 = vmatpush1.xpose.msra.mxu0 0.0
        %3076 = vmatprep.subr.mxu0 0.0
        %3077 = vmatpush1.xpose.msra.mxu0 0.0
        %3078 = vmatprep.subr.mxu0 0.0
        %3079 = vmatpush1.xpose.msra.mxu0 0.0
        %3080 = vmatprep.subr.mxu0 0.0
        %3081 = vmatpush1.xpose.msra.mxu0 0.0
        %3082 = vmatprep.subr.mxu0 0.0
        %3083 = vmatpush1.xpose.msra.mxu0 0.0
        %3084 = vmatprep.subr.mxu0 0.0
        %3085 = vmatpush1.xpose.msra.mxu0 0.0
        %3086 = vmatprep.subr.mxu0 0.0
        %3087 = vmatpush1.xpose.msra.mxu0 0.0
        %3088 = vmatprep.subr.mxu0 0.0
        %3089 = vmatpush1.xpose.msra.mxu0 0.0
        %3090 = vmatprep.subr.mxu0 0.0
        %3091 = vmatpush1.xpose.msra.mxu0 0.0
        %3092 = vmatprep.subr.mxu0 0.0
        %3093 = vmatpush1.xpose.msra.mxu0 0.0
        %3094 = vmatprep.subr.mxu0 0.0
        %3095 = vmatpush1.xpose.msra.mxu0 0.0
        %3096 = vmatprep.subr.mxu0 0.0
        %3097 = vmatpush1.xpose.msra.mxu0 0.0
        %3098 = vmatprep.subr.mxu0 0.0
        %3099 = vmatpush1.xpose.msra.mxu0 0.0
        %3100 = vmatprep.subr.mxu0 0.0
        %3101 = vmatpush1.xpose.msra.mxu0 0.0
        %3102 = vmatprep.subr.mxu0 0.0
        %3103 = vmatpush1.xpose.msra.mxu0 0.0
        %3104 = vmatprep.subr.mxu0 0.0
        %3105 = vmatpush1.xpose.msra.mxu0 0.0
        %3106 = vmatprep.subr.mxu0 0.0
        %3107 = vmatpush1.xpose.msra.mxu0 0.0
        %3108 = vmatprep.subr.mxu0 0.0
        %3109 = vmatpush1.xpose.msra.mxu0 0.0
        %3110 = vmatprep.subr.mxu0 0.0
        %3111 = vmatpush1.xpose.msra.mxu0 0.0
        %3112 = vmatprep.subr.mxu0 0.0
        %3113 = vmatpush1.xpose.msra.mxu0 0.0
        %3114 = vmatprep.subr.mxu0 0.0
        %3115 = vmatpush1.xpose.msra.mxu0 0.0
        %3116 = vmatprep.mubr.f32.mxu0 0.0
        %3117 = vmatmul.mubr.f32.gmra.mrb[0].mxu0 %v3047
        %v3118 = vpop.f32.mrb[0].mxu0
        %v3119 = vadd.f32 0.0, %v3118
        %v3120 = vpop.f32.mrb[0].mxu0
        %3121 = vdwg.mxu0
        %v3122 = vsel %vm2513, %v2587, -inf
        %3123 = vmax.xlane.f32.xlu0 %v3122
        %v3124 = vpop.xlane.xlu0 %3123
        %v3125 = vsel %vm2513, %v2663, -inf
        %3126 = vmax.xlane.f32.xlu0 %v3125
        %v3127 = vpop.xlane.xlu0 %3126
        %v3128 = vsel %vm2513, %v2739, -inf
        %3129 = vmax.xlane.f32.xlu0 %v3128
        %v3130 = vpop.xlane.xlu0 %3129
        %v3131 = vsel %vm2513, %v2815, -inf
        %3132 = vmax.xlane.f32.xlu0 %v3131
        %v3133 = vpop.xlane.xlu0 %3132
        %v3134 = vsel %vm2513, %v2891, -inf
        %3135 = vmax.xlane.f32.xlu0 %v3134
        %v3136 = vpop.xlane.xlu0 %3135
        %v3137 = vsel %vm2513, %v2967, -inf
        %3138 = vmax.xlane.f32.xlu0 %v3137
        %v3139 = vpop.xlane.xlu0 %3138
        %v3140 = vsel %vm2513, %v3043, -inf
        %3141 = vmax.xlane.f32.xlu0 %v3140
        %v3142 = vpop.xlane.xlu0 %3141
        %v3143 = vsel %vm2513, %v3119, -inf
        %3144 = vmax.xlane.f32.xlu0 %v3143
        %v3145 = vpop.xlane.xlu0 %3144
        %v3146 = vsub.f32 %v2587, %v3124
        %v3147 = vsub.f32 %v2663, %v3127
        %v3148 = vsub.f32 %v2739, %v3130
        %v3149 = vsub.f32 %v2815, %v3133
        %v3150 = vsub.f32 %v2891, %v3136
        %v3151 = vsub.f32 %v2967, %v3139
        %v3152 = vsub.f32 %v3043, %v3142
        %v3153 = vsub.f32 %v3119, %v3145
        %v3154 = vmul.f32 %v3146, 1.442695
        %v3155 = vpow.pop %v3154
        %v3156 = vmul.f32 %v3147, 1.442695
        %v3157 = vpow.pop %v3156
        %v3158 = vmul.f32 %v3148, 1.442695
        %v3159 = vpow.pop %v3158
        %v3160 = vmul.f32 %v3149, 1.442695
        %v3161 = vpow.pop %v3160
        %v3162 = vmul.f32 %v3150, 1.442695
        %v3163 = vpow.pop %v3162
        %v3164 = vmul.f32 %v3151, 1.442695
        %v3165 = vpow.pop %v3164
        %v3166 = vmul.f32 %v3152, 1.442695
        %v3167 = vpow.pop %v3166
        %v3168 = vmul.f32 %v3153, 1.442695
        %v3169 = vpow.pop %v3168
        %v3170 = vsel %vm2513, %v3155, 0.0
        %3171 = vadd.xlane.f32.xlu0 %v3170
        %v3172 = vpop.xlane.xlu0 %3171
        %v3173 = vsel %vm2513, %v3157, 0.0
        %3174 = vadd.xlane.f32.xlu0 %v3173
        %v3175 = vpop.xlane.xlu0 %3174
        %v3176 = vsel %vm2513, %v3159, 0.0
        %3177 = vadd.xlane.f32.xlu0 %v3176
        %v3178 = vpop.xlane.xlu0 %3177
        %v3179 = vsel %vm2513, %v3161, 0.0
        %3180 = vadd.xlane.f32.xlu0 %v3179
        %v3181 = vpop.xlane.xlu0 %3180
        %v3182 = vsel %vm2513, %v3163, 0.0
        %3183 = vadd.xlane.f32.xlu0 %v3182
        %v3184 = vpop.xlane.xlu0 %3183
        %v3185 = vsel %vm2513, %v3165, 0.0
        %3186 = vadd.xlane.f32.xlu0 %v3185
        %v3187 = vpop.xlane.xlu0 %3186
        %v3188 = vsel %vm2513, %v3167, 0.0
        %3189 = vadd.xlane.f32.xlu0 %v3188
        %v3190 = vpop.xlane.xlu0 %3189
        %v3191 = vsel %vm2513, %v3169, 0.0
        %3192 = vadd.xlane.f32.xlu0 %v3191
        %v3193 = vpop.xlane.xlu0 %3192
        %v3194 = vrcp.pop %v3172
        %v3195 = vrcp.pop %v3175
        %v3196 = vrcp.pop %v3178
        %v3197 = vrcp.pop %v3181
        %v3198 = vrcp.pop %v3184
        %v3199 = vrcp.pop %v3187
        %v3200 = vrcp.pop %v3190
        %v3201 = vrcp.pop %v3193
        %v3202 = vmul.f32 %v3155, %v3194
        %v3203 = vmul.f32 %v3157, %v3195
        %v3204 = vmul.f32 %v3159, %v3196
        %v3205 = vmul.f32 %v3161, %v3197
        %v3206 = vmul.f32 %v3163, %v3198
        %v3207 = vmul.f32 %v3165, %v3199
        %v3208 = vmul.f32 %v3167, %v3200
        %v3209 = vmul.f32 %v3169, %v3201
        %v3211 = vsel %vm2513, %v3202, 0
        %3213 = vmatprep.subr.mxu0 0.0
        %3214 = vmatpush1.msra.mxu0 %v2060
        %3215 = vmatprep.subr.mxu0 0.0
        %3216 = vmatpush1.msra.mxu0 0.0
        %3217 = vmatprep.subr.mxu0 0.0
        %3218 = vmatpush1.msra.mxu0 0.0
        %3219 = vmatprep.subr.mxu0 0.0
        %3220 = vmatpush1.msra.mxu0 0.0
        %3221 = vmatprep.subr.mxu0 0.0
        %3222 = vmatpush1.msra.mxu0 0.0
        %3223 = vmatprep.subr.mxu0 0.0
        %3224 = vmatpush1.msra.mxu0 0.0
        %3225 = vmatprep.subr.mxu0 0.0
        %3226 = vmatpush1.msra.mxu0 0.0
        %3227 = vmatprep.subr.mxu0 0.0
        %3228 = vmatpush1.msra.mxu0 0.0
        %3229 = vmatprep.subr.mxu0 0.0
        %3230 = vmatpush1.msra.mxu0 0.0
        %3231 = vmatprep.subr.mxu0 0.0
        %3232 = vmatpush1.msra.mxu0 0.0
        %3233 = vmatprep.subr.mxu0 0.0
        %3234 = vmatpush1.msra.mxu0 0.0
        %3235 = vmatprep.subr.mxu0 0.0
        %3236 = vmatpush1.msra.mxu0 0.0
        %3237 = vmatprep.subr.mxu0 0.0
        %3238 = vmatpush1.msra.mxu0 0.0
        %3239 = vmatprep.subr.mxu0 0.0
        %3240 = vmatpush1.msra.mxu0 0.0
        %3241 = vmatprep.subr.mxu0 0.0
        %3242 = vmatpush1.msra.mxu0 0.0
        %3243 = vmatprep.subr.mxu0 0.0
        %3244 = vmatpush1.msra.mxu0 0.0
        %3245 = vmatprep.subr.mxu0 0.0
        %3246 = vmatpush1.msra.mxu0 0.0
        %3247 = vmatprep.subr.mxu0 0.0
        %3248 = vmatpush1.msra.mxu0 0.0
        %3249 = vmatprep.subr.mxu0 0.0
        %3250 = vmatpush1.msra.mxu0 0.0
        %3251 = vmatprep.subr.mxu0 0.0
        %3252 = vmatpush1.msra.mxu0 0.0
        %3253 = vmatprep.subr.mxu0 0.0
        %3254 = vmatpush1.msra.mxu0 0.0
        %3255 = vmatprep.subr.mxu0 0.0
        %3256 = vmatpush1.msra.mxu0 0.0
        %3257 = vmatprep.subr.mxu0 0.0
        %3258 = vmatpush1.msra.mxu0 0.0
        %3259 = vmatprep.subr.mxu0 0.0
        %3260 = vmatpush1.msra.mxu0 0.0
        %3261 = vmatprep.subr.mxu0 0.0
        %3262 = vmatpush1.msra.mxu0 0.0
        %3263 = vmatprep.subr.mxu0 0.0
        %3264 = vmatpush1.msra.mxu0 0.0
        %3265 = vmatprep.subr.mxu0 0.0
        %3266 = vmatpush1.msra.mxu0 0.0
        %3267 = vmatprep.subr.mxu0 0.0
        %3268 = vmatpush1.msra.mxu0 0.0
        %3269 = vmatprep.subr.mxu0 0.0
        %3270 = vmatpush1.msra.mxu0 0.0
        %3271 = vmatprep.subr.mxu0 0.0
        %3272 = vmatpush1.msra.mxu0 0.0
        %3273 = vmatprep.subr.mxu0 0.0
        %3274 = vmatpush1.msra.mxu0 0.0
        %3275 = vmatprep.subr.mxu0 0.0
        %3276 = vmatpush1.msra.mxu0 0.0
        %3277 = vmatprep.mubr.f32.mxu0 0.0
        %3278 = vmatmul.mubr.f32.gmra.mrb[0].mxu0 %v3211
        %v3279 = vpop.f32.mrb[0].mxu0
        %v3280 = vadd.f32 0.0, %v3279
        %v3281 = vpop.f32.mrb[0].mxu0
        %3282 = vdwg.mxu0
        %v3284 = vsel %vm2513, %v3203, 0
        %3286 = vmatprep.subr.mxu0 0.0
        %3287 = vmatpush1.msra.mxu0 %v2124
        %3288 = vmatprep.subr.mxu0 0.0
        %3289 = vmatpush1.msra.mxu0 0.0
        %3290 = vmatprep.subr.mxu0 0.0
        %3291 = vmatpush1.msra.mxu0 0.0
        %3292 = vmatprep.subr.mxu0 0.0
        %3293 = vmatpush1.msra.mxu0 0.0
        %3294 = vmatprep.subr.mxu0 0.0
        %3295 = vmatpush1.msra.mxu0 0.0
        %3296 = vmatprep.subr.mxu0 0.0
        %3297 = vmatpush1.msra.mxu0 0.0
        %3298 = vmatprep.subr.mxu0 0.0
        %3299 = vmatpush1.msra.mxu0 0.0
        %3300 = vmatprep.subr.mxu0 0.0
        %3301 = vmatpush1.msra.mxu0 0.0
        %3302 = vmatprep.subr.mxu0 0.0
        %3303 = vmatpush1.msra.mxu0 0.0
        %3304 = vmatprep.subr.mxu0 0.0
        %3305 = vmatpush1.msra.mxu0 0.0
        %3306 = vmatprep.subr.mxu0 0.0
        %3307 = vmatpush1.msra.mxu0 0.0
        %3308 = vmatprep.subr.mxu0 0.0
        %3309 = vmatpush1.msra.mxu0 0.0
        %3310 = vmatprep.subr.mxu0 0.0
        %3311 = vmatpush1.msra.mxu0 0.0
        %3312 = vmatprep.subr.mxu0 0.0
        %3313 = vmatpush1.msra.mxu0 0.0
        %3314 = vmatprep.subr.mxu0 0.0
        %3315 = vmatpush1.msra.mxu0 0.0
        %3316 = vmatprep.subr.mxu0 0.0
        %3317 = vmatpush1.msra.mxu0 0.0
        %3318 = vmatprep.subr.mxu0 0.0
        %3319 = vmatpush1.msra.mxu0 0.0
        %3320 = vmatprep.subr.mxu0 0.0
        %3321 = vmatpush1.msra.mxu0 0.0
        %3322 = vmatprep.subr.mxu0 0.0
        %3323 = vmatpush1.msra.mxu0 0.0
        %3324 = vmatprep.subr.mxu0 0.0
        %3325 = vmatpush1.msra.mxu0 0.0
        %3326 = vmatprep.subr.mxu0 0.0
        %3327 = vmatpush1.msra.mxu0 0.0
        %3328 = vmatprep.subr.mxu0 0.0
        %3329 = vmatpush1.msra.mxu0 0.0
        %3330 = vmatprep.subr.mxu0 0.0
        %3331 = vmatpush1.msra.mxu0 0.0
        %3332 = vmatprep.subr.mxu0 0.0
        %3333 = vmatpush1.msra.mxu0 0.0
        %3334 = vmatprep.subr.mxu0 0.0
        %3335 = vmatpush1.msra.mxu0 0.0
        %3336 = vmatprep.subr.mxu0 0.0
        %3337 = vmatpush1.msra.mxu0 0.0
        %3338 = vmatprep.subr.mxu0 0.0
        %3339 = vmatpush1.msra.mxu0 0.0
        %3340 = vmatprep.subr.mxu0 0.0
        %3341 = vmatpush1.msra.mxu0 0.0
        %3342 = vmatprep.subr.mxu0 0.0
        %3343 = vmatpush1.msra.mxu0 0.0
        %3344 = vmatprep.subr.mxu0 0.0
        %3345 = vmatpush1.msra.mxu0 0.0
        %3346 = vmatprep.subr.mxu0 0.0
        %3347 = vmatpush1.msra.mxu0 0.0
        %3348 = vmatprep.subr.mxu0 0.0
        %3349 = vmatpush1.msra.mxu0 0.0
        %3350 = vmatprep.mubr.f32.mxu0 0.0
        %3351 = vmatmul.mubr.f32.gmra.mrb[0].mxu0 %v3284
        %v3352 = vpop.f32.mrb[0].mxu0
        %v3353 = vadd.f32 0.0, %v3352
        %v3354 = vpop.f32.mrb[0].mxu0
        %3355 = vdwg.mxu0
        %v3357 = vsel %vm2513, %v3204, 0
        %3359 = vmatprep.subr.mxu0 0.0
        %3360 = vmatpush1.msra.mxu0 %v2188
        %3361 = vmatprep.subr.mxu0 0.0
        %3362 = vmatpush1.msra.mxu0 0.0
        %3363 = vmatprep.subr.mxu0 0.0
        %3364 = vmatpush1.msra.mxu0 0.0
        %3365 = vmatprep.subr.mxu0 0.0
        %3366 = vmatpush1.msra.mxu0 0.0
        %3367 = vmatprep.subr.mxu0 0.0
        %3368 = vmatpush1.msra.mxu0 0.0
        %3369 = vmatprep.subr.mxu0 0.0
        %3370 = vmatpush1.msra.mxu0 0.0
        %3371 = vmatprep.subr.mxu0 0.0
        %3372 = vmatpush1.msra.mxu0 0.0
        %3373 = vmatprep.subr.mxu0 0.0
        %3374 = vmatpush1.msra.mxu0 0.0
        %3375 = vmatprep.subr.mxu0 0.0
        %3376 = vmatpush1.msra.mxu0 0.0
        %3377 = vmatprep.subr.mxu0 0.0
        %3378 = vmatpush1.msra.mxu0 0.0
        %3379 = vmatprep.subr.mxu0 0.0
        %3380 = vmatpush1.msra.mxu0 0.0
        %3381 = vmatprep.subr.mxu0 0.0
        %3382 = vmatpush1.msra.mxu0 0.0
        %3383 = vmatprep.subr.mxu0 0.0
        %3384 = vmatpush1.msra.mxu0 0.0
        %3385 = vmatprep.subr.mxu0 0.0
        %3386 = vmatpush1.msra.mxu0 0.0
        %3387 = vmatprep.subr.mxu0 0.0
        %3388 = vmatpush1.msra.mxu0 0.0
        %3389 = vmatprep.subr.mxu0 0.0
        %3390 = vmatpush1.msra.mxu0 0.0
        %3391 = vmatprep.subr.mxu0 0.0
        %3392 = vmatpush1.msra.mxu0 0.0
        %3393 = vmatprep.subr.mxu0 0.0
        %3394 = vmatpush1.msra.mxu0 0.0
        %3395 = vmatprep.subr.mxu0 0.0
        %3396 = vmatpush1.msra.mxu0 0.0
        %3397 = vmatprep.subr.mxu0 0.0
        %3398 = vmatpush1.msra.mxu0 0.0
        %3399 = vmatprep.subr.mxu0 0.0
        %3400 = vmatpush1.msra.mxu0 0.0
        %3401 = vmatprep.subr.mxu0 0.0
        %3402 = vmatpush1.msra.mxu0 0.0
        %3403 = vmatprep.subr.mxu0 0.0
        %3404 = vmatpush1.msra.mxu0 0.0
        %3405 = vmatprep.subr.mxu0 0.0
        %3406 = vmatpush1.msra.mxu0 0.0
        %3407 = vmatprep.subr.mxu0 0.0
        %3408 = vmatpush1.msra.mxu0 0.0
        %3409 = vmatprep.subr.mxu0 0.0
        %3410 = vmatpush1.msra.mxu0 0.0
        %3411 = vmatprep.subr.mxu0 0.0
        %3412 = vmatpush1.msra.mxu0 0.0
        %3413 = vmatprep.subr.mxu0 0.0
        %3414 = vmatpush1.msra.mxu0 0.0
        %3415 = vmatprep.subr.mxu0 0.0
        %3416 = vmatpush1.msra.mxu0 0.0
        %3417 = vmatprep.subr.mxu0 0.0
        %3418 = vmatpush1.msra.mxu0 0.0
        %3419 = vmatprep.subr.mxu0 0.0
        %3420 = vmatpush1.msra.mxu0 0.0
        %3421 = vmatprep.subr.mxu0 0.0
        %3422 = vmatpush1.msra.mxu0 0.0
        %3423 = vmatprep.mubr.f32.mxu0 0.0
        %3424 = vmatmul.mubr.f32.gmra.mrb[0].mxu0 %v3357
        %v3425 = vpop.f32.mrb[0].mxu0
        %v3426 = vadd.f32 0.0, %v3425
        %v3427 = vpop.f32.mrb[0].mxu0
        %3428 = vdwg.mxu0
        %v3430 = vsel %vm2513, %v3205, 0
        %3432 = vmatprep.subr.mxu0 0.0
        %3433 = vmatpush1.msra.mxu0 %v2252
        %3434 = vmatprep.subr.mxu0 0.0
        %3435 = vmatpush1.msra.mxu0 0.0
        %3436 = vmatprep.subr.mxu0 0.0
        %3437 = vmatpush1.msra.mxu0 0.0
        %3438 = vmatprep.subr.mxu0 0.0
        %3439 = vmatpush1.msra.mxu0 0.0
        %3440 = vmatprep.subr.mxu0 0.0
        %3441 = vmatpush1.msra.mxu0 0.0
        %3442 = vmatprep.subr.mxu0 0.0
        %3443 = vmatpush1.msra.mxu0 0.0
        %3444 = vmatprep.subr.mxu0 0.0
        %3445 = vmatpush1.msra.mxu0 0.0
        %3446 = vmatprep.subr.mxu0 0.0
        %3447 = vmatpush1.msra.mxu0 0.0
        %3448 = vmatprep.subr.mxu0 0.0
        %3449 = vmatpush1.msra.mxu0 0.0
        %3450 = vmatprep.subr.mxu0 0.0
        %3451 = vmatpush1.msra.mxu0 0.0
        %3452 = vmatprep.subr.mxu0 0.0
        %3453 = vmatpush1.msra.mxu0 0.0
        %3454 = vmatprep.subr.mxu0 0.0
        %3455 = vmatpush1.msra.mxu0 0.0
        %3456 = vmatprep.subr.mxu0 0.0
        %3457 = vmatpush1.msra.mxu0 0.0
        %3458 = vmatprep.subr.mxu0 0.0
        %3459 = vmatpush1.msra.mxu0 0.0
        %3460 = vmatprep.subr.mxu0 0.0
        %3461 = vmatpush1.msra.mxu0 0.0
        %3462 = vmatprep.subr.mxu0 0.0
        %3463 = vmatpush1.msra.mxu0 0.0
        %3464 = vmatprep.subr.mxu0 0.0
        %3465 = vmatpush1.msra.mxu0 0.0
        %3466 = vmatprep.subr.mxu0 0.0
        %3467 = vmatpush1.msra.mxu0 0.0
        %3468 = vmatprep.subr.mxu0 0.0
        %3469 = vmatpush1.msra.mxu0 0.0
        %3470 = vmatprep.subr.mxu0 0.0
        %3471 = vmatpush1.msra.mxu0 0.0
        %3472 = vmatprep.subr.mxu0 0.0
        %3473 = vmatpush1.msra.mxu0 0.0
        %3474 = vmatprep.subr.mxu0 0.0
        %3475 = vmatpush1.msra.mxu0 0.0
        %3476 = vmatprep.subr.mxu0 0.0
        %3477 = vmatpush1.msra.mxu0 0.0
        %3478 = vmatprep.subr.mxu0 0.0
        %3479 = vmatpush1.msra.mxu0 0.0
        %3480 = vmatprep.subr.mxu0 0.0
        %3481 = vmatpush1.msra.mxu0 0.0
        %3482 = vmatprep.subr.mxu0 0.0
        %3483 = vmatpush1.msra.mxu0 0.0
        %3484 = vmatprep.subr.mxu0 0.0
        %3485 = vmatpush1.msra.mxu0 0.0
        %3486 = vmatprep.subr.mxu0 0.0
        %3487 = vmatpush1.msra.mxu0 0.0
        %3488 = vmatprep.subr.mxu0 0.0
        %3489 = vmatpush1.msra.mxu0 0.0
        %3490 = vmatprep.subr.mxu0 0.0
        %3491 = vmatpush1.msra.mxu0 0.0
        %3492 = vmatprep.subr.mxu0 0.0
        %3493 = vmatpush1.msra.mxu0 0.0
        %3494 = vmatprep.subr.mxu0 0.0
        %3495 = vmatpush1.msra.mxu0 0.0
        %3496 = vmatprep.mubr.f32.mxu0 0.0
        %3497 = vmatmul.mubr.f32.gmra.mrb[0].mxu0 %v3430
        %v3498 = vpop.f32.mrb[0].mxu0
        %v3499 = vadd.f32 0.0, %v3498
        %v3500 = vpop.f32.mrb[0].mxu0
        %3501 = vdwg.mxu0
        %v3503 = vsel %vm2513, %v3206, 0
        %3505 = vmatprep.subr.mxu0 0.0
        %3506 = vmatpush1.msra.mxu0 %v2316
        %3507 = vmatprep.subr.mxu0 0.0
        %3508 = vmatpush1.msra.mxu0 0.0
        %3509 = vmatprep.subr.mxu0 0.0
        %3510 = vmatpush1.msra.mxu0 0.0
        %3511 = vmatprep.subr.mxu0 0.0
        %3512 = vmatpush1.msra.mxu0 0.0
        %3513 = vmatprep.subr.mxu0 0.0
        %3514 = vmatpush1.msra.mxu0 0.0
        %3515 = vmatprep.subr.mxu0 0.0
        %3516 = vmatpush1.msra.mxu0 0.0
        %3517 = vmatprep.subr.mxu0 0.0
        %3518 = vmatpush1.msra.mxu0 0.0
        %3519 = vmatprep.subr.mxu0 0.0
        %3520 = vmatpush1.msra.mxu0 0.0
        %3521 = vmatprep.subr.mxu0 0.0
        %3522 = vmatpush1.msra.mxu0 0.0
        %3523 = vmatprep.subr.mxu0 0.0
        %3524 = vmatpush1.msra.mxu0 0.0
        %3525 = vmatprep.subr.mxu0 0.0
        %3526 = vmatpush1.msra.mxu0 0.0
        %3527 = vmatprep.subr.mxu0 0.0
        %3528 = vmatpush1.msra.mxu0 0.0
        %3529 = vmatprep.subr.mxu0 0.0
        %3530 = vmatpush1.msra.mxu0 0.0
        %3531 = vmatprep.subr.mxu0 0.0
        %3532 = vmatpush1.msra.mxu0 0.0
        %3533 = vmatprep.subr.mxu0 0.0
        %3534 = vmatpush1.msra.mxu0 0.0
        %3535 = vmatprep.subr.mxu0 0.0
        %3536 = vmatpush1.msra.mxu0 0.0
        %3537 = vmatprep.subr.mxu0 0.0
        %3538 = vmatpush1.msra.mxu0 0.0
        %3539 = vmatprep.subr.mxu0 0.0
        %3540 = vmatpush1.msra.mxu0 0.0
        %3541 = vmatprep.subr.mxu0 0.0
        %3542 = vmatpush1.msra.mxu0 0.0
        %3543 = vmatprep.subr.mxu0 0.0
        %3544 = vmatpush1.msra.mxu0 0.0
        %3545 = vmatprep.subr.mxu0 0.0
        %3546 = vmatpush1.msra.mxu0 0.0
        %3547 = vmatprep.subr.mxu0 0.0
        %3548 = vmatpush1.msra.mxu0 0.0
        %3549 = vmatprep.subr.mxu0 0.0
        %3550 = vmatpush1.msra.mxu0 0.0
        %3551 = vmatprep.subr.mxu0 0.0
        %3552 = vmatpush1.msra.mxu0 0.0
        %3553 = vmatprep.subr.mxu0 0.0
        %3554 = vmatpush1.msra.mxu0 0.0
        %3555 = vmatprep.subr.mxu0 0.0
        %3556 = vmatpush1.msra.mxu0 0.0
        %3557 = vmatprep.subr.mxu0 0.0
        %3558 = vmatpush1.msra.mxu0 0.0
        %3559 = vmatprep.subr.mxu0 0.0
        %3560 = vmatpush1.msra.mxu0 0.0
        %3561 = vmatprep.subr.mxu0 0.0
        %3562 = vmatpush1.msra.mxu0 0.0
        %3563 = vmatprep.subr.mxu0 0.0
        %3564 = vmatpush1.msra.mxu0 0.0
        %3565 = vmatprep.subr.mxu0 0.0
        %3566 = vmatpush1.msra.mxu0 0.0
        %3567 = vmatprep.subr.mxu0 0.0
        %3568 = vmatpush1.msra.mxu0 0.0
        %3569 = vmatprep.mubr.f32.mxu0 0.0
        %3570 = vmatmul.mubr.f32.gmra.mrb[0].mxu0 %v3503
        %v3571 = vpop.f32.mrb[0].mxu0
        %v3572 = vadd.f32 0.0, %v3571
        %v3573 = vpop.f32.mrb[0].mxu0
        %3574 = vdwg.mxu0
        %v3576 = vsel %vm2513, %v3207, 0
        %3578 = vmatprep.subr.mxu0 0.0
        %3579 = vmatpush1.msra.mxu0 %v2380
        %3580 = vmatprep.subr.mxu0 0.0
        %3581 = vmatpush1.msra.mxu0 0.0
        %3582 = vmatprep.subr.mxu0 0.0
        %3583 = vmatpush1.msra.mxu0 0.0
        %3584 = vmatprep.subr.mxu0 0.0
        %3585 = vmatpush1.msra.mxu0 0.0
        %3586 = vmatprep.subr.mxu0 0.0
        %3587 = vmatpush1.msra.mxu0 0.0
        %3588 = vmatprep.subr.mxu0 0.0
        %3589 = vmatpush1.msra.mxu0 0.0
        %3590 = vmatprep.subr.mxu0 0.0
        %3591 = vmatpush1.msra.mxu0 0.0
        %3592 = vmatprep.subr.mxu0 0.0
        %3593 = vmatpush1.msra.mxu0 0.0
        %3594 = vmatprep.subr.mxu0 0.0
        %3595 = vmatpush1.msra.mxu0 0.0
        %3596 = vmatprep.subr.mxu0 0.0
        %3597 = vmatpush1.msra.mxu0 0.0
        %3598 = vmatprep.subr.mxu0 0.0
        %3599 = vmatpush1.msra.mxu0 0.0
        %3600 = vmatprep.subr.mxu0 0.0
        %3601 = vmatpush1.msra.mxu0 0.0
        %3602 = vmatprep.subr.mxu0 0.0
        %3603 = vmatpush1.msra.mxu0 0.0
        %3604 = vmatprep.subr.mxu0 0.0
        %3605 = vmatpush1.msra.mxu0 0.0
        %3606 = vmatprep.subr.mxu0 0.0
        %3607 = vmatpush1.msra.mxu0 0.0
        %3608 = vmatprep.subr.mxu0 0.0
        %3609 = vmatpush1.msra.mxu0 0.0
        %3610 = vmatprep.subr.mxu0 0.0
        %3611 = vmatpush1.msra.mxu0 0.0
        %3612 = vmatprep.subr.mxu0 0.0
        %3613 = vmatpush1.msra.mxu0 0.0
        %3614 = vmatprep.subr.mxu0 0.0
        %3615 = vmatpush1.msra.mxu0 0.0
        %3616 = vmatprep.subr.mxu0 0.0
        %3617 = vmatpush1.msra.mxu0 0.0
        %3618 = vmatprep.subr.mxu0 0.0
        %3619 = vmatpush1.msra.mxu0 0.0
        %3620 = vmatprep.subr.mxu0 0.0
        %3621 = vmatpush1.msra.mxu0 0.0
        %3622 = vmatprep.subr.mxu0 0.0
        %3623 = vmatpush1.msra.mxu0 0.0
        %3624 = vmatprep.subr.mxu0 0.0
        %3625 = vmatpush1.msra.mxu0 0.0
        %3626 = vmatprep.subr.mxu0 0.0
        %3627 = vmatpush1.msra.mxu0 0.0
        %3628 = vmatprep.subr.mxu0 0.0
        %3629 = vmatpush1.msra.mxu0 0.0
        %3630 = vmatprep.subr.mxu0 0.0
        %3631 = vmatpush1.msra.mxu0 0.0
        %3632 = vmatprep.subr.mxu0 0.0
        %3633 = vmatpush1.msra.mxu0 0.0
        %3634 = vmatprep.subr.mxu0 0.0
        %3635 = vmatpush1.msra.mxu0 0.0
        %3636 = vmatprep.subr.mxu0 0.0
        %3637 = vmatpush1.msra.mxu0 0.0
        %3638 = vmatprep.subr.mxu0 0.0
        %3639 = vmatpush1.msra.mxu0 0.0
        %3640 = vmatprep.subr.mxu0 0.0
        %3641 = vmatpush1.msra.mxu0 0.0
        %3642 = vmatprep.mubr.f32.mxu0 0.0
        %3643 = vmatmul.mubr.f32.gmra.mrb[0].mxu0 %v3576
        %v3644 = vpop.f32.mrb[0].mxu0
        %v3645 = vadd.f32 0.0, %v3644
        %v3646 = vpop.f32.mrb[0].mxu0
        %3647 = vdwg.mxu0
        %v3649 = vsel %vm2513, %v3208, 0
        %3651 = vmatprep.subr.mxu0 0.0
        %3652 = vmatpush1.msra.mxu0 %v2444
        %3653 = vmatprep.subr.mxu0 0.0
        %3654 = vmatpush1.msra.mxu0 0.0
        %3655 = vmatprep.subr.mxu0 0.0
        %3656 = vmatpush1.msra.mxu0 0.0
        %3657 = vmatprep.subr.mxu0 0.0
        %3658 = vmatpush1.msra.mxu0 0.0
        %3659 = vmatprep.subr.mxu0 0.0
        %3660 = vmatpush1.msra.mxu0 0.0
        %3661 = vmatprep.subr.mxu0 0.0
        %3662 = vmatpush1.msra.mxu0 0.0
        %3663 = vmatprep.subr.mxu0 0.0
        %3664 = vmatpush1.msra.mxu0 0.0
        %3665 = vmatprep.subr.mxu0 0.0
        %3666 = vmatpush1.msra.mxu0 0.0
        %3667 = vmatprep.subr.mxu0 0.0
        %3668 = vmatpush1.msra.mxu0 0.0
        %3669 = vmatprep.subr.mxu0 0.0
        %3670 = vmatpush1.msra.mxu0 0.0
        %3671 = vmatprep.subr.mxu0 0.0
        %3672 = vmatpush1.msra.mxu0 0.0
        %3673 = vmatprep.subr.mxu0 0.0
        %3674 = vmatpush1.msra.mxu0 0.0
        %3675 = vmatprep.subr.mxu0 0.0
        %3676 = vmatpush1.msra.mxu0 0.0
        %3677 = vmatprep.subr.mxu0 0.0
        %3678 = vmatpush1.msra.mxu0 0.0
        %3679 = vmatprep.subr.mxu0 0.0
        %3680 = vmatpush1.msra.mxu0 0.0
        %3681 = vmatprep.subr.mxu0 0.0
        %3682 = vmatpush1.msra.mxu0 0.0
        %3683 = vmatprep.subr.mxu0 0.0
        %3684 = vmatpush1.msra.mxu0 0.0
        %3685 = vmatprep.subr.mxu0 0.0
        %3686 = vmatpush1.msra.mxu0 0.0
        %3687 = vmatprep.subr.mxu0 0.0
        %3688 = vmatpush1.msra.mxu0 0.0
        %3689 = vmatprep.subr.mxu0 0.0
        %3690 = vmatpush1.msra.mxu0 0.0
        %3691 = vmatprep.subr.mxu0 0.0
        %3692 = vmatpush1.msra.mxu0 0.0
        %3693 = vmatprep.subr.mxu0 0.0
        %3694 = vmatpush1.msra.mxu0 0.0
        %3695 = vmatprep.subr.mxu0 0.0
        %3696 = vmatpush1.msra.mxu0 0.0
        %3697 = vmatprep.subr.mxu0 0.0
        %3698 = vmatpush1.msra.mxu0 0.0
        %3699 = vmatprep.subr.mxu0 0.0
        %3700 = vmatpush1.msra.mxu0 0.0
        %3701 = vmatprep.subr.mxu0 0.0
        %3702 = vmatpush1.msra.mxu0 0.0
        %3703 = vmatprep.subr.mxu0 0.0
        %3704 = vmatpush1.msra.mxu0 0.0
        %3705 = vmatprep.subr.mxu0 0.0
        %3706 = vmatpush1.msra.mxu0 0.0
        %3707 = vmatprep.subr.mxu0 0.0
        %3708 = vmatpush1.msra.mxu0 0.0
        %3709 = vmatprep.subr.mxu0 0.0
        %3710 = vmatpush1.msra.mxu0 0.0
        %3711 = vmatprep.subr.mxu0 0.0
        %3712 = vmatpush1.msra.mxu0 0.0
        %3713 = vmatprep.subr.mxu0 0.0
        %3714 = vmatpush1.msra.mxu0 0.0
        %3715 = vmatprep.mubr.f32.mxu0 0.0
        %3716 = vmatmul.mubr.f32.gmra.mrb[0].mxu0 %v3649
        %v3717 = vpop.f32.mrb[0].mxu0
        %v3718 = vadd.f32 0.0, %v3717
        %v3719 = vpop.f32.mrb[0].mxu0
        %3720 = vdwg.mxu0
        %v3722 = vsel %vm2513, %v3209, 0
        %3724 = vmatprep.subr.mxu0 0.0
        %3725 = vmatpush1.msra.mxu0 %v2508
        %3726 = vmatprep.subr.mxu0 0.0
        %3727 = vmatpush1.msra.mxu0 0.0
        %3728 = vmatprep.subr.mxu0 0.0
        %3729 = vmatpush1.msra.mxu0 0.0
        %3730 = vmatprep.subr.mxu0 0.0
        %3731 = vmatpush1.msra.mxu0 0.0
        %3732 = vmatprep.subr.mxu0 0.0
        %3733 = vmatpush1.msra.mxu0 0.0
        %3734 = vmatprep.subr.mxu0 0.0
        %3735 = vmatpush1.msra.mxu0 0.0
        %3736 = vmatprep.subr.mxu0 0.0
        %3737 = vmatpush1.msra.mxu0 0.0
        %3738 = vmatprep.subr.mxu0 0.0
        %3739 = vmatpush1.msra.mxu0 0.0
        %3740 = vmatprep.subr.mxu0 0.0
        %3741 = vmatpush1.msra.mxu0 0.0
        %3742 = vmatprep.subr.mxu0 0.0
        %3743 = vmatpush1.msra.mxu0 0.0
        %3744 = vmatprep.subr.mxu0 0.0
        %3745 = vmatpush1.msra.mxu0 0.0
        %3746 = vmatprep.subr.mxu0 0.0
        %3747 = vmatpush1.msra.mxu0 0.0
        %3748 = vmatprep.subr.mxu0 0.0
        %3749 = vmatpush1.msra.mxu0 0.0
        %3750 = vmatprep.subr.mxu0 0.0
        %3751 = vmatpush1.msra.mxu0 0.0
        %3752 = vmatprep.subr.mxu0 0.0
        %3753 = vmatpush1.msra.mxu0 0.0
        %3754 = vmatprep.subr.mxu0 0.0
        %3755 = vmatpush1.msra.mxu0 0.0
        %3756 = vmatprep.subr.mxu0 0.0
        %3757 = vmatpush1.msra.mxu0 0.0
        %3758 = vmatprep.subr.mxu0 0.0
        %3759 = vmatpush1.msra.mxu0 0.0
        %3760 = vmatprep.subr.mxu0 0.0
        %3761 = vmatpush1.msra.mxu0 0.0
        %3762 = vmatprep.subr.mxu0 0.0
        %3763 = vmatpush1.msra.mxu0 0.0
        %3764 = vmatprep.subr.mxu0 0.0
        %3765 = vmatpush1.msra.mxu0 0.0
        %3766 = vmatprep.subr.mxu0 0.0
        %3767 = vmatpush1.msra.mxu0 0.0
        %3768 = vmatprep.subr.mxu0 0.0
        %3769 = vmatpush1.msra.mxu0 0.0
        %3770 = vmatprep.subr.mxu0 0.0
        %3771 = vmatpush1.msra.mxu0 0.0
        %3772 = vmatprep.subr.mxu0 0.0
        %3773 = vmatpush1.msra.mxu0 0.0
        %3774 = vmatprep.subr.mxu0 0.0
        %3775 = vmatpush1.msra.mxu0 0.0
        %3776 = vmatprep.subr.mxu0 0.0
        %3777 = vmatpush1.msra.mxu0 0.0
        %3778 = vmatprep.subr.mxu0 0.0
        %3779 = vmatpush1.msra.mxu0 0.0
        %3780 = vmatprep.subr.mxu0 0.0
        %3781 = vmatpush1.msra.mxu0 0.0
        %3782 = vmatprep.subr.mxu0 0.0
        %3783 = vmatpush1.msra.mxu0 0.0
        %3784 = vmatprep.subr.mxu0 0.0
        %3785 = vmatpush1.msra.mxu0 0.0
        %3786 = vmatprep.subr.mxu0 0.0
        %3787 = vmatpush1.msra.mxu0 0.0
        %3788 = vmatprep.mubr.f32.mxu0 0.0
        %3789 = vmatmul.mubr.f32.gmra.mrb[0].mxu0 %v3722
        %v3790 = vpop.f32.mrb[0].mxu0
        %v3791 = vadd.f32 0.0, %v3790
        %v3792 = vpop.f32.mrb[0].mxu0
        %3793 = vdwg.mxu0
        %v3794 = vpack.c.bf16 %v3280, %v3280
        %v3795 = vpack.c.bf16 %v3353, %v3353
        %v3796 = vpack.c.bf16 %v3426, %v3426
        %v3797 = vpack.c.bf16 %v3499, %v3499
        %v3798 = vpack.c.bf16 %v3572, %v3572
        %v3799 = vpack.c.bf16 %v3645, %v3645
        %v3800 = vpack.c.bf16 %v3718, %v3718
        %v3801 = vpack.c.bf16 %v3791, %v3791
        %v3802 = vld [vmem:[%s8] sm:$0xf]
        %v3803 = vld [vmem:[%s8 + $0x4] sm:$0xf]
        %v3804 = vld [vmem:[%s8 + $0x8] sm:$0xf]
        %v3805 = vld [vmem:[%s8 + $0xc] sm:$0xf]
        %v3806 = vld [vmem:[%s8 + $0x10] sm:$0xf]
        %v3807 = vld [vmem:[%s8 + $0x14] sm:$0xf]
        %v3808 = vld [vmem:[%s8 + $0x18] sm:$0xf]
        %v3809 = vld [vmem:[%s8 + $0x1c] sm:$0xf]
        %v3811 = vsel %vm2513, %v3794, 0
        %vm3813 = vcmask 1043456
        %v3815 = vsel %vm3813, %v3802, 0
        %3817 = vmatprep.subr.bf16.mxu0 0
        %3818 = vmatpush1.bf16.msra.mxu0 %v3815
        %3819 = vmatprep.subr.bf16.mxu0 0
        %3820 = vmatpush1.bf16.msra.mxu0 0
        %3821 = vmatprep.subr.bf16.mxu0 0
        %3822 = vmatpush1.bf16.msra.mxu0 0
        %3823 = vmatprep.subr.bf16.mxu0 0
        %3824 = vmatpush1.bf16.msra.mxu0 0
        %3825 = vmatprep.subr.bf16.mxu0 0
        %3826 = vmatpush1.bf16.msra.mxu0 0
        %3827 = vmatprep.subr.bf16.mxu0 0
        %3828 = vmatpush1.bf16.msra.mxu0 0
        %3829 = vmatprep.subr.bf16.mxu0 0
        %3830 = vmatpush1.bf16.msra.mxu0 0
        %3831 = vmatprep.subr.bf16.mxu0 0
        %3832 = vmatpush1.bf16.msra.mxu0 0
        %3833 = vmatprep.subr.bf16.mxu0 0
        %3834 = vmatpush1.bf16.msra.mxu0 0
        %3835 = vmatprep.subr.bf16.mxu0 0
        %3836 = vmatpush1.bf16.msra.mxu0 0
        %3837 = vmatprep.subr.bf16.mxu0 0
        %3838 = vmatpush1.bf16.msra.mxu0 0
        %3839 = vmatprep.subr.bf16.mxu0 0
        %3840 = vmatpush1.bf16.msra.mxu0 0
        %3841 = vmatprep.subr.bf16.mxu0 0
        %3842 = vmatpush1.bf16.msra.mxu0 0
        %3843 = vmatprep.subr.bf16.mxu0 0
        %3844 = vmatpush1.bf16.msra.mxu0 0
        %3845 = vmatprep.subr.bf16.mxu0 0
        %3846 = vmatpush1.bf16.msra.mxu0 0
        %3847 = vmatprep.subr.bf16.mxu0 0
        %3848 = vmatpush1.bf16.msra.mxu0 0
        %3849 = vmatprep.mubr.bf16.mxu0 0
        %3850 = vmatmul.mubr.bf16.gmra.mrb[0].mxu0 %v3811
        %v3851 = vpop.f32.mrb[0].mxu0
        %v3852 = vadd.f32 0.0, %v3851
        %v3853 = vpop.f32.mrb[0].mxu0
        %v3854 = vpop.f32.mrb[0].mxu0
        %v3855 = vpop.f32.mrb[0].mxu0
        %3856 = vdwg.mxu0
        %v3858 = vsel %vm2513, %v3795, 0
        %v3861 = vsel %vm3813, %v3803, 0
        %3863 = vmatprep.subr.bf16.mxu0 0
        %3864 = vmatpush1.bf16.msra.mxu0 %v3861
        %3865 = vmatprep.subr.bf16.mxu0 0
        %3866 = vmatpush1.bf16.msra.mxu0 0
        %3867 = vmatprep.subr.bf16.mxu0 0
        %3868 = vmatpush1.bf16.msra.mxu0 0
        %3869 = vmatprep.subr.bf16.mxu0 0
        %3870 = vmatpush1.bf16.msra.mxu0 0
        %3871 = vmatprep.subr.bf16.mxu0 0
        %3872 = vmatpush1.bf16.msra.mxu0 0
        %3873 = vmatprep.subr.bf16.mxu0 0
        %3874 = vmatpush1.bf16.msra.mxu0 0
        %3875 = vmatprep.subr.bf16.mxu0 0
        %3876 = vmatpush1.bf16.msra.mxu0 0
        %3877 = vmatprep.subr.bf16.mxu0 0
        %3878 = vmatpush1.bf16.msra.mxu0 0
        %3879 = vmatprep.subr.bf16.mxu0 0
        %3880 = vmatpush1.bf16.msra.mxu0 0
        %3881 = vmatprep.subr.bf16.mxu0 0
        %3882 = vmatpush1.bf16.msra.mxu0 0
        %3883 = vmatprep.subr.bf16.mxu0 0
        %3884 = vmatpush1.bf16.msra.mxu0 0
        %3885 = vmatprep.subr.bf16.mxu0 0
        %3886 = vmatpush1.bf16.msra.mxu0 0
        %3887 = vmatprep.subr.bf16.mxu0 0
        %3888 = vmatpush1.bf16.msra.mxu0 0
        %3889 = vmatprep.subr.bf16.mxu0 0
        %3890 = vmatpush1.bf16.msra.mxu0 0
        %3891 = vmatprep.subr.bf16.mxu0 0
        %3892 = vmatpush1.bf16.msra.mxu0 0
        %3893 = vmatprep.subr.bf16.mxu0 0
        %3894 = vmatpush1.bf16.msra.mxu0 0
        %3895 = vmatprep.mubr.bf16.mxu0 0
        %3896 = vmatmul.mubr.bf16.gmra.mrb[0].mxu0 %v3858
        %v3897 = vpop.f32.mrb[0].mxu0
        %v3898 = vadd.f32 0.0, %v3897
        %v3899 = vpop.f32.mrb[0].mxu0
        %v3900 = vpop.f32.mrb[0].mxu0
        %v3901 = vpop.f32.mrb[0].mxu0
        %3902 = vdwg.mxu0
        %v3904 = vsel %vm2513, %v3796, 0
        %v3907 = vsel %vm3813, %v3804, 0
        %3909 = vmatprep.subr.bf16.mxu0 0
        %3910 = vmatpush1.bf16.msra.mxu0 %v3907
        %3911 = vmatprep.subr.bf16.mxu0 0
        %3912 = vmatpush1.bf16.msra.mxu0 0
        %3913 = vmatprep.subr.bf16.mxu0 0
        %3914 = vmatpush1.bf16.msra.mxu0 0
        %3915 = vmatprep.subr.bf16.mxu0 0
        %3916 = vmatpush1.bf16.msra.mxu0 0
        %3917 = vmatprep.subr.bf16.mxu0 0
        %3918 = vmatpush1.bf16.msra.mxu0 0
        %3919 = vmatprep.subr.bf16.mxu0 0
        %3920 = vmatpush1.bf16.msra.mxu0 0
        %3921 = vmatprep.subr.bf16.mxu0 0
        %3922 = vmatpush1.bf16.msra.mxu0 0
        %3923 = vmatprep.subr.bf16.mxu0 0
        %3924 = vmatpush1.bf16.msra.mxu0 0
        %3925 = vmatprep.subr.bf16.mxu0 0
        %3926 = vmatpush1.bf16.msra.mxu0 0
        %3927 = vmatprep.subr.bf16.mxu0 0
        %3928 = vmatpush1.bf16.msra.mxu0 0
        %3929 = vmatprep.subr.bf16.mxu0 0
        %3930 = vmatpush1.bf16.msra.mxu0 0
        %3931 = vmatprep.subr.bf16.mxu0 0
        %3932 = vmatpush1.bf16.msra.mxu0 0
        %3933 = vmatprep.subr.bf16.mxu0 0
        %3934 = vmatpush1.bf16.msra.mxu0 0
        %3935 = vmatprep.subr.bf16.mxu0 0
        %3936 = vmatpush1.bf16.msra.mxu0 0
        %3937 = vmatprep.subr.bf16.mxu0 0
        %3938 = vmatpush1.bf16.msra.mxu0 0
        %3939 = vmatprep.subr.bf16.mxu0 0
        %3940 = vmatpush1.bf16.msra.mxu0 0
        %3941 = vmatprep.mubr.bf16.mxu0 0
        %3942 = vmatmul.mubr.bf16.gmra.mrb[0].mxu0 %v3904
        %v3943 = vpop.f32.mrb[0].mxu0
        %v3944 = vadd.f32 0.0, %v3943
        %v3945 = vpop.f32.mrb[0].mxu0
        %v3946 = vpop.f32.mrb[0].mxu0
        %v3947 = vpop.f32.mrb[0].mxu0
        %3948 = vdwg.mxu0
        %v3950 = vsel %vm2513, %v3797, 0
        %v3953 = vsel %vm3813, %v3805, 0
        %3955 = vmatprep.subr.bf16.mxu0 0
        %3956 = vmatpush1.bf16.msra.mxu0 %v3953
        %3957 = vmatprep.subr.bf16.mxu0 0
        %3958 = vmatpush1.bf16.msra.mxu0 0
        %3959 = vmatprep.subr.bf16.mxu0 0
        %3960 = vmatpush1.bf16.msra.mxu0 0
        %3961 = vmatprep.subr.bf16.mxu0 0
        %3962 = vmatpush1.bf16.msra.mxu0 0
        %3963 = vmatprep.subr.bf16.mxu0 0
        %3964 = vmatpush1.bf16.msra.mxu0 0
        %3965 = vmatprep.subr.bf16.mxu0 0
        %3966 = vmatpush1.bf16.msra.mxu0 0
        %3967 = vmatprep.subr.bf16.mxu0 0
        %3968 = vmatpush1.bf16.msra.mxu0 0
        %3969 = vmatprep.subr.bf16.mxu0 0
        %3970 = vmatpush1.bf16.msra.mxu0 0
        %3971 = vmatprep.subr.bf16.mxu0 0
        %3972 = vmatpush1.bf16.msra.mxu0 0
        %3973 = vmatprep.subr.bf16.mxu0 0
        %3974 = vmatpush1.bf16.msra.mxu0 0
        %3975 = vmatprep.subr.bf16.mxu0 0
        %3976 = vmatpush1.bf16.msra.mxu0 0
        %3977 = vmatprep.subr.bf16.mxu0 0
        %3978 = vmatpush1.bf16.msra.mxu0 0
        %3979 = vmatprep.subr.bf16.mxu0 0
        %3980 = vmatpush1.bf16.msra.mxu0 0
        %3981 = vmatprep.subr.bf16.mxu0 0
        %3982 = vmatpush1.bf16.msra.mxu0 0
        %3983 = vmatprep.subr.bf16.mxu0 0
        %3984 = vmatpush1.bf16.msra.mxu0 0
        %3985 = vmatprep.subr.bf16.mxu0 0
        %3986 = vmatpush1.bf16.msra.mxu0 0
        %3987 = vmatprep.mubr.bf16.mxu0 0
        %3988 = vmatmul.mubr.bf16.gmra.mrb[0].mxu0 %v3950
        %v3989 = vpop.f32.mrb[0].mxu0
        %v3990 = vadd.f32 0.0, %v3989
        %v3991 = vpop.f32.mrb[0].mxu0
        %v3992 = vpop.f32.mrb[0].mxu0
        %v3993 = vpop.f32.mrb[0].mxu0
        %3994 = vdwg.mxu0
        %v3996 = vsel %vm2513, %v3798, 0
        %v3999 = vsel %vm3813, %v3806, 0
        %4001 = vmatprep.subr.bf16.mxu0 0
        %4002 = vmatpush1.bf16.msra.mxu0 %v3999
        %4003 = vmatprep.subr.bf16.mxu0 0
        %4004 = vmatpush1.bf16.msra.mxu0 0
        %4005 = vmatprep.subr.bf16.mxu0 0
        %4006 = vmatpush1.bf16.msra.mxu0 0
        %4007 = vmatprep.subr.bf16.mxu0 0
        %4008 = vmatpush1.bf16.msra.mxu0 0
        %4009 = vmatprep.subr.bf16.mxu0 0
        %4010 = vmatpush1.bf16.msra.mxu0 0
        %4011 = vmatprep.subr.bf16.mxu0 0
        %4012 = vmatpush1.bf16.msra.mxu0 0
        %4013 = vmatprep.subr.bf16.mxu0 0
        %4014 = vmatpush1.bf16.msra.mxu0 0
        %4015 = vmatprep.subr.bf16.mxu0 0
        %4016 = vmatpush1.bf16.msra.mxu0 0
        %4017 = vmatprep.subr.bf16.mxu0 0
        %4018 = vmatpush1.bf16.msra.mxu0 0
        %4019 = vmatprep.subr.bf16.mxu0 0
        %4020 = vmatpush1.bf16.msra.mxu0 0
        %4021 = vmatprep.subr.bf16.mxu0 0
        %4022 = vmatpush1.bf16.msra.mxu0 0
        %4023 = vmatprep.subr.bf16.mxu0 0
        %4024 = vmatpush1.bf16.msra.mxu0 0
        %4025 = vmatprep.subr.bf16.mxu0 0
        %4026 = vmatpush1.bf16.msra.mxu0 0
        %4027 = vmatprep.subr.bf16.mxu0 0
        %4028 = vmatpush1.bf16.msra.mxu0 0
        %4029 = vmatprep.subr.bf16.mxu0 0
        %4030 = vmatpush1.bf16.msra.mxu0 0
        %4031 = vmatprep.subr.bf16.mxu0 0
        %4032 = vmatpush1.bf16.msra.mxu0 0
        %4033 = vmatprep.mubr.bf16.mxu0 0
        %4034 = vmatmul.mubr.bf16.gmra.mrb[0].mxu0 %v3996
        %v4035 = vpop.f32.mrb[0].mxu0
        %v4036 = vadd.f32 0.0, %v4035
        %v4037 = vpop.f32.mrb[0].mxu0
        %v4038 = vpop.f32.mrb[0].mxu0
        %v4039 = vpop.f32.mrb[0].mxu0
        %4040 = vdwg.mxu0
        %v4042 = vsel %vm2513, %v3799, 0
        %v4045 = vsel %vm3813, %v3807, 0
        %4047 = vmatprep.subr.bf16.mxu0 0
        %4048 = vmatpush1.bf16.msra.mxu0 %v4045
        %4049 = vmatprep.subr.bf16.mxu0 0
        %4050 = vmatpush1.bf16.msra.mxu0 0
        %4051 = vmatprep.subr.bf16.mxu0 0
        %4052 = vmatpush1.bf16.msra.mxu0 0
        %4053 = vmatprep.subr.bf16.mxu0 0
        %4054 = vmatpush1.bf16.msra.mxu0 0
        %4055 = vmatprep.subr.bf16.mxu0 0
        %4056 = vmatpush1.bf16.msra.mxu0 0
        %4057 = vmatprep.subr.bf16.mxu0 0
        %4058 = vmatpush1.bf16.msra.mxu0 0
        %4059 = vmatprep.subr.bf16.mxu0 0
        %4060 = vmatpush1.bf16.msra.mxu0 0
        %4061 = vmatprep.subr.bf16.mxu0 0
        %4062 = vmatpush1.bf16.msra.mxu0 0
        %4063 = vmatprep.subr.bf16.mxu0 0
        %4064 = vmatpush1.bf16.msra.mxu0 0
        %4065 = vmatprep.subr.bf16.mxu0 0
        %4066 = vmatpush1.bf16.msra.mxu0 0
        %4067 = vmatprep.subr.bf16.mxu0 0
        %4068 = vmatpush1.bf16.msra.mxu0 0
        %4069 = vmatprep.subr.bf16.mxu0 0
        %4070 = vmatpush1.bf16.msra.mxu0 0
        %4071 = vmatprep.subr.bf16.mxu0 0
        %4072 = vmatpush1.bf16.msra.mxu0 0
        %4073 = vmatprep.subr.bf16.mxu0 0
        %4074 = vmatpush1.bf16.msra.mxu0 0
        %4075 = vmatprep.subr.bf16.mxu0 0
        %4076 = vmatpush1.bf16.msra.mxu0 0
        %4077 = vmatprep.subr.bf16.mxu0 0
        %4078 = vmatpush1.bf16.msra.mxu0 0
        %4079 = vmatprep.mubr.bf16.mxu0 0
        %4080 = vmatmul.mubr.bf16.gmra.mrb[0].mxu0 %v4042
        %v4081 = vpop.f32.mrb[0].mxu0
        %v4082 = vadd.f32 0.0, %v4081
        %v4083 = vpop.f32.mrb[0].mxu0
        %v4084 = vpop.f32.mrb[0].mxu0
        %v4085 = vpop.f32.mrb[0].mxu0
        %4086 = vdwg.mxu0
        %v4088 = vsel %vm2513, %v3800, 0
        %v4091 = vsel %vm3813, %v3808, 0
        %4093 = vmatprep.subr.bf16.mxu0 0
        %4094 = vmatpush1.bf16.msra.mxu0 %v4091
        %4095 = vmatprep.subr.bf16.mxu0 0
        %4096 = vmatpush1.bf16.msra.mxu0 0
        %4097 = vmatprep.subr.bf16.mxu0 0
        %4098 = vmatpush1.bf16.msra.mxu0 0
        %4099 = vmatprep.subr.bf16.mxu0 0
        %4100 = vmatpush1.bf16.msra.mxu0 0
        %4101 = vmatprep.subr.bf16.mxu0 0
        %4102 = vmatpush1.bf16.msra.mxu0 0
        %4103 = vmatprep.subr.bf16.mxu0 0
        %4104 = vmatpush1.bf16.msra.mxu0 0
        %4105 = vmatprep.subr.bf16.mxu0 0
        %4106 = vmatpush1.bf16.msra.mxu0 0
        %4107 = vmatprep.subr.bf16.mxu0 0
        %4108 = vmatpush1.bf16.msra.mxu0 0
        %4109 = vmatprep.subr.bf16.mxu0 0
        %4110 = vmatpush1.bf16.msra.mxu0 0
        %4111 = vmatprep.subr.bf16.mxu0 0
        %4112 = vmatpush1.bf16.msra.mxu0 0
        %4113 = vmatprep.subr.bf16.mxu0 0
        %4114 = vmatpush1.bf16.msra.mxu0 0
        %4115 = vmatprep.subr.bf16.mxu0 0
        %4116 = vmatpush1.bf16.msra.mxu0 0
        %4117 = vmatprep.subr.bf16.mxu0 0
        %4118 = vmatpush1.bf16.msra.mxu0 0
        %4119 = vmatprep.subr.bf16.mxu0 0
        %4120 = vmatpush1.bf16.msra.mxu0 0
        %4121 = vmatprep.subr.bf16.mxu0 0
        %4122 = vmatpush1.bf16.msra.mxu0 0
        %4123 = vmatprep.subr.bf16.mxu0 0
        %4124 = vmatpush1.bf16.msra.mxu0 0
        %4125 = vmatprep.mubr.bf16.mxu0 0
        %4126 = vmatmul.mubr.bf16.gmra.mrb[0].mxu0 %v4088
        %v4127 = vpop.f32.mrb[0].mxu0
        %v4128 = vadd.f32 0.0, %v4127
        %v4129 = vpop.f32.mrb[0].mxu0
        %v4130 = vpop.f32.mrb[0].mxu0
        %v4131 = vpop.f32.mrb[0].mxu0
        %4132 = vdwg.mxu0
        %v4134 = vsel %vm2513, %v3801, 0
        %v4137 = vsel %vm3813, %v3809, 0
        %4139 = vmatprep.subr.bf16.mxu0 0
        %4140 = vmatpush1.bf16.msra.mxu0 %v4137
        %4141 = vmatprep.subr.bf16.mxu0 0
        %4142 = vmatpush1.bf16.msra.mxu0 0
        %4143 = vmatprep.subr.bf16.mxu0 0
        %4144 = vmatpush1.bf16.msra.mxu0 0
        %4145 = vmatprep.subr.bf16.mxu0 0
        %4146 = vmatpush1.bf16.msra.mxu0 0
        %4147 = vmatprep.subr.bf16.mxu0 0
        %4148 = vmatpush1.bf16.msra.mxu0 0
        %4149 = vmatprep.subr.bf16.mxu0 0
        %4150 = vmatpush1.bf16.msra.mxu0 0
        %4151 = vmatprep.subr.bf16.mxu0 0
        %4152 = vmatpush1.bf16.msra.mxu0 0
        %4153 = vmatprep.subr.bf16.mxu0 0
        %4154 = vmatpush1.bf16.msra.mxu0 0
        %4155 = vmatprep.subr.bf16.mxu0 0
        %4156 = vmatpush1.bf16.msra.mxu0 0
        %4157 = vmatprep.subr.bf16.mxu0 0
        %4158 = vmatpush1.bf16.msra.mxu0 0
        %4159 = vmatprep.subr.bf16.mxu0 0
        %4160 = vmatpush1.bf16.msra.mxu0 0
        %4161 = vmatprep.subr.bf16.mxu0 0
        %4162 = vmatpush1.bf16.msra.mxu0 0
        %4163 = vmatprep.subr.bf16.mxu0 0
        %4164 = vmatpush1.bf16.msra.mxu0 0
        %4165 = vmatprep.subr.bf16.mxu0 0
        %4166 = vmatpush1.bf16.msra.mxu0 0
        %4167 = vmatprep.subr.bf16.mxu0 0
        %4168 = vmatpush1.bf16.msra.mxu0 0
        %4169 = vmatprep.subr.bf16.mxu0 0
        %4170 = vmatpush1.bf16.msra.mxu0 0
        %4171 = vmatprep.mubr.bf16.mxu0 0
        %4172 = vmatmul.mubr.bf16.gmra.mrb[0].mxu0 %v4134
        %v4173 = vpop.f32.mrb[0].mxu0
        %v4174 = vadd.f32 0.0, %v4173
        %v4175 = vpop.f32.mrb[0].mxu0
        %v4176 = vpop.f32.mrb[0].mxu0
        %v4177 = vpop.f32.mrb[0].mxu0
        %4178 = vdwg.mxu0
        %v4179 = vsel %vm757, %v3852, 0.0
        %v4180 = vsel %vm757, %v3898, 0.0
        %v4181 = vadd.f32 %v4179, %v4180
        %v4182 = vsel %vm757, %v3944, 0.0
        %v4183 = vadd.f32 %v4181, %v4182
        %v4184 = vsel %vm757, %v3990, 0.0
        %v4185 = vadd.f32 %v4183, %v4184
        %v4186 = vsel %vm757, %v4036, 0.0
        %v4187 = vadd.f32 %v4185, %v4186
        %v4188 = vsel %vm757, %v4082, 0.0
        %v4189 = vadd.f32 %v4187, %v4188
        %v4190 = vsel %vm757, %v4128, 0.0
        %v4191 = vadd.f32 %v4189, %v4190
        %v4192 = vsel %vm757, %v4174, 0.0
        %v4193 = vadd.f32 %v4191, %v4192
        %v4194 = vld [vmem:[%s9] sm:$0x1]
        %v4196 = vlaneseq
        %v4197 = vshrl.u32 %v4196, 7
        %v4198 = vsub.s32 0, %v4197
        %v4199 = vrot.slane %v4194, %v4198
        %v4201 = vadd.f32 %v4193, %v4199
        %v4202 = vadd.f32 %v609, %v4201
        %v4203 = vsel %vm757, %v4202, 0.0
        %4204 = vadd.xlane.f32.xlu0 %v4203
        %v4205 = vpop.xlane.xlu0 %4204
        %v4206 = vrcp.pop 64.0
        %v4207 = vmul.f32 %v4205, %v4206
        %v4208 = vsub.f32 %v4202, %v4207
        %v4209 = vmul.f32 %v4208, %v4208
        %v4210 = vsel %vm757, %v4209, 0.0
        %4211 = vadd.xlane.f32.xlu0 %v4210
        %v4212 = vpop.xlane.xlu0 %4211
        %v4213 = vmul.f32 %v4212, %v4206
        %v4214 = vadd.f32 %v4213, 1e-05
        %v4215 = vrsqrt.pop %v4214
        %v4216 = vmul.f32 %v4208, %v4215
        %v4217 = vld [vmem:[%s10] sm:$0x1]
        %v4219 = vlaneseq
        %v4220 = vshrl.u32 %v4219, 7
        %v4221 = vsub.s32 0, %v4220
        %v4222 = vrot.slane %v4217, %v4221
        %v4224 = vmul.f32 %v4216, %v4222
        %v4225 = vld [vmem:[%s11] sm:$0x1]
        %v4227 = vlaneseq
        %v4228 = vshrl.u32 %v4227, 7
        %v4229 = vsub.s32 0, %v4228
        %v4230 = vrot.slane %v4225, %v4229
        %v4232 = vadd.f32 %v4224, %v4230
        %v4233 = vsel %vm757, %v4232, 0.0
        %v4234 = vrot.slane %v4233, 4
        %v4235 = vadd.f32 %v4233, %v4234
        %v4236 = vrot.slane %v4235, 2
        %v4237 = vadd.f32 %v4235, %v4236
        %v4238 = vrot.slane %v4237, 1
        %v4239 = vadd.f32 %v4237, %v4238
        %v4240 = vrcp.pop 8.0
        %v4241 = vmul.f32 %v4239, %v4240
        %v4242 = vpack.c.bf16 %v4241, %v4241
        %v4243 = vld [vmem:[%s12] sm:$0xf]
        %v4244 = vld [vmem:[%s12 + $0x4] sm:$0xf]
        %v4245 = vld [vmem:[%s12 + $0x8] sm:$0xf]
        %v4246 = vld [vmem:[%s12 + $0xc] sm:$0xf]
        %v4247 = vld [vmem:[%s12 + $0x10] sm:$0xf]
        %v4248 = vld [vmem:[%s12 + $0x14] sm:$0xf]
        %v4249 = vld [vmem:[%s12 + $0x18] sm:$0xf]
        %v4250 = vld [vmem:[%s12 + $0x1c] sm:$0xf]
        %v4251 = vld [vmem:[%s13] sm:$0x1]
        %v4260 = vunpack.c.l.b16 %v4243
        %v4261 = vunpack.c.l.b16 %v4244
        %v4262 = vunpack.c.l.b16 %v4245
        %v4263 = vunpack.c.l.b16 %v4246
        %v4264 = vunpack.c.l.b16 %v4247
        %v4265 = vunpack.c.l.b16 %v4248
        %v4266 = vunpack.c.l.b16 %v4249
        %v4267 = vunpack.c.l.b16 %v4250
        %v4268 = vpack.c.b16 %v4261, %v4260
        %v4269 = vpack.c.b16 %v4263, %v4262
        %v4270 = vpack.c.b16 %v4265, %v4264
        %v4271 = vpack.c.b16 %v4267, %v4266
        %v4277 = vsel %vm757, %v4242, 0
        %4279 = vmatprep.subr.bf16.mxu0 0
        %4280 = vmatpush1.bf16.msra.mxu0 %v4268
        %4281 = vmatprep.subr.bf16.mxu0 0
        %4282 = vmatpush1.bf16.msra.mxu0 %v4269
        %4283 = vmatprep.subr.bf16.mxu0 0
        %4284 = vmatpush1.bf16.msra.mxu0 %v4270
        %4285 = vmatprep.subr.bf16.mxu0 0
        %4286 = vmatpush1.bf16.msra.mxu0 %v4271
        %4287 = vmatprep.subr.bf16.mxu0 0
        %4288 = vmatpush1.bf16.msra.mxu0 0
        %4289 = vmatprep.subr.bf16.mxu0 0
        %4290 = vmatpush1.bf16.msra.mxu0 0
        %4291 = vmatprep.subr.bf16.mxu0 0
        %4292 = vmatpush1.bf16.msra.mxu0 0
        %4293 = vmatprep.subr.bf16.mxu0 0
        %4294 = vmatpush1.bf16.msra.mxu0 0
        %4295 = vmatprep.subr.bf16.mxu0 0
        %4296 = vmatpush1.bf16.msra.mxu0 0
        %4297 = vmatprep.subr.bf16.mxu0 0
        %4298 = vmatpush1.bf16.msra.mxu0 0
        %4299 = vmatprep.subr.bf16.mxu0 0
        %4300 = vmatpush1.bf16.msra.mxu0 0
        %4301 = vmatprep.subr.bf16.mxu0 0
        %4302 = vmatpush1.bf16.msra.mxu0 0
        %4303 = vmatprep.subr.bf16.mxu0 0
        %4304 = vmatpush1.bf16.msra.mxu0 0
        %4305 = vmatprep.subr.bf16.mxu0 0
        %4306 = vmatpush1.bf16.msra.mxu0 0
        %4307 = vmatprep.subr.bf16.mxu0 0
        %4308 = vmatpush1.bf16.msra.mxu0 0
        %4309 = vmatprep.subr.bf16.mxu0 0
        %4310 = vmatpush1.bf16.msra.mxu0 0
        %4311 = vmatprep.mubr.bf16.mxu0 0
        %4312 = vmatmul.mubr.bf16.gmra.mrb[0].mxu0 %v4277
        %v4313 = vpop.f32.mrb[0].mxu0
        %v4314 = vadd.f32 %v4251, %v4313
        %v4315 = vpop.f32.mrb[0].mxu0
        %v4316 = vpop.f32.mrb[0].mxu0
        %v4317 = vpop.f32.mrb[0].mxu0
        %4318 = vdwg.mxu0
        %v4319 = vmax.f32 %v4314, 0.0
        %v4320 = vpack.c.bf16 %v4319, %v4319
        %v4321 = vld [vmem:[%s14] sm:$0xf]
        %v4322 = vld [vmem:[%s14 + $0x4] sm:$0xf]
        %v4323 = vld [vmem:[%s14 + $0x8] sm:$0xf]
        %v4324 = vld [vmem:[%s14 + $0xc] sm:$0xf]
        %v4325 = vld [vmem:[%s15] sm:$0x1]
        %v4330 = vunpack.c.l.b16 %v4321
        %v4331 = vunpack.c.l.b16 %v4322
        %v4332 = vunpack.c.l.b16 %v4323
        %v4333 = vunpack.c.l.b16 %v4324
        %v4334 = vpack.c.b16 %v4331, %v4330
        %v4335 = vpack.c.b16 %v4333, %v4332
        %vm4338 = vcmask 261120
        %v4340 = vsel %vm4338, %v4320, 0
        %4342 = vmatprep.subr.bf16.mxu0 0
        %4343 = vmatpush1.bf16.msra.mxu0 %v4334
        %4344 = vmatprep.subr.bf16.mxu0 0
        %4345 = vmatpush1.bf16.msra.mxu0 %v4335
        %4346 = vmatprep.subr.bf16.mxu0 0
        %4347 = vmatpush1.bf16.msra.mxu0 0
        %4348 = vmatprep.subr.bf16.mxu0 0
        %4349 = vmatpush1.bf16.msra.mxu0 0
        %4350 = vmatprep.subr.bf16.mxu0 0
        %4351 = vmatpush1.bf16.msra.mxu0 0
        %4352 = vmatprep.subr.bf16.mxu0 0
        %4353 = vmatpush1.bf16.msra.mxu0 0
        %4354 = vmatprep.subr.bf16.mxu0 0
        %4355 = vmatpush1.bf16.msra.mxu0 0
        %4356 = vmatprep.subr.bf16.mxu0 0
        %4357 = vmatpush1.bf16.msra.mxu0 0
        %4358 = vmatprep.subr.bf16.mxu0 0
        %4359 = vmatpush1.bf16.msra.mxu0 0
        %4360 = vmatprep.subr.bf16.mxu0 0
        %4361 = vmatpush1.bf16.msra.mxu0 0
        %4362 = vmatprep.subr.bf16.mxu0 0
        %4363 = vmatpush1.bf16.msra.mxu0 0
        %4364 = vmatprep.subr.bf16.mxu0 0
        %4365 = vmatpush1.bf16.msra.mxu0 0
        %4366 = vmatprep.subr.bf16.mxu0 0
        %4367 = vmatpush1.bf16.msra.mxu0 0
        %4368 = vmatprep.subr.bf16.mxu0 0
        %4369 = vmatpush1.bf16.msra.mxu0 0
        %4370 = vmatprep.subr.bf16.mxu0 0
        %4371 = vmatpush1.bf16.msra.mxu0 0
        %4372 = vmatprep.subr.bf16.mxu0 0
        %4373 = vmatpush1.bf16.msra.mxu0 0
        %4374 = vmatprep.mubr.bf16.mxu0 0
        %4375 = vmatmul.mubr.bf16.gmra.mrb[0].mxu0 %v4340
        %v4376 = vpop.f32.mrb[0].mxu0
        %v4377 = vadd.f32 %v4325, %v4376
        %v4378 = vpop.f32.mrb[0].mxu0
        %v4379 = vpop.f32.mrb[0].mxu0
        %v4380 = vpop.f32.mrb[0].mxu0
        %4381 = vdwg.mxu0
        %vm4382 = vcmask 40960
        %4383 = vst.msk [vmem:[%s511] sm:$0x1] %vm4382, %v4377
        %s4384 = sand.u32 %s379, 1
        %s4385 = scalar_lea.sflag [#allocation3], %s4384
        %s4386 = sand.u32 %s379, 1
        %s4387 = scalar_lea.vmem [#allocation2], %s4386
        // Predicated region
        $region85: #{tpu_custom_call.1} parent=83 // pred_check
          %p4388 = pneg %p389
        $region86: #{tpu_custom_call.1} parent=83 // pred_check_branch
          %4390 = sbr.rel (%p4388) target = $region88
        $region87: #{tpu_custom_call.1} parent=83 // pred_region
          %s4392 = ssub.s32 16, 16
          %4393 = vsyncadd %s4385, %s4392
          %s4394 = smul.addr %s30, 16
          %s4395 = scalar_lea.hbm %s16, %s4394
          %s4397 = sshll.u32 %s4387, 4
          %s4398 = int_to_ptr.vmem [resolvable:$true] %s4397
          %4400 = dma.vmem_to_hbm [thread:$0]  %s4398, 16, %s4395, %s4385
        $region88: #{tpu_custom_call.1} parent=83 // pred_fallthru
          _
      $region84: #{tpu_custom_call.1} parent=5 // pred_fallthru
        _
      %p4401 = scmp.le.s32.totalorder 2, %s25
      // Predicated region
      $region89: #{tpu_custom_call.1} parent=5 // pred_check
        %p4402 = pneg %p4401
      $region90: #{tpu_custom_call.1} parent=5 // pred_check_branch
        %4404 = sbr.rel (%p4402) target = $region92
      $region91: #{tpu_custom_call.1} parent=5 // pred_region
        %s4405 = ssub.s32 %s25, 2
        // Predicated region
        $region93: #{tpu_custom_call.1} parent=91 // pred_check
          %p4406 = pneg %p395
        $region94: #{tpu_custom_call.1} parent=91 // pred_check_branch
          %4408 = sbr.rel (%p4406) target = $region96
        $region95: #{tpu_custom_call.1} parent=91 // pred_region
          %s4409 = sand.u32 %s380, 1
          %s4410 = scalar_lea.sflag [#allocation3], %s4409
          %s4411 = sand.u32 %s380, 1
          %s4412 = scalar_lea.vmem [#allocation2], %s4411
          %4413 = dma.done %s4410, 16
        $region96: #{tpu_custom_call.1} parent=91 // pred_fallthru
          _
      $region92: #{tpu_custom_call.1} parent=5 // pred_fallthru
        _
    $region6: #{tpu_custom_call.1} parent=1 // loop_footer
      %s29 = sadd.s32 1, %s25
    $region7: #{tpu_custom_call.1} parent=1 // loop_footer_branch
      %24 = sbr.rel target = $region3
    $region8: #{tpu_custom_call.1} parent=1 // loop_exit
      _
    %4414 = vsyncpa [#allocation3], 1
    %s4415 = scalar_lea.sflag [#allocation3], 1
    %4416 = vsyncpa %s4415, 1

</llo_original>
